<compile_context>
chip_gen: v5e
topology: v5e:2x2
jax: 0.10.0
libtpu: 0.0.40
codegen_flags: <defaults>
</compile_context>

<pallas_src>
import functools

import jax
import jax.numpy as jnp
from jax.experimental import pallas as pl
from jax.experimental.pallas import tpu as pltpu

EMB = 32        # emb_size
HEADS = 2       # GATConv heads
CONS_NF = 5     # cons_nfeats
EDGE_NF = 1     # edge_nfeats
VAR_NF = 19     # var_nfeats

_NEG = -1e30    # "no edge" sentinel / masked logit value


def _vmem_spec():
    return pl.BlockSpec(memory_space=pltpu.MemorySpace.VMEM)


def _round_up(n, m):
    return ((n + m - 1) // m) * m


# ---------------------------------------------------------------------------
# Small fused dense kernels (whole arrays in VMEM; feature dims are 32/64 so
# these calls are launch-latency bound -> fuse whole Sequential chains).
# ---------------------------------------------------------------------------
def _linear_kernel(x_ref, w_ref, b_ref, o_ref):
    o_ref[...] = (jnp.dot(x_ref[...], w_ref[...],
                          preferred_element_type=jnp.float32) + b_ref[...])


def _mlp2_kernel(x_ref, w1_ref, b1_ref, w2_ref, b2_ref, o_ref):
    h = jnp.maximum(jnp.dot(x_ref[...], w1_ref[...],
                            preferred_element_type=jnp.float32) + b1_ref[...], 0.0)
    o_ref[...] = jnp.maximum(
        jnp.dot(h, w2_ref[...], preferred_element_type=jnp.float32) + b2_ref[...], 0.0)


def _out_head_kernel(x_ref, w1_ref, b1_ref, w2_ref, o_ref):
    h = jnp.maximum(jnp.dot(x_ref[...], w1_ref[...],
                            preferred_element_type=jnp.float32) + b1_ref[...], 0.0)
    o_ref[...] = jnp.dot(h, w2_ref[...], preferred_element_type=jnp.float32)


def linear(x, w, b):
    return pl.pallas_call(
        _linear_kernel,
        out_shape=jax.ShapeDtypeStruct((x.shape[0], w.shape[1]), jnp.float32),
        in_specs=[_vmem_spec()] * 3, out_specs=_vmem_spec(),
    )(x, w, b.reshape(1, -1))


def mlp2(x, w1, b1, w2, b2):
    return pl.pallas_call(
        _mlp2_kernel,
        out_shape=jax.ShapeDtypeStruct((x.shape[0], w2.shape[1]), jnp.float32),
        in_specs=[_vmem_spec()] * 5, out_specs=_vmem_spec(),
    )(x, w1, b1.reshape(1, -1), w2, b2.reshape(1, -1))


def out_head(x, w1, b1, w2):
    return pl.pallas_call(
        _out_head_kernel,
        out_shape=jax.ShapeDtypeStruct((x.shape[0], w2.shape[1]), jnp.float32),
        in_specs=[_vmem_spec()] * 4, out_specs=_vmem_spec(),
    )(x, w1, b1.reshape(1, -1), w2)


# ---------------------------------------------------------------------------
# GAT "pre" kernel: shared linear projection + per-head attention coefficients
#   y_src  = x_src  @ lin_w                 -> used as message features
#   a_src  = y_src  @ att_mat_src           -> [N_src, H]
#   a_dst  = (x_dst @ lin_w) @ att_mat_dst  -> [N_dst, H]   (y_dst not needed)
#   a_edge = (e     @ lin_edge_w) @ att_mat_edge -> [E, H]
# ---------------------------------------------------------------------------
def _gat_pre_kernel(xsrc_ref, xdst_ref, eattr_ref, linw_ref, linew_ref,
                    ams_ref, amd_ref, ame_ref,
                    ysrc_ref, asrc_ref, adst_ref, aedge_ref):
    ysrc = jnp.dot(xsrc_ref[...], linw_ref[...], preferred_element_type=jnp.float32)
    ysrc_ref[...] = ysrc
    asrc_ref[...] = jnp.dot(ysrc, ams_ref[...], preferred_element_type=jnp.float32)

    ydst = jnp.dot(xdst_ref[...], linw_ref[...], preferred_element_type=jnp.float32)
    adst_ref[...] = jnp.dot(ydst, amd_ref[...], preferred_element_type=jnp.float32)

    yedge = jnp.dot(eattr_ref[...], linew_ref[...], preferred_element_type=jnp.float32)
    aedge_ref[...] = jnp.dot(yedge, ame_ref[...], preferred_element_type=jnp.float32)


def _att_matrix(att):
    """[H, C] attention vector -> block-diagonal [H*C, H] so a = y @ mat."""
    H, C = att.shape
    eye = jnp.eye(H, dtype=att.dtype)
    return (att[:, :, None] * eye[:, None, :]).reshape(H * C, H)


# ---------------------------------------------------------------------------
# Fused GAT attention + GATNet epilogue kernel, gridded (dst tiles, src tiles).
# Online (flash-style) softmax over the src/reduction axis; the dst axis is
# "parallel" (sharded across TensorCores on v7x).  Epilogue at the last src
# tile computes the entire GATNet tail on the resident [TD, H*C] accumulator.
# ---------------------------------------------------------------------------
def _gat_fused_kernel(xsrc_ref, asrc_ref, adst_ref, ae_ref, left_ref,
                      cbias_ref, ltw_ref, ltb_ref, fmw_ref, fmb_ref,
                      pcl_ref, pcx_ref, pcb_ref,
                      o_ref, m_sc, l_sc, acc_sc, *, relu_out):
    j = pl.program_id(1)

    @pl.when(j == 0)
    def _init():
        m_sc[...] = jnp.full_like(m_sc, _NEG)
        l_sc[...] = jnp.zeros_like(l_sc)
        acc_sc[...] = jnp.zeros_like(acc_sc)

    for h in range(HEADS):
        ae = ae_ref[h]                                   # [TD, TS], _NEG = no edge
        is_edge = ae > (_NEG * 0.5)
        e = adst_ref[h] + asrc_ref[h] + ae               # [TD,1]+[1,TS]+[TD,TS]
        e = jnp.where(e > 0, e, 0.2 * e)                 # leaky_relu(0.2)
        e = jnp.where(is_edge, e, _NEG)                  # masked logits
        m_old = m_sc[h]                                  # [TD, 1]
        m_new = jnp.maximum(m_old, jnp.max(e, axis=1, keepdims=True))
        scale = jnp.exp(m_old - m_new)
        p = jnp.where(is_edge, jnp.exp(e - m_new), 0.0)  # [TD, TS]
        l_sc[h] = scale * l_sc[h] + jnp.sum(p, axis=1, keepdims=True)
        acc_sc[h] = scale * acc_sc[h] + jnp.dot(p, xsrc_ref[h],
                                                preferred_element_type=jnp.float32)
        m_sc[h] = m_new

    @pl.when(j == pl.num_programs(1) - 1)
    def _finalize():
        cbias = cbias_ref[...]                           # [1, H*EMB]
        ltw = ltw_ref[...]                               # [H*EMB, EMB]
        # x = relu(conv) @ lt_w + lt_b, accumulated per head (no concat).
        x = ltb_ref[...]                                 # [1, EMB], broadcasts
        for h in range(HEADS):
            l = l_sc[h]
            inv = jnp.where(l > 0.0, 1.0 / l, 0.0)       # isolated dst -> 0
            conv_h = acc_sc[h] * inv + cbias[:, h * EMB:(h + 1) * EMB]
            x = x + jnp.dot(jnp.maximum(conv_h, 0.0),
                            ltw[h * EMB:(h + 1) * EMB, :],
                            preferred_element_type=jnp.float32)
        # feature_module_final = ReLU -> Linear
        x = jnp.maximum(x, 0.0)
        x = jnp.dot(x, fmw_ref[...], preferred_element_type=jnp.float32) + fmb_ref[...]
        # post_concat(concat(left, x)) == left @ pc_top + x @ pc_bot + b
        out = (jnp.dot(left_ref[...], pcl_ref[...], preferred_element_type=jnp.float32)
               + jnp.dot(x, pcx_ref[...], preferred_element_type=jnp.float32)
               + pcb_ref[...])
        if relu_out:                                     # policy-level activation
            out = jnp.maximum(out, 0.0)
        o_ref[...] = out


def gatnet(p, left, src_idx, dst_idx, edge_attr, right, relu_out):
    """GATNet.forward (conv -> relu -> linear_transform -> feature_module_final
    -> concat(left,.) -> post_concat), plus the policy-level ReLU (relu_out)."""
    conv_p = p["conv"]
    n_src, n_dst, n_e = right.shape[0], left.shape[0], edge_attr.shape[0]

    # ---- pre: projections + attention coefficients (one fused kernel) ----
    ams = _att_matrix(conv_p["att_src"])
    amd = _att_matrix(conv_p["att_dst"])
    ame = _att_matrix(conv_p["att_edge"])
    ysrc, a_src, a_dst, a_edge = pl.pallas_call(
        _gat_pre_kernel,
        out_shape=(jax.ShapeDtypeStruct((n_src, HEADS * EMB), jnp.float32),
                   jax.ShapeDtypeStruct((n_src, HEADS), jnp.float32),
                   jax.ShapeDtypeStruct((n_dst, HEADS), jnp.float32),
                   jax.ShapeDtypeStruct((n_e, HEADS), jnp.float32)),
        in_specs=[_vmem_spec()] * 8,
        out_specs=(_vmem_spec(),) * 4,
    )(right, left, edge_attr, conv_p["lin_w"], conv_p["lin_edge_w"], ams, amd, ame)

    # ---- glue: scatter per-edge logits into a dense padded grid -----------
    # TODO(synk): duplicate (dst, src) edge pairs collapse last-writer-wins
    #             (like the original dense formulation); multigraphs differ
    #             from PyG edge-list semantics.
    dst_tile = min(256, _round_up(n_dst, 8))
    src_tile = min(512, _round_up(n_src, 128))
    nd_pad = _round_up(n_dst, dst_tile)
    ns_pad = _round_up(n_src, src_tile)

    ae_dense = jnp.full((HEADS, nd_pad, ns_pad), _NEG, jnp.float32)
    ae_dense = ae_dense.at[:, dst_idx, src_idx].set(a_edge.T)        # mask folded in
    asrc3 = jnp.zeros((HEADS, 1, ns_pad), jnp.float32).at[:, 0, :n_src].set(a_src.T)
    adst3 = jnp.zeros((HEADS, nd_pad, 1), jnp.float32).at[:, :n_dst, 0].set(a_dst.T)
    xsrc3 = jnp.zeros((HEADS, ns_pad, EMB), jnp.float32)
    xsrc3 = xsrc3.at[:, :n_src, :].set(
        ysrc.reshape(n_src, HEADS, EMB).transpose(1, 0, 2))
    left_pad = jnp.zeros((nd_pad, EMB), jnp.float32).at[:n_dst].set(left)

    grid = (nd_pad // dst_tile, ns_pad // src_tile)
    kern = functools.partial(_gat_fused_kernel, relu_out=relu_out)
    const = lambda i, j: (0, 0)     # small resident weights

    out = pl.pallas_call(
        kern,
        out_shape=jax.ShapeDtypeStruct((nd_pad, EMB), jnp.float32),
        grid_spec=pltpu.PrefetchScalarGridSpec(
            num_scalar_prefetch=0,
            grid=grid,
            in_specs=[
                pl.BlockSpec((HEADS, src_tile, EMB), lambda i, j: (0, j, 0)),       # xsrc
                pl.BlockSpec((HEADS, 1, src_tile), lambda i, j: (0, 0, j)),         # a_src
                pl.BlockSpec((HEADS, dst_tile, 1), lambda i, j: (0, i, 0)),         # a_dst
                pl.BlockSpec((HEADS, dst_tile, src_tile), lambda i, j: (0, i, j)),  # ae+mask
                pl.BlockSpec((dst_tile, EMB), lambda i, j: (i, 0)),                 # left
                pl.BlockSpec((1, HEADS * EMB), const),                              # conv bias
                pl.BlockSpec((HEADS * EMB, EMB), const),                            # lt_w
                pl.BlockSpec((1, EMB), const),                                      # lt_b
                pl.BlockSpec((EMB, EMB), const),                                    # fmf_w
                pl.BlockSpec((1, EMB), const),                                      # fmf_b
                pl.BlockSpec((EMB, EMB), const),                                    # pc_w top
                pl.BlockSpec((EMB, EMB), const),                                    # pc_w bot
                pl.BlockSpec((1, EMB), const),                                      # pc_b
            ],
            out_specs=pl.BlockSpec((dst_tile, EMB), lambda i, j: (i, 0)),
            scratch_shapes=[
                pltpu.VMEM((HEADS, dst_tile, 1), jnp.float32),       # running max
                pltpu.VMEM((HEADS, dst_tile, 1), jnp.float32),       # running denom
                pltpu.VMEM((HEADS, dst_tile, EMB), jnp.float32),     # running acc
            ],
        ),
        compiler_params=pltpu.CompilerParams(
            dimension_semantics=("parallel", "arbitrary")),
    )(xsrc3, asrc3, adst3, ae_dense, left_pad,
      conv_p["bias"].reshape(1, -1),
      p["lt_w"], p["lt_b"].reshape(1, -1),
      p["fmf_w"], p["fmf_b"].reshape(1, -1),
      p["pc_w"][:EMB], p["pc_w"][EMB:], p["pc_b"].reshape(1, -1))
    return out[:n_dst]


def gat_policy_forward(params, constraint_features, edge_indices,
                       edge_features, variable_features):
    # embeddings (fused 2-layer MLP kernels / single linear)
    cons = mlp2(constraint_features, params["cons_w1"], params["cons_b1"],
                params["cons_w2"], params["cons_b2"])
    var = mlp2(variable_features, params["var_w1"], params["var_b1"],
               params["var_w2"], params["var_b2"])
    ef = linear(edge_features, params["edge_w"], params["edge_b"])

    ci, vi = edge_indices[0], edge_indices[1]
    # conv_v_to_c: edge_indices_rev = [vi, ci] -> src = variables, dst = constraints
    cons = gatnet(params["v_to_c"], cons, vi, ci, ef, var, relu_out=True)
    # conv_c_to_v: edge_indices = [ci, vi]     -> src = constraints, dst = variables
    var = gatnet(params["c_to_v"], var, ci, vi, ef, cons, relu_out=True)

    out = out_head(var, params["out_w1"], params["out_b1"], params["out_w2"])
    return var, out.reshape(1, -1)


# ---------------------------------------------------------------------------
# Deterministic synthetic parameter init (shapes mirror the PyTorch module).
# TODO(synk): PreNormLayer pre-training machinery and pad_output are not part
#             of the inference forward path and are not implemented.
# ---------------------------------------------------------------------------
def _dense_p(k, fin, fout, bias=True, scale=0.1):
    k1, k2 = jax.random.split(k)
    w = scale * jax.random.normal(k1, (fin, fout), jnp.float32)
    b = scale * jax.random.normal(k2, (fout,), jnp.float32) if bias else None
    return w, b


def _gatconv_p(k):
    ks = jax.random.split(k, 5)
    return dict(
        lin_w=0.1 * jax.random.normal(ks[0], (EMB, HEADS * EMB), jnp.float32),
        lin_edge_w=0.1 * jax.random.normal(ks[1], (EMB, HEADS * EMB), jnp.float32),
        att_src=0.1 * jax.random.normal(ks[2], (HEADS, EMB), jnp.float32),
        att_dst=0.1 * jax.random.normal(ks[3], (HEADS, EMB), jnp.float32),
        att_edge=0.1 * jax.random.normal(ks[4], (HEADS, EMB), jnp.float32),
        bias=jnp.zeros((HEADS * EMB,), jnp.float32),
    )


def _gatnet_p(k):
    ks = jax.random.split(k, 4)
    lt_w, lt_b = _dense_p(ks[0], HEADS * EMB, EMB)
    fmf_w, fmf_b = _dense_p(ks[1], EMB, EMB)
    pc_w, pc_b = _dense_p(ks[2], 2 * EMB, EMB)
    return dict(conv=_gatconv_p(ks[3]), lt_w=lt_w, lt_b=lt_b,
                fmf_w=fmf_w, fmf_b=fmf_b, pc_w=pc_w, pc_b=pc_b)


def init_params(key):
    ks = jax.random.split(key, 10)
    cons_w1, cons_b1 = _dense_p(ks[0], CONS_NF, EMB)
    cons_w2, cons_b2 = _dense_p(ks[1], EMB, EMB)
    edge_w, edge_b = _dense_p(ks[2], EDGE_NF, EMB)
    var_w1, var_b1 = _dense_p(ks[3], VAR_NF, EMB)
    var_w2, var_b2 = _dense_p(ks[4], EMB, EMB)
    out_w1, out_b1 = _dense_p(ks[5], EMB, EMB)
    out_w2, _ = _dense_p(ks[6], EMB, 1, bias=False)
    return dict(
        cons_w1=cons_w1, cons_b1=cons_b1, cons_w2=cons_w2, cons_b2=cons_b2,
        edge_w=edge_w, edge_b=edge_b,
        var_w1=var_w1, var_b1=var_b1, var_w2=var_w2, var_b2=var_b2,
        v_to_c=_gatnet_p(ks[7]), c_to_v=_gatnet_p(ks[8]),
        out_w1=out_w1, out_b1=out_b1, out_w2=out_w2,
    )


if __name__ == "__main__":
    key = jax.random.PRNGKey(0)
    kp, kc, kv, ke, kidx = jax.random.split(key, 5)
    params = init_params(kp)

    n_cons, n_vars, n_edges = 6, 10, 20
    constraint_features = jax.random.normal(kc, (n_cons, CONS_NF), jnp.float32)
    variable_features = jax.random.normal(kv, (n_vars, VAR_NF), jnp.float32)
    edge_features = jax.random.normal(ke, (n_edges, EDGE_NF), jnp.float32)
    # distinct (constraint, variable) pairs -> edge_indices[0]=cons, [1]=var
    flat = jax.random.choice(kidx, n_cons * n_vars, shape=(n_edges,), replace=False)
    edge_indices = jnp.stack([flat // n_vars, flat % n_vars]).astype(jnp.int32)

    fwd = jax.jit(gat_policy_forward)
    var_out, output = fwd(params, constraint_features, edge_indices,
                          edge_features, variable_features)
    jax.block_until_ready((var_out, output))
    assert var_out.shape == (n_vars, EMB)
    assert output.shape == (1, n_vars)
    print("KERNEL_OK")
</pallas_src>

<mosaic_0001>
module attributes {stable_mosaic.version = 11 : i64} {
  func.func @_mlp2_kernel(%arg0: memref<10x19xf32, #tpu.memory_space<vmem>>, %arg1: memref<19x32xf32, #tpu.memory_space<vmem>>, %arg2: memref<1x32xf32, #tpu.memory_space<vmem>>, %arg3: memref<32x32xf32, #tpu.memory_space<vmem>>, %arg4: memref<1x32xf32, #tpu.memory_space<vmem>>, %arg5: memref<10x32xf32, #tpu.memory_space<vmem>>) attributes {dimension_semantics = [], scalar_prefetch = 0 : i64, scratch_operands = 0 : i64, tpu.core_type = #tpu.core_type<tc>} {
    %c0 = arith.constant 0 : index
    %c0_0 = arith.constant 0 : index
    %0 = vector.load %arg0[%c0, %c0_0] : memref<10x19xf32, #tpu.memory_space<vmem>>, vector<10x19xf32>
    %c0_1 = arith.constant 0 : index
    %c0_2 = arith.constant 0 : index
    %1 = vector.load %arg1[%c0_1, %c0_2] : memref<19x32xf32, #tpu.memory_space<vmem>>, vector<19x32xf32>
    %cst = arith.constant dense<0.000000e+00> : vector<10x32xf32>
    %2 = tpu.matmul %0, %1, %cst {dimension_numbers = #tpu.dot_dimension_numbers<[1], [0], [0], [1], [0, 0, 1, 1], [], []>} : vector<10x19xf32>, vector<19x32xf32>, vector<10x32xf32> -> vector<10x32xf32>
    %c0_3 = arith.constant 0 : index
    %c0_4 = arith.constant 0 : index
    %3 = vector.load %arg2[%c0_3, %c0_4] : memref<1x32xf32, #tpu.memory_space<vmem>>, vector<1x32xf32>
    %4 = vector.broadcast %3 : vector<1x32xf32> to vector<10x32xf32>
    %5 = arith.addf %2, %4 : vector<10x32xf32>
    %cst_5 = arith.constant 0.000000e+00 : f32
    %6 = vector.broadcast %cst_5 : f32 to vector<10x32xf32>
    %7 = arith.maximumf %5, %6 : vector<10x32xf32>
    %c0_6 = arith.constant 0 : index
    %c0_7 = arith.constant 0 : index
    %8 = vector.load %arg3[%c0_6, %c0_7] : memref<32x32xf32, #tpu.memory_space<vmem>>, vector<32x32xf32>
    %cst_8 = arith.constant dense<0.000000e+00> : vector<10x32xf32>
    %9 = tpu.matmul %7, %8, %cst_8 {dimension_numbers = #tpu.dot_dimension_numbers<[1], [0], [0], [1], [0, 0, 1, 1], [], []>} : vector<10x32xf32>, vector<32x32xf32>, vector<10x32xf32> -> vector<10x32xf32>
    %c0_9 = arith.constant 0 : index
    %c0_10 = arith.constant 0 : index
    %10 = vector.load %arg4[%c0_9, %c0_10] : memref<1x32xf32, #tpu.memory_space<vmem>>, vector<1x32xf32>
    %11 = vector.broadcast %10 : vector<1x32xf32> to vector<10x32xf32>
    %12 = arith.addf %9, %11 : vector<10x32xf32>
    %cst_11 = arith.constant 0.000000e+00 : f32
    %13 = vector.broadcast %cst_11 : f32 to vector<10x32xf32>
    %14 = arith.maximumf %12, %13 : vector<10x32xf32>
    %c0_12 = arith.constant 0 : index
    %c0_13 = arith.constant 0 : index
    %15 = vector.load %arg5[%c0_12, %c0_13] : memref<10x32xf32, #tpu.memory_space<vmem>>, vector<10x32xf32>
    tpu.vector_store %arg5[%c0_12, %c0_13], %14 {strides = array<i32>} : memref<10x32xf32, #tpu.memory_space<vmem>>, vector<10x32xf32>,
    return
  }
}

module attributes {stable_mosaic.version = 11 : i64} {
  func.func @_linear_kernel(%arg0: memref<20x1xf32, #tpu.memory_space<vmem>>, %arg1: memref<1x32xf32, #tpu.memory_space<vmem>>, %arg2: memref<1x32xf32, #tpu.memory_space<vmem>>, %arg3: memref<20x32xf32, #tpu.memory_space<vmem>>) attributes {dimension_semantics = [], scalar_prefetch = 0 : i64, scratch_operands = 0 : i64, tpu.core_type = #tpu.core_type<tc>} {
    %c0 = arith.constant 0 : index
    %c0_0 = arith.constant 0 : index
    %0 = vector.load %arg0[%c0, %c0_0] : memref<20x1xf32, #tpu.memory_space<vmem>>, vector<20x1xf32>
    %c0_1 = arith.constant 0 : index
    %c0_2 = arith.constant 0 : index
    %1 = vector.load %arg1[%c0_1, %c0_2] : memref<1x32xf32, #tpu.memory_space<vmem>>, vector<1x32xf32>
    %cst = arith.constant dense<0.000000e+00> : vector<20x32xf32>
    %2 = tpu.matmul %0, %1, %cst {dimension_numbers = #tpu.dot_dimension_numbers<[1], [0], [0], [1], [0, 0, 1, 1], [], []>} : vector<20x1xf32>, vector<1x32xf32>, vector<20x32xf32> -> vector<20x32xf32>
    %c0_3 = arith.constant 0 : index
    %c0_4 = arith.constant 0 : index
    %3 = vector.load %arg2[%c0_3, %c0_4] : memref<1x32xf32, #tpu.memory_space<vmem>>, vector<1x32xf32>
    %4 = vector.broadcast %3 : vector<1x32xf32> to vector<20x32xf32>
    %5 = arith.addf %2, %4 : vector<20x32xf32>
    %c0_5 = arith.constant 0 : index
    %c0_6 = arith.constant 0 : index
    %6 = vector.load %arg3[%c0_5, %c0_6] : memref<20x32xf32, #tpu.memory_space<vmem>>, vector<20x32xf32>
    tpu.vector_store %arg3[%c0_5, %c0_6], %5 {strides = array<i32>} : memref<20x32xf32, #tpu.memory_space<vmem>>, vector<20x32xf32>,
    return
  }
}

module attributes {stable_mosaic.version = 11 : i64} {
  func.func @_mlp2_kernel(%arg0: memref<6x5xf32, #tpu.memory_space<vmem>>, %arg1: memref<5x32xf32, #tpu.memory_space<vmem>>, %arg2: memref<1x32xf32, #tpu.memory_space<vmem>>, %arg3: memref<32x32xf32, #tpu.memory_space<vmem>>, %arg4: memref<1x32xf32, #tpu.memory_space<vmem>>, %arg5: memref<6x32xf32, #tpu.memory_space<vmem>>) attributes {dimension_semantics = [], scalar_prefetch = 0 : i64, scratch_operands = 0 : i64, tpu.core_type = #tpu.core_type<tc>} {
    %c0 = arith.constant 0 : index
    %c0_0 = arith.constant 0 : index
    %0 = vector.load %arg0[%c0, %c0_0] : memref<6x5xf32, #tpu.memory_space<vmem>>, vector<6x5xf32>
    %c0_1 = arith.constant 0 : index
    %c0_2 = arith.constant 0 : index
    %1 = vector.load %arg1[%c0_1, %c0_2] : memref<5x32xf32, #tpu.memory_space<vmem>>, vector<5x32xf32>
    %cst = arith.constant dense<0.000000e+00> : vector<6x32xf32>
    %2 = tpu.matmul %0, %1, %cst {dimension_numbers = #tpu.dot_dimension_numbers<[1], [0], [0], [1], [0, 0, 1, 1], [], []>} : vector<6x5xf32>, vector<5x32xf32>, vector<6x32xf32> -> vector<6x32xf32>
    %c0_3 = arith.constant 0 : index
    %c0_4 = arith.constant 0 : index
    %3 = vector.load %arg2[%c0_3, %c0_4] : memref<1x32xf32, #tpu.memory_space<vmem>>, vector<1x32xf32>
    %4 = vector.broadcast %3 : vector<1x32xf32> to vector<6x32xf32>
    %5 = arith.addf %2, %4 : vector<6x32xf32>
    %cst_5 = arith.constant 0.000000e+00 : f32
    %6 = vector.broadcast %cst_5 : f32 to vector<6x32xf32>
    %7 = arith.maximumf %5, %6 : vector<6x32xf32>
    %c0_6 = arith.constant 0 : index
    %c0_7 = arith.constant 0 : index
    %8 = vector.load %arg3[%c0_6, %c0_7] : memref<32x32xf32, #tpu.memory_space<vmem>>, vector<32x32xf32>
    %cst_8 = arith.constant dense<0.000000e+00> : vector<6x32xf32>
    %9 = tpu.matmul %7, %8, %cst_8 {dimension_numbers = #tpu.dot_dimension_numbers<[1], [0], [0], [1], [0, 0, 1, 1], [], []>} : vector<6x32xf32>, vector<32x32xf32>, vector<6x32xf32> -> vector<6x32xf32>
    %c0_9 = arith.constant 0 : index
    %c0_10 = arith.constant 0 : index
    %10 = vector.load %arg4[%c0_9, %c0_10] : memref<1x32xf32, #tpu.memory_space<vmem>>, vector<1x32xf32>
    %11 = vector.broadcast %10 : vector<1x32xf32> to vector<6x32xf32>
    %12 = arith.addf %9, %11 : vector<6x32xf32>
    %cst_11 = arith.constant 0.000000e+00 : f32
    %13 = vector.broadcast %cst_11 : f32 to vector<6x32xf32>
    %14 = arith.maximumf %12, %13 : vector<6x32xf32>
    %c0_12 = arith.constant 0 : index
    %c0_13 = arith.constant 0 : index
    %15 = vector.load %arg5[%c0_12, %c0_13] : memref<6x32xf32, #tpu.memory_space<vmem>>, vector<6x32xf32>
    tpu.vector_store %arg5[%c0_12, %c0_13], %14 {strides = array<i32>} : memref<6x32xf32, #tpu.memory_space<vmem>>, vector<6x32xf32>,
    return
  }
}

module attributes {stable_mosaic.version = 11 : i64} {
  func.func @_gat_pre_kernel(%arg0: memref<10x32xf32, #tpu.memory_space<vmem>>, %arg1: memref<6x32xf32, #tpu.memory_space<vmem>>, %arg2: memref<20x32xf32, #tpu.memory_space<vmem>>, %arg3: memref<32x64xf32, #tpu.memory_space<vmem>>, %arg4: memref<32x64xf32, #tpu.memory_space<vmem>>, %arg5: memref<64x2xf32, #tpu.memory_space<vmem>>, %arg6: memref<64x2xf32, #tpu.memory_space<vmem>>, %arg7: memref<64x2xf32, #tpu.memory_space<vmem>>, %arg8: memref<10x64xf32, #tpu.memory_space<vmem>>, %arg9: memref<10x2xf32, #tpu.memory_space<vmem>>, %arg10: memref<6x2xf32, #tpu.memory_space<vmem>>, %arg11: memref<20x2xf32, #tpu.memory_space<vmem>>) attributes {dimension_semantics = [], scalar_prefetch = 0 : i64, scratch_operands = 0 : i64, tpu.core_type = #tpu.core_type<tc>} {
    %c0 = arith.constant 0 : index
    %c0_0 = arith.constant 0 : index
    %0 = vector.load %arg0[%c0, %c0_0] : memref<10x32xf32, #tpu.memory_space<vmem>>, vector<10x32xf32>
    %c0_1 = arith.constant 0 : index
    %c0_2 = arith.constant 0 : index
    %1 = vector.load %arg3[%c0_1, %c0_2] : memref<32x64xf32, #tpu.memory_space<vmem>>, vector<32x64xf32>
    %cst = arith.constant dense<0.000000e+00> : vector<10x64xf32>
    %2 = tpu.matmul %0, %1, %cst {dimension_numbers = #tpu.dot_dimension_numbers<[1], [0], [0], [1], [0, 0, 1, 1], [], []>} : vector<10x32xf32>, vector<32x64xf32>, vector<10x64xf32> -> vector<10x64xf32>
    %c0_3 = arith.constant 0 : index
    %c0_4 = arith.constant 0 : index
    %3 = vector.load %arg8[%c0_3, %c0_4] : memref<10x64xf32, #tpu.memory_space<vmem>>, vector<10x64xf32>
    tpu.vector_store %arg8[%c0_3, %c0_4], %2 {strides = array<i32>} : memref<10x64xf32, #tpu.memory_space<vmem>>, vector<10x64xf32>,
    %c0_5 = arith.constant 0 : index
    %c0_6 = arith.constant 0 : index
    %4 = vector.load %arg5[%c0_5, %c0_6] : memref<64x2xf32, #tpu.memory_space<vmem>>, vector<64x2xf32>
    %cst_7 = arith.constant dense<0.000000e+00> : vector<10x2xf32>
    %5 = tpu.matmul %2, %4, %cst_7 {dimension_numbers = #tpu.dot_dimension_numbers<[1], [0], [0], [1], [0, 0, 1, 1], [], []>} : vector<10x64xf32>, vector<64x2xf32>, vector<10x2xf32> -> vector<10x2xf32>
    %c0_8 = arith.constant 0 : index
    %c0_9 = arith.constant 0 : index
    %6 = vector.load %arg9[%c0_8, %c0_9] : memref<10x2xf32, #tpu.memory_space<vmem>>, vector<10x2xf32>
    tpu.vector_store %arg9[%c0_8, %c0_9], %5 {strides = array<i32>} : memref<10x2xf32, #tpu.memory_space<vmem>>, vector<10x2xf32>,
    %c0_10 = arith.constant 0 : index
    %c0_11 = arith.constant 0 : index
    %7 = vector.load %arg1[%c0_10, %c0_11] : memref<6x32xf32, #tpu.memory_space<vmem>>, vector<6x32xf32>
    %c0_12 = arith.constant 0 : index
    %c0_13 = arith.constant 0 : index
    %8 = vector.load %arg3[%c0_12, %c0_13] : memref<32x64xf32, #tpu.memory_space<vmem>>, vector<32x64xf32>
    %cst_14 = arith.constant dense<0.000000e+00> : vector<6x64xf32>
    %9 = tpu.matmul %7, %8, %cst_14 {dimension_numbers = #tpu.dot_dimension_numbers<[1], [0], [0], [1], [0, 0, 1, 1], [], []>} : vector<6x32xf32>, vector<32x64xf32>, vector<6x64xf32> -> vector<6x64xf32>
    %c0_15 = arith.constant 0 : index
    %c0_16 = arith.constant 0 : index
    %10 = vector.load %arg6[%c0_15, %c0_16] : memref<64x2xf32, #tpu.memory_space<vmem>>, vector<64x2xf32>
    %cst_17 = arith.constant dense<0.000000e+00> : vector<6x2xf32>
    %11 = tpu.matmul %9, %10, %cst_17 {dimension_numbers = #tpu.dot_dimension_numbers<[1], [0], [0], [1], [0, 0, 1, 1], [], []>} : vector<6x64xf32>, vector<64x2xf32>, vector<6x2xf32> -> vector<6x2xf32>
    %c0_18 = arith.constant 0 : index
    %c0_19 = arith.constant 0 : index
    %12 = vector.load %arg10[%c0_18, %c0_19] : memref<6x2xf32, #tpu.memory_space<vmem>>, vector<6x2xf32>
    tpu.vector_store %arg10[%c0_18, %c0_19], %11 {strides = array<i32>} : memref<6x2xf32, #tpu.memory_space<vmem>>, vector<6x2xf32>,
    %c0_20 = arith.constant 0 : index
    %c0_21 = arith.constant 0 : index
    %13 = vector.load %arg2[%c0_20, %c0_21] : memref<20x32xf32, #tpu.memory_space<vmem>>, vector<20x32xf32>
    %c0_22 = arith.constant 0 : index
    %c0_23 = arith.constant 0 : index
    %14 = vector.load %arg4[%c0_22, %c0_23] : memref<32x64xf32, #tpu.memory_space<vmem>>, vector<32x64xf32>
    %cst_24 = arith.constant dense<0.000000e+00> : vector<20x64xf32>
    %15 = tpu.matmul %13, %14, %cst_24 {dimension_numbers = #tpu.dot_dimension_numbers<[1], [0], [0], [1], [0, 0, 1, 1], [], []>} : vector<20x32xf32>, vector<32x64xf32>, vector<20x64xf32> -> vector<20x64xf32>
    %c0_25 = arith.constant 0 : index
    %c0_26 = arith.constant 0 : index
    %16 = vector.load %arg7[%c0_25, %c0_26] : memref<64x2xf32, #tpu.memory_space<vmem>>, vector<64x2xf32>
    %cst_27 = arith.constant dense<0.000000e+00> : vector<20x2xf32>
    %17 = tpu.matmul %15, %16, %cst_27 {dimension_numbers = #tpu.dot_dimension_numbers<[1], [0], [0], [1], [0, 0, 1, 1], [], []>} : vector<20x64xf32>, vector<64x2xf32>, vector<20x2xf32> -> vector<20x2xf32>
    %c0_28 = arith.constant 0 : index
    %c0_29 = arith.constant 0 : index
    %18 = vector.load %arg11[%c0_28, %c0_29] : memref<20x2xf32, #tpu.memory_space<vmem>>, vector<20x2xf32>
    tpu.vector_store %arg11[%c0_28, %c0_29], %17 {strides = array<i32>} : memref<20x2xf32, #tpu.memory_space<vmem>>, vector<20x2xf32>,
    return
  }
}

module attributes {stable_mosaic.version = 11 : i64} {
  func.func @_gat_pre_kernel(%arg0: memref<6x32xf32, #tpu.memory_space<vmem>>, %arg1: memref<10x32xf32, #tpu.memory_space<vmem>>, %arg2: memref<20x32xf32, #tpu.memory_space<vmem>>, %arg3: memref<32x64xf32, #tpu.memory_space<vmem>>, %arg4: memref<32x64xf32, #tpu.memory_space<vmem>>, %arg5: memref<64x2xf32, #tpu.memory_space<vmem>>, %arg6: memref<64x2xf32, #tpu.memory_space<vmem>>, %arg7: memref<64x2xf32, #tpu.memory_space<vmem>>, %arg8: memref<6x64xf32, #tpu.memory_space<vmem>>, %arg9: memref<6x2xf32, #tpu.memory_space<vmem>>, %arg10: memref<10x2xf32, #tpu.memory_space<vmem>>, %arg11: memref<20x2xf32, #tpu.memory_space<vmem>>) attributes {dimension_semantics = [], scalar_prefetch = 0 : i64, scratch_operands = 0 : i64, tpu.core_type = #tpu.core_type<tc>} {
    %c0 = arith.constant 0 : index
    %c0_0 = arith.constant 0 : index
    %0 = vector.load %arg0[%c0, %c0_0] : memref<6x32xf32, #tpu.memory_space<vmem>>, vector<6x32xf32>
    %c0_1 = arith.constant 0 : index
    %c0_2 = arith.constant 0 : index
    %1 = vector.load %arg3[%c0_1, %c0_2] : memref<32x64xf32, #tpu.memory_space<vmem>>, vector<32x64xf32>
    %cst = arith.constant dense<0.000000e+00> : vector<6x64xf32>
    %2 = tpu.matmul %0, %1, %cst {dimension_numbers = #tpu.dot_dimension_numbers<[1], [0], [0], [1], [0, 0, 1, 1], [], []>} : vector<6x32xf32>, vector<32x64xf32>, vector<6x64xf32> -> vector<6x64xf32>
    %c0_3 = arith.constant 0 : index
    %c0_4 = arith.constant 0 : index
    %3 = vector.load %arg8[%c0_3, %c0_4] : memref<6x64xf32, #tpu.memory_space<vmem>>, vector<6x64xf32>
    tpu.vector_store %arg8[%c0_3, %c0_4], %2 {strides = array<i32>} : memref<6x64xf32, #tpu.memory_space<vmem>>, vector<6x64xf32>,
    %c0_5 = arith.constant 0 : index
    %c0_6 = arith.constant 0 : index
    %4 = vector.load %arg5[%c0_5, %c0_6] : memref<64x2xf32, #tpu.memory_space<vmem>>, vector<64x2xf32>
    %cst_7 = arith.constant dense<0.000000e+00> : vector<6x2xf32>
    %5 = tpu.matmul %2, %4, %cst_7 {dimension_numbers = #tpu.dot_dimension_numbers<[1], [0], [0], [1], [0, 0, 1, 1], [], []>} : vector<6x64xf32>, vector<64x2xf32>, vector<6x2xf32> -> vector<6x2xf32>
    %c0_8 = arith.constant 0 : index
    %c0_9 = arith.constant 0 : index
    %6 = vector.load %arg9[%c0_8, %c0_9] : memref<6x2xf32, #tpu.memory_space<vmem>>, vector<6x2xf32>
    tpu.vector_store %arg9[%c0_8, %c0_9], %5 {strides = array<i32>} : memref<6x2xf32, #tpu.memory_space<vmem>>, vector<6x2xf32>,
    %c0_10 = arith.constant 0 : index
    %c0_11 = arith.constant 0 : index
    %7 = vector.load %arg1[%c0_10, %c0_11] : memref<10x32xf32, #tpu.memory_space<vmem>>, vector<10x32xf32>
    %c0_12 = arith.constant 0 : index
    %c0_13 = arith.constant 0 : index
    %8 = vector.load %arg3[%c0_12, %c0_13] : memref<32x64xf32, #tpu.memory_space<vmem>>, vector<32x64xf32>
    %cst_14 = arith.constant dense<0.000000e+00> : vector<10x64xf32>
    %9 = tpu.matmul %7, %8, %cst_14 {dimension_numbers = #tpu.dot_dimension_numbers<[1], [0], [0], [1], [0, 0, 1, 1], [], []>} : vector<10x32xf32>, vector<32x64xf32>, vector<10x64xf32> -> vector<10x64xf32>
    %c0_15 = arith.constant 0 : index
    %c0_16 = arith.constant 0 : index
    %10 = vector.load %arg6[%c0_15, %c0_16] : memref<64x2xf32, #tpu.memory_space<vmem>>, vector<64x2xf32>
    %cst_17 = arith.constant dense<0.000000e+00> : vector<10x2xf32>
    %11 = tpu.matmul %9, %10, %cst_17 {dimension_numbers = #tpu.dot_dimension_numbers<[1], [0], [0], [1], [0, 0, 1, 1], [], []>} : vector<10x64xf32>, vector<64x2xf32>, vector<10x2xf32> -> vector<10x2xf32>
    %c0_18 = arith.constant 0 : index
    %c0_19 = arith.constant 0 : index
    %12 = vector.load %arg10[%c0_18, %c0_19] : memref<10x2xf32, #tpu.memory_space<vmem>>, vector<10x2xf32>
    tpu.vector_store %arg10[%c0_18, %c0_19], %11 {strides = array<i32>} : memref<10x2xf32, #tpu.memory_space<vmem>>, vector<10x2xf32>,
    %c0_20 = arith.constant 0 : index
    %c0_21 = arith.constant 0 : index
    %13 = vector.load %arg2[%c0_20, %c0_21] : memref<20x32xf32, #tpu.memory_space<vmem>>, vector<20x32xf32>
    %c0_22 = arith.constant 0 : index
    %c0_23 = arith.constant 0 : index
    %14 = vector.load %arg4[%c0_22, %c0_23] : memref<32x64xf32, #tpu.memory_space<vmem>>, vector<32x64xf32>
    %cst_24 = arith.constant dense<0.000000e+00> : vector<20x64xf32>
    %15 = tpu.matmul %13, %14, %cst_24 {dimension_numbers = #tpu.dot_dimension_numbers<[1], [0], [0], [1], [0, 0, 1, 1], [], []>} : vector<20x32xf32>, vector<32x64xf32>, vector<20x64xf32> -> vector<20x64xf32>
    %c0_25 = arith.constant 0 : index
    %c0_26 = arith.constant 0 : index
    %16 = vector.load %arg7[%c0_25, %c0_26] : memref<64x2xf32, #tpu.memory_space<vmem>>, vector<64x2xf32>
    %cst_27 = arith.constant dense<0.000000e+00> : vector<20x2xf32>
    %17 = tpu.matmul %15, %16, %cst_27 {dimension_numbers = #tpu.dot_dimension_numbers<[1], [0], [0], [1], [0, 0, 1, 1], [], []>} : vector<20x64xf32>, vector<64x2xf32>, vector<20x2xf32> -> vector<20x2xf32>
    %c0_28 = arith.constant 0 : index
    %c0_29 = arith.constant 0 : index
    %18 = vector.load %arg11[%c0_28, %c0_29] : memref<20x2xf32, #tpu.memory_space<vmem>>, vector<20x2xf32>
    tpu.vector_store %arg11[%c0_28, %c0_29], %17 {strides = array<i32>} : memref<20x2xf32, #tpu.memory_space<vmem>>, vector<20x2xf32>,
    return
  }
}

module attributes {stable_mosaic.version = 11 : i64} {
  func.func @_gat_fused_kernel(%arg0: i32, %arg1: i32, %arg2: memref<2x128x32xf32, #tpu.memory_space<vmem>>, %arg3: memref<2x1x128xf32, #tpu.memory_space<vmem>>, %arg4: memref<2x8x1xf32, #tpu.memory_space<vmem>>, %arg5: memref<2x8x128xf32, #tpu.memory_space<vmem>>, %arg6: memref<8x32xf32, #tpu.memory_space<vmem>>, %arg7: memref<1x64xf32, #tpu.memory_space<vmem>>, %arg8: memref<64x32xf32, #tpu.memory_space<vmem>>, %arg9: memref<1x32xf32, #tpu.memory_space<vmem>>, %arg10: memref<32x32xf32, #tpu.memory_space<vmem>>, %arg11: memref<1x32xf32, #tpu.memory_space<vmem>>, %arg12: memref<32x32xf32, #tpu.memory_space<vmem>>, %arg13: memref<32x32xf32, #tpu.memory_space<vmem>>, %arg14: memref<1x32xf32, #tpu.memory_space<vmem>>, %arg15: memref<8x32xf32, #tpu.memory_space<vmem>>, %arg16: memref<2x8x1xf32, #tpu.memory_space<vmem>>, %arg17: memref<2x8x1xf32, #tpu.memory_space<vmem>>, %arg18: memref<2x8x32xf32, #tpu.memory_space<vmem>>) attributes {dimension_semantics = [#tpu.dimension_semantics<parallel>, #tpu.dimension_semantics<arbitrary>], iteration_bounds = array<i64: 1, 1>, scalar_prefetch = 0 : i64, scratch_operands = 3 : i64, tpu.core_type = #tpu.core_type<tc>, window_params = [{transform_indices = @transform_0, window_bounds = array<i64: 2, 128, 32>}, {transform_indices = @transform_1, window_bounds = array<i64: 2, 1, 128>}, {transform_indices = @transform_2, window_bounds = array<i64: 2, 8, 1>}, {transform_indices = @transform_3, window_bounds = array<i64: 2, 8, 128>}, {transform_indices = @transform_4, window_bounds = array<i64: 8, 32>}, {pipeline_mode = #tpu.pipeline_mode<synchronous>, transform_indices = @transform_5, window_bounds = array<i64: 1, 64>}, {pipeline_mode = #tpu.pipeline_mode<synchronous>, transform_indices = @transform_6, window_bounds = array<i64: 64, 32>}, {pipeline_mode = #tpu.pipeline_mode<synchronous>, transform_indices = @transform_7, window_bounds = array<i64: 1, 32>}, {pipeline_mode = #tpu.pipeline_mode<synchronous>, transform_indices = @transform_8, window_bounds = array<i64: 32, 32>}, {pipeline_mode = #tpu.pipeline_mode<synchronous>, transform_indices = @transform_9, window_bounds = array<i64: 1, 32>}, {pipeline_mode = #tpu.pipeline_mode<synchronous>, transform_indices = @transform_10, window_bounds = array<i64: 32, 32>}, {pipeline_mode = #tpu.pipeline_mode<synchronous>, transform_indices = @transform_11, window_bounds = array<i64: 32, 32>}, {pipeline_mode = #tpu.pipeline_mode<synchronous>, transform_indices = @transform_12, window_bounds = array<i64: 1, 32>}, {transform_indices = @transform_13, window_bounds = array<i64: 8, 32>}]} {
    %c0_i32 = arith.constant 0 : i32
    %0 = arith.cmpi eq, %arg1, %c0_i32 : i32
    %1 = arith.extui %0 : i1 to i32
    %c0_i32_0 = arith.constant 0 : i32
    %2 = arith.cmpi ne, %1, %c0_i32_0 : i32
    scf.if %2 {
      %cst_76 = arith.constant -1.000000e+30 : f32
      %114 = vector.broadcast %cst_76 : f32 to vector<2x8x1xf32>
      %c0_77 = arith.constant 0 : index
      %c0_78 = arith.constant 0 : index
      %c0_79 = arith.constant 0 : index
      %115 = vector.load %arg16[%c0_77, %c0_78, %c0_79] : memref<2x8x1xf32, #tpu.memory_space<vmem>>, vector<2x8x1xf32>
      tpu.vector_store %arg16[%c0_77, %c0_78, %c0_79], %114 {strides = array<i32>} : memref<2x8x1xf32, #tpu.memory_space<vmem>>, vector<2x8x1xf32>,
      %cst_80 = arith.constant 0.000000e+00 : f32
      %116 = vector.broadcast %cst_80 : f32 to vector<2x8x1xf32>
      %c0_81 = arith.constant 0 : index
      %c0_82 = arith.constant 0 : index
      %c0_83 = arith.constant 0 : index
      %117 = vector.load %arg17[%c0_81, %c0_82, %c0_83] : memref<2x8x1xf32, #tpu.memory_space<vmem>>, vector<2x8x1xf32>
      tpu.vector_store %arg17[%c0_81, %c0_82, %c0_83], %116 {strides = array<i32>} : memref<2x8x1xf32, #tpu.memory_space<vmem>>, vector<2x8x1xf32>,
      %cst_84 = arith.constant 0.000000e+00 : f32
      %118 = vector.broadcast %cst_84 : f32 to vector<2x8x32xf32>
      %c0_85 = arith.constant 0 : index
      %c0_86 = arith.constant 0 : index
      %c0_87 = arith.constant 0 : index
      %119 = vector.load %arg18[%c0_85, %c0_86, %c0_87] : memref<2x8x32xf32, #tpu.memory_space<vmem>>, vector<2x8x32xf32>
      tpu.vector_store %arg18[%c0_85, %c0_86, %c0_87], %118 {strides = array<i32>} : memref<2x8x32xf32, #tpu.memory_space<vmem>>, vector<2x8x32xf32>,
    } else {
    }
    %c0 = arith.constant 0 : index
    %c0_1 = arith.constant 0 : index
    %c0_2 = arith.constant 0 : index
    %3 = vector.load %arg5[%c0, %c0_1, %c0_2] : memref<2x8x128xf32, #tpu.memory_space<vmem>>, vector<1x8x128xf32>
    %4 = vector.shape_cast %3 : vector<1x8x128xf32> to vector<8x128xf32>
    %cst = arith.constant -5.000000e+29 : f32
    %5 = vector.broadcast %cst : f32 to vector<8x128xf32>
    %6 = arith.cmpf ogt, %4, %5 : vector<8x128xf32>
    %c0_3 = arith.constant 0 : index
    %c0_4 = arith.constant 0 : index
    %c0_5 = arith.constant 0 : index
    %7 = vector.load %arg4[%c0_3, %c0_4, %c0_5] : memref<2x8x1xf32, #tpu.memory_space<vmem>>, vector<1x8x1xf32>
    %8 = vector.shape_cast %7 : vector<1x8x1xf32> to vector<8x1xf32>
    %c0_6 = arith.constant 0 : index
    %c0_7 = arith.constant 0 : index
    %c0_8 = arith.constant 0 : index
    %9 = vector.load %arg3[%c0_6, %c0_7, %c0_8] : memref<2x1x128xf32, #tpu.memory_space<vmem>>, vector<1x1x128xf32>
    %10 = vector.shape_cast %9 : vector<1x1x128xf32> to vector<1x128xf32>
    %11 = vector.broadcast %8 : vector<8x1xf32> to vector<8x128xf32>
    %12 = vector.broadcast %10 : vector<1x128xf32> to vector<8x128xf32>
    %13 = arith.addf %11, %12 : vector<8x128xf32>
    %14 = arith.addf %13, %4 : vector<8x128xf32>
    %cst_9 = arith.constant 0.000000e+00 : f32
    %15 = vector.broadcast %cst_9 : f32 to vector<8x128xf32>
    %16 = arith.cmpf ogt, %14, %15 : vector<8x128xf32>
    %cst_10 = arith.constant 2.000000e-01 : f32
    %17 = vector.broadcast %cst_10 : f32 to vector<8x128xf32>
    %18 = arith.mulf %17, %14 : vector<8x128xf32>
    %19 = arith.select %16, %14, %18 : vector<8x128xi1>, vector<8x128xf32>
    %cst_11 = arith.constant -1.000000e+30 : f32
    %20 = vector.broadcast %cst_11 : f32 to vector<8x128xf32>
    %21 = arith.select %6, %19, %20 : vector<8x128xi1>, vector<8x128xf32>
    %c0_12 = arith.constant 0 : index
    %c0_13 = arith.constant 0 : index
    %c0_14 = arith.constant 0 : index
    %22 = vector.load %arg16[%c0_12, %c0_13, %c0_14] : memref<2x8x1xf32, #tpu.memory_space<vmem>>, vector<1x8x1xf32>
    %23 = vector.shape_cast %22 : vector<1x8x1xf32> to vector<8x1xf32>
    %cst_15 = arith.constant dense<0xFF800000> : vector<8xf32>
    %24 = vector.multi_reduction <maximumf>, %21, %cst_15 [1] : vector<8x128xf32> to vector<8xf32>
    %25 = vector.shape_cast %24 : vector<8xf32> to vector<8x1xf32>
    %26 = arith.maximumf %23, %25 : vector<8x1xf32>
    %27 = arith.subf %23, %26 : vector<8x1xf32>
    %28 = math.exp %27 : vector<8x1xf32>
    %29 = vector.broadcast %26 : vector<8x1xf32> to vector<8x128xf32>
    %30 = arith.subf %21, %29 : vector<8x128xf32>
    %31 = math.exp %30 : vector<8x128xf32>
    %cst_16 = arith.constant 0.000000e+00 : f32
    %32 = vector.broadcast %cst_16 : f32 to vector<8x128xf32>
    %33 = arith.select %6, %31, %32 : vector<8x128xi1>, vector<8x128xf32>
    %c0_17 = arith.constant 0 : index
    %c0_18 = arith.constant 0 : index
    %c0_19 = arith.constant 0 : index
    %34 = vector.load %arg17[%c0_17, %c0_18, %c0_19] : memref<2x8x1xf32, #tpu.memory_space<vmem>>, vector<1x8x1xf32>
    %35 = vector.shape_cast %34 : vector<1x8x1xf32> to vector<8x1xf32>
    %36 = arith.mulf %28, %35 : vector<8x1xf32>
    %cst_20 = arith.constant dense<0.000000e+00> : vector<8xf32>
    %37 = vector.multi_reduction <add>, %33, %cst_20 [1] : vector<8x128xf32> to vector<8xf32>
    %38 = vector.shape_cast %37 : vector<8xf32> to vector<8x1xf32>
    %39 = arith.addf %36, %38 : vector<8x1xf32>
    %c0_21 = arith.constant 0 : index
    %c0_22 = arith.constant 0 : index
    %c0_23 = arith.constant 0 : index
    %40 = vector.load %arg17[%c0_21, %c0_22, %c0_23] : memref<2x8x1xf32, #tpu.memory_space<vmem>>, vector<1x8x1xf32>
    %41 = vector.shape_cast %40 : vector<1x8x1xf32> to vector<8x1xf32>
    %42 = vector.shape_cast %39 : vector<8x1xf32> to vector<1x8x1xf32>
    tpu.vector_store %arg17[%c0_21, %c0_22, %c0_23], %42 {strides = array<i32>} : memref<2x8x1xf32, #tpu.memory_space<vmem>>, vector<1x8x1xf32>,
    %c0_24 = arith.constant 0 : index
    %c0_25 = arith.constant 0 : index
    %c0_26 = arith.constant 0 : index
    %43 = vector.load %arg18[%c0_24, %c0_25, %c0_26] : memref<2x8x32xf32, #tpu.memory_space<vmem>>, vector<1x8x32xf32>
    %44 = vector.shape_cast %43 : vector<1x8x32xf32> to vector<8x32xf32>
    %45 = vector.broadcast %28 : vector<8x1xf32> to vector<8x32xf32>
    %46 = arith.mulf %45, %44 : vector<8x32xf32>
    %c0_27 = arith.constant 0 : index
    %c0_28 = arith.constant 0 : index
    %c0_29 = arith.constant 0 : index
    %47 = vector.load %arg2[%c0_27, %c0_28, %c0_29] : memref<2x128x32xf32, #tpu.memory_space<vmem>>, vector<1x128x32xf32>
    %48 = vector.shape_cast %47 : vector<1x128x32xf32> to vector<128x32xf32>
    %cst_30 = arith.constant dense<0.000000e+00> : vector<8x32xf32>
    %49 = tpu.matmul %33, %48, %cst_30 {dimension_numbers = #tpu.dot_dimension_numbers<[1], [0], [0], [1], [0, 0, 1, 1], [], []>} : vector<8x128xf32>, vector<128x32xf32>, vector<8x32xf32> -> vector<8x32xf32>
    %50 = arith.addf %46, %49 : vector<8x32xf32>
    %c0_31 = arith.constant 0 : index
    %c0_32 = arith.constant 0 : index
    %c0_33 = arith.constant 0 : index
    %51 = vector.load %arg18[%c0_31, %c0_32, %c0_33] : memref<2x8x32xf32, #tpu.memory_space<vmem>>, vector<1x8x32xf32>
    %52 = vector.shape_cast %51 : vector<1x8x32xf32> to vector<8x32xf32>
    %53 = vector.shape_cast %50 : vector<8x32xf32> to vector<1x8x32xf32>
    tpu.vector_store %arg18[%c0_31, %c0_32, %c0_33], %53 {strides = array<i32>} : memref<2x8x32xf32, #tpu.memory_space<vmem>>, vector<1x8x32xf32>,
    %c0_34 = arith.constant 0 : index
    %c0_35 = arith.constant 0 : index
    %c0_36 = arith.constant 0 : index
    %54 = vector.load %arg16[%c0_34, %c0_35, %c0_36] : memref<2x8x1xf32, #tpu.memory_space<vmem>>, vector<1x8x1xf32>
    %55 = vector.shape_cast %54 : vector<1x8x1xf32> to vector<8x1xf32>
    %56 = vector.shape_cast %26 : vector<8x1xf32> to vector<1x8x1xf32>
    tpu.vector_store %arg16[%c0_34, %c0_35, %c0_36], %56 {strides = array<i32>} : memref<2x8x1xf32, #tpu.memory_space<vmem>>, vector<1x8x1xf32>,
    %c1 = arith.constant 1 : index
    %c0_37 = arith.constant 0 : index
    %c0_38 = arith.constant 0 : index
    %57 = vector.load %arg5[%c1, %c0_37, %c0_38] : memref<2x8x128xf32, #tpu.memory_space<vmem>>, vector<1x8x128xf32>
    %58 = vector.shape_cast %57 : vector<1x8x128xf32> to vector<8x128xf32>
    %cst_39 = arith.constant -5.000000e+29 : f32
    %59 = vector.broadcast %cst_39 : f32 to vector<8x128xf32>
    %60 = arith.cmpf ogt, %58, %59 : vector<8x128xf32>
    %c1_40 = arith.constant 1 : index
    %c0_41 = arith.constant 0 : index
    %c0_42 = arith.constant 0 : index
    %61 = vector.load %arg4[%c1_40, %c0_41, %c0_42] : memref<2x8x1xf32, #tpu.memory_space<vmem>>, vector<1x8x1xf32>
    %62 = vector.shape_cast %61 : vector<1x8x1xf32> to vector<8x1xf32>
    %c1_43 = arith.constant 1 : index
    %c0_44 = arith.constant 0 : index
    %c0_45 = arith.constant 0 : index
    %63 = vector.load %arg3[%c1_43, %c0_44, %c0_45] : memref<2x1x128xf32, #tpu.memory_space<vmem>>, vector<1x1x128xf32>
    %64 = vector.shape_cast %63 : vector<1x1x128xf32> to vector<1x128xf32>
    %65 = vector.broadcast %62 : vector<8x1xf32> to vector<8x128xf32>
    %66 = vector.broadcast %64 : vector<1x128xf32> to vector<8x128xf32>
    %67 = arith.addf %65, %66 : vector<8x128xf32>
    %68 = arith.addf %67, %58 : vector<8x128xf32>
    %cst_46 = arith.constant 0.000000e+00 : f32
    %69 = vector.broadcast %cst_46 : f32 to vector<8x128xf32>
    %70 = arith.cmpf ogt, %68, %69 : vector<8x128xf32>
    %cst_47 = arith.constant 2.000000e-01 : f32
    %71 = vector.broadcast %cst_47 : f32 to vector<8x128xf32>
    %72 = arith.mulf %71, %68 : vector<8x128xf32>
    %73 = arith.select %70, %68, %72 : vector<8x128xi1>, vector<8x128xf32>
    %cst_48 = arith.constant -1.000000e+30 : f32
    %74 = vector.broadcast %cst_48 : f32 to vector<8x128xf32>
    %75 = arith.select %60, %73, %74 : vector<8x128xi1>, vector<8x128xf32>
    %c1_49 = arith.constant 1 : index
    %c0_50 = arith.constant 0 : index
    %c0_51 = arith.constant 0 : index
    %76 = vector.load %arg16[%c1_49, %c0_50, %c0_51] : memref<2x8x1xf32, #tpu.memory_space<vmem>>, vector<1x8x1xf32>
    %77 = vector.shape_cast %76 : vector<1x8x1xf32> to vector<8x1xf32>
    %cst_52 = arith.constant dense<0xFF800000> : vector<8xf32>
    %78 = vector.multi_reduction <maximumf>, %75, %cst_52 [1] : vector<8x128xf32> to vector<8xf32>
    %79 = vector.shape_cast %78 : vector<8xf32> to vector<8x1xf32>
    %80 = arith.maximumf %77, %79 : vector<8x1xf32>
    %81 = arith.subf %77, %80 : vector<8x1xf32>
    %82 = math.exp %81 : vector<8x1xf32>
    %83 = vector.broadcast %80 : vector<8x1xf32> to vector<8x128xf32>
    %84 = arith.subf %75, %83 : vector<8x128xf32>
    %85 = math.exp %84 : vector<8x128xf32>
    %cst_53 = arith.constant 0.000000e+00 : f32
    %86 = vector.broadcast %cst_53 : f32 to vector<8x128xf32>
    %87 = arith.select %60, %85, %86 : vector<8x128xi1>, vector<8x128xf32>
    %c1_54 = arith.constant 1 : index
    %c0_55 = arith.constant 0 : index
    %c0_56 = arith.constant 0 : index
    %88 = vector.load %arg17[%c1_54, %c0_55, %c0_56] : memref<2x8x1xf32, #tpu.memory_space<vmem>>, vector<1x8x1xf32>
    %89 = vector.shape_cast %88 : vector<1x8x1xf32> to vector<8x1xf32>
    %90 = arith.mulf %82, %89 : vector<8x1xf32>
    %cst_57 = arith.constant dense<0.000000e+00> : vector<8xf32>
    %91 = vector.multi_reduction <add>, %87, %cst_57 [1] : vector<8x128xf32> to vector<8xf32>
    %92 = vector.shape_cast %91 : vector<8xf32> to vector<8x1xf32>
    %93 = arith.addf %90, %92 : vector<8x1xf32>
    %c1_58 = arith.constant 1 : index
    %c0_59 = arith.constant 0 : index
    %c0_60 = arith.constant 0 : index
    %94 = vector.load %arg17[%c1_58, %c0_59, %c0_60] : memref<2x8x1xf32, #tpu.memory_space<vmem>>, vector<1x8x1xf32>
    %95 = vector.shape_cast %94 : vector<1x8x1xf32> to vector<8x1xf32>
    %96 = vector.shape_cast %93 : vector<8x1xf32> to vector<1x8x1xf32>
    tpu.vector_store %arg17[%c1_58, %c0_59, %c0_60], %96 {strides = array<i32>} : memref<2x8x1xf32, #tpu.memory_space<vmem>>, vector<1x8x1xf32>,
    %c1_61 = arith.constant 1 : index
    %c0_62 = arith.constant 0 : index
    %c0_63 = arith.constant 0 : index
    %97 = vector.load %arg18[%c1_61, %c0_62, %c0_63] : memref<2x8x32xf32, #tpu.memory_space<vmem>>, vector<1x8x32xf32>
    %98 = vector.shape_cast %97 : vector<1x8x32xf32> to vector<8x32xf32>
    %99 = vector.broadcast %82 : vector<8x1xf32> to vector<8x32xf32>
    %100 = arith.mulf %99, %98 : vector<8x32xf32>
    %c1_64 = arith.constant 1 : index
    %c0_65 = arith.constant 0 : index
    %c0_66 = arith.constant 0 : index
    %101 = vector.load %arg2[%c1_64, %c0_65, %c0_66] : memref<2x128x32xf32, #tpu.memory_space<vmem>>, vector<1x128x32xf32>
    %102 = vector.shape_cast %101 : vector<1x128x32xf32> to vector<128x32xf32>
    %cst_67 = arith.constant dense<0.000000e+00> : vector<8x32xf32>
    %103 = tpu.matmul %87, %102, %cst_67 {dimension_numbers = #tpu.dot_dimension_numbers<[1], [0], [0], [1], [0, 0, 1, 1], [], []>} : vector<8x128xf32>, vector<128x32xf32>, vector<8x32xf32> -> vector<8x32xf32>
    %104 = arith.addf %100, %103 : vector<8x32xf32>
    %c1_68 = arith.constant 1 : index
    %c0_69 = arith.constant 0 : index
    %c0_70 = arith.constant 0 : index
    %105 = vector.load %arg18[%c1_68, %c0_69, %c0_70] : memref<2x8x32xf32, #tpu.memory_space<vmem>>, vector<1x8x32xf32>
    %106 = vector.shape_cast %105 : vector<1x8x32xf32> to vector<8x32xf32>
    %107 = vector.shape_cast %104 : vector<8x32xf32> to vector<1x8x32xf32>
    tpu.vector_store %arg18[%c1_68, %c0_69, %c0_70], %107 {strides = array<i32>} : memref<2x8x32xf32, #tpu.memory_space<vmem>>, vector<1x8x32xf32>,
    %c1_71 = arith.constant 1 : index
    %c0_72 = arith.constant 0 : index
    %c0_73 = arith.constant 0 : index
    %108 = vector.load %arg16[%c1_71, %c0_72, %c0_73] : memref<2x8x1xf32, #tpu.memory_space<vmem>>, vector<1x8x1xf32>
    %109 = vector.shape_cast %108 : vector<1x8x1xf32> to vector<8x1xf32>
    %110 = vector.shape_cast %80 : vector<8x1xf32> to vector<1x8x1xf32>
    tpu.vector_store %arg16[%c1_71, %c0_72, %c0_73], %110 {strides = array<i32>} : memref<2x8x1xf32, #tpu.memory_space<vmem>>, vector<1x8x1xf32>,
    %c0_i32_74 = arith.constant 0 : i32
    %111 = arith.cmpi eq, %arg1, %c0_i32_74 : i32
    %112 = arith.extui %111 : i1 to i32
    %c0_i32_75 = arith.constant 0 : i32
    %113 = arith.cmpi ne, %112, %c0_i32_75 : i32
    scf.if %113 {
      %c0_76 = arith.constant 0 : index
      %c0_77 = arith.constant 0 : index
      %114 = vector.load %arg7[%c0_76, %c0_77] : memref<1x64xf32, #tpu.memory_space<vmem>>, vector<1x64xf32>
      %c0_78 = arith.constant 0 : index
      %c0_79 = arith.constant 0 : index
      %115 = vector.load %arg8[%c0_78, %c0_79] : memref<64x32xf32, #tpu.memory_space<vmem>>, vector<64x32xf32>
      %c0_80 = arith.constant 0 : index
      %c0_81 = arith.constant 0 : index
      %116 = vector.load %arg9[%c0_80, %c0_81] : memref<1x32xf32, #tpu.memory_space<vmem>>, vector<1x32xf32>
      %c0_82 = arith.constant 0 : index
      %c0_83 = arith.constant 0 : index
      %c0_84 = arith.constant 0 : index
      %117 = vector.load %arg17[%c0_82, %c0_83, %c0_84] : memref<2x8x1xf32, #tpu.memory_space<vmem>>, vector<1x8x1xf32>
      %118 = vector.shape_cast %117 : vector<1x8x1xf32> to vector<8x1xf32>
      %cst_85 = arith.constant 0.000000e+00 : f32
      %119 = vector.broadcast %cst_85 : f32 to vector<8x1xf32>
      %120 = arith.cmpf ogt, %118, %119 : vector<8x1xf32>
      %cst_86 = arith.constant 1.000000e+00 : f32
      %121 = vector.broadcast %cst_86 : f32 to vector<8x1xf32>
      %122 = arith.divf %121, %118 : vector<8x1xf32>
      %cst_87 = arith.constant 0.000000e+00 : f32
      %123 = vector.broadcast %cst_87 : f32 to vector<8x1xf32>
      %124 = arith.select %120, %122, %123 : vector<8x1xi1>, vector<8x1xf32>
      %c0_88 = arith.constant 0 : index
      %c0_89 = arith.constant 0 : index
      %c0_90 = arith.constant 0 : index
      %125 = vector.load %arg18[%c0_88, %c0_89, %c0_90] : memref<2x8x32xf32, #tpu.memory_space<vmem>>, vector<1x8x32xf32>
      %126 = vector.shape_cast %125 : vector<1x8x32xf32> to vector<8x32xf32>
      %127 = vector.broadcast %124 : vector<8x1xf32> to vector<8x32xf32>
      %128 = arith.mulf %126, %127 : vector<8x32xf32>
      %129 = vector.extract_strided_slice %114 {offsets = [0, 0], sizes = [1, 32], strides = [1, 1]} : vector<1x64xf32> to vector<1x32xf32>
      %130 = vector.broadcast %129 : vector<1x32xf32> to vector<8x32xf32>
      %131 = arith.addf %128, %130 : vector<8x32xf32>
      %cst_91 = arith.constant 0.000000e+00 : f32
      %132 = vector.broadcast %cst_91 : f32 to vector<8x32xf32>
      %133 = arith.maximumf %131, %132 : vector<8x32xf32>
      %134 = vector.extract_strided_slice %115 {offsets = [0, 0], sizes = [32, 32], strides = [1, 1]} : vector<64x32xf32> to vector<32x32xf32>
      %cst_92 = arith.constant dense<0.000000e+00> : vector<8x32xf32>
      %135 = tpu.matmul %133, %134, %cst_92 {dimension_numbers = #tpu.dot_dimension_numbers<[1], [0], [0], [1], [0, 0, 1, 1], [], []>} : vector<8x32xf32>, vector<32x32xf32>, vector<8x32xf32> -> vector<8x32xf32>
      %136 = vector.broadcast %116 : vector<1x32xf32> to vector<8x32xf32>
      %137 = arith.addf %136, %135 : vector<8x32xf32>
      %c1_93 = arith.constant 1 : index
      %c0_94 = arith.constant 0 : index
      %c0_95 = arith.constant 0 : index
      %138 = vector.load %arg17[%c1_93, %c0_94, %c0_95] : memref<2x8x1xf32, #tpu.memory_space<vmem>>, vector<1x8x1xf32>
      %139 = vector.shape_cast %138 : vector<1x8x1xf32> to vector<8x1xf32>
      %cst_96 = arith.constant 0.000000e+00 : f32
      %140 = vector.broadcast %cst_96 : f32 to vector<8x1xf32>
      %141 = arith.cmpf ogt, %139, %140 : vector<8x1xf32>
      %cst_97 = arith.constant 1.000000e+00 : f32
      %142 = vector.broadcast %cst_97 : f32 to vector<8x1xf32>
      %143 = arith.divf %142, %139 : vector<8x1xf32>
      %cst_98 = arith.constant 0.000000e+00 : f32
      %144 = vector.broadcast %cst_98 : f32 to vector<8x1xf32>
      %145 = arith.select %141, %143, %144 : vector<8x1xi1>, vector<8x1xf32>
      %c1_99 = arith.constant 1 : index
      %c0_100 = arith.constant 0 : index
      %c0_101 = arith.constant 0 : index
      %146 = vector.load %arg18[%c1_99, %c0_100, %c0_101] : memref<2x8x32xf32, #tpu.memory_space<vmem>>, vector<1x8x32xf32>
      %147 = vector.shape_cast %146 : vector<1x8x32xf32> to vector<8x32xf32>
      %148 = vector.broadcast %145 : vector<8x1xf32> to vector<8x32xf32>
      %149 = arith.mulf %147, %148 : vector<8x32xf32>
      %150 = vector.extract_strided_slice %114 {offsets = [0, 32], sizes = [1, 32], strides = [1, 1]} : vector<1x64xf32> to vector<1x32xf32>
      %151 = vector.broadcast %150 : vector<1x32xf32> to vector<8x32xf32>
      %152 = arith.addf %149, %151 : vector<8x32xf32>
      %cst_102 = arith.constant 0.000000e+00 : f32
      %153 = vector.broadcast %cst_102 : f32 to vector<8x32xf32>
      %154 = arith.maximumf %152, %153 : vector<8x32xf32>
      %155 = vector.extract_strided_slice %115 {offsets = [32, 0], sizes = [32, 32], strides = [1, 1]} : vector<64x32xf32> to vector<32x32xf32>
      %cst_103 = arith.constant dense<0.000000e+00> : vector<8x32xf32>
      %156 = tpu.matmul %154, %155, %cst_103 {dimension_numbers = #tpu.dot_dimension_numbers<[1], [0], [0], [1], [0, 0, 1, 1], [], []>} : vector<8x32xf32>, vector<32x32xf32>, vector<8x32xf32> -> vector<8x32xf32>
      %157 = arith.addf %137, %156 : vector<8x32xf32>
      %cst_104 = arith.constant 0.000000e+00 : f32
      %158 = vector.broadcast %cst_104 : f32 to vector<8x32xf32>
      %159 = arith.maximumf %157, %158 : vector<8x32xf32>
      %c0_105 = arith.constant 0 : index
      %c0_106 = arith.constant 0 : index
      %160 = vector.load %arg10[%c0_105, %c0_106] : memref<32x32xf32, #tpu.memory_space<vmem>>, vector<32x32xf32>
      %cst_107 = arith.constant dense<0.000000e+00> : vector<8x32xf32>
      %161 = tpu.matmul %159, %160, %cst_107 {dimension_numbers = #tpu.dot_dimension_numbers<[1], [0], [0], [1], [0, 0, 1, 1], [], []>} : vector<8x32xf32>, vector<32x32xf32>, vector<8x32xf32> -> vector<8x32xf32>
      %c0_108 = arith.constant 0 : index
      %c0_109 = arith.constant 0 : index
      %162 = vector.load %arg11[%c0_108, %c0_109] : memref<1x32xf32, #tpu.memory_space<vmem>>, vector<1x32xf32>
      %163 = vector.broadcast %162 : vector<1x32xf32> to vector<8x32xf32>
      %164 = arith.addf %161, %163 : vector<8x32xf32>
      %c0_110 = arith.constant 0 : index
      %c0_111 = arith.constant 0 : index
      %165 = vector.load %arg6[%c0_110, %c0_111] : memref<8x32xf32, #tpu.memory_space<vmem>>, vector<8x32xf32>
      %c0_112 = arith.constant 0 : index
      %c0_113 = arith.constant 0 : index
      %166 = vector.load %arg12[%c0_112, %c0_113] : memref<32x32xf32, #tpu.memory_space<vmem>>, vector<32x32xf32>
      %cst_114 = arith.constant dense<0.000000e+00> : vector<8x32xf32>
      %167 = tpu.matmul %165, %166, %cst_114 {dimension_numbers = #tpu.dot_dimension_numbers<[1], [0], [0], [1], [0, 0, 1, 1], [], []>} : vector<8x32xf32>, vector<32x32xf32>, vector<8x32xf32> -> vector<8x32xf32>
      %c0_115 = arith.constant 0 : index
      %c0_116 = arith.constant 0 : index
      %168 = vector.load %arg13[%c0_115, %c0_116] : memref<32x32xf32, #tpu.memory_space<vmem>>, vector<32x32xf32>
      %cst_117 = arith.constant dense<0.000000e+00> : vector<8x32xf32>
      %169 = tpu.matmul %164, %168, %cst_117 {dimension_numbers = #tpu.dot_dimension_numbers<[1], [0], [0], [1], [0, 0, 1, 1], [], []>} : vector<8x32xf32>, vector<32x32xf32>, vector<8x32xf32> -> vector<8x32xf32>
      %170 = arith.addf %167, %169 : vector<8x32xf32>
      %c0_118 = arith.constant 0 : index
      %c0_119 = arith.constant 0 : index
      %171 = vector.load %arg14[%c0_118, %c0_119] : memref<1x32xf32, #tpu.memory_space<vmem>>, vector<1x32xf32>
      %172 = vector.broadcast %171 : vector<1x32xf32> to vector<8x32xf32>
      %173 = arith.addf %170, %172 : vector<8x32xf32>
      %cst_120 = arith.constant 0.000000e+00 : f32
      %174 = vector.broadcast %cst_120 : f32 to vector<8x32xf32>
      %175 = arith.maximumf %173, %174 : vector<8x32xf32>
      %c0_121 = arith.constant 0 : index
      %c0_122 = arith.constant 0 : index
      %176 = vector.load %arg15[%c0_121, %c0_122] : memref<8x32xf32, #tpu.memory_space<vmem>>, vector<8x32xf32>
      tpu.vector_store %arg15[%c0_121, %c0_122], %175 {strides = array<i32>} : memref<8x32xf32, #tpu.memory_space<vmem>>, vector<8x32xf32>,
    } else {
    }
    return
  }
  func.func @transform_0(%arg0: i32, %arg1: i32) -> (i32, i32, i32) {
    %c0_i32 = arith.constant 0 : i32
    %c0_i32_0 = arith.constant 0 : i32
    %c0_i32_1 = arith.constant 0 : i32
    return %c0_i32, %arg1, %c0_i32_0 : i32, i32, i32
  }
  func.func @transform_1(%arg0: i32, %arg1: i32) -> (i32, i32, i32) {
    %c0_i32 = arith.constant 0 : i32
    %c0_i32_0 = arith.constant 0 : i32
    %c0_i32_1 = arith.constant 0 : i32
    return %c0_i32, %c0_i32_0, %arg1 : i32, i32, i32
  }
  func.func @transform_2(%arg0: i32, %arg1: i32) -> (i32, i32, i32) {
    %c0_i32 = arith.constant 0 : i32
    %c0_i32_0 = arith.constant 0 : i32
    %c0_i32_1 = arith.constant 0 : i32
    return %c0_i32, %arg0, %c0_i32_0 : i32, i32, i32
  }
  func.func @transform_3(%arg0: i32, %arg1: i32) -> (i32, i32, i32) {
    %c0_i32 = arith.constant 0 : i32
    %c0_i32_0 = arith.constant 0 : i32
    return %c0_i32, %arg0, %arg1 : i32, i32, i32
  }
  func.func @transform_4(%arg0: i32, %arg1: i32) -> (i32, i32) {
    %c0_i32 = arith.constant 0 : i32
    %c0_i32_0 = arith.constant 0 : i32
    return %arg0, %c0_i32 : i32, i32
  }
  func.func @transform_5(%arg0: i32, %arg1: i32) -> (i32, i32) {
    %c0_i32 = arith.constant 0 : i32
    %c0_i32_0 = arith.constant 0 : i32
    %c0_i32_1 = arith.constant 0 : i32
    return %c0_i32, %c0_i32_0 : i32, i32
  }
  func.func @transform_6(%arg0: i32, %arg1: i32) -> (i32, i32) {
    %c0_i32 = arith.constant 0 : i32
    %c0_i32_0 = arith.constant 0 : i32
    %c0_i32_1 = arith.constant 0 : i32
    return %c0_i32, %c0_i32_0 : i32, i32
  }
  func.func @transform_7(%arg0: i32, %arg1: i32) -> (i32, i32) {
    %c0_i32 = arith.constant 0 : i32
    %c0_i32_0 = arith.constant 0 : i32
    %c0_i32_1 = arith.constant 0 : i32
    return %c0_i32, %c0_i32_0 : i32, i32
  }
  func.func @transform_8(%arg0: i32, %arg1: i32) -> (i32, i32) {
    %c0_i32 = arith.constant 0 : i32
    %c0_i32_0 = arith.constant 0 : i32
    %c0_i32_1 = arith.constant 0 : i32
    return %c0_i32, %c0_i32_0 : i32, i32
  }
  func.func @transform_9(%arg0: i32, %arg1: i32) -> (i32, i32) {
    %c0_i32 = arith.constant 0 : i32
    %c0_i32_0 = arith.constant 0 : i32
    %c0_i32_1 = arith.constant 0 : i32
    return %c0_i32, %c0_i32_0 : i32, i32
  }
  func.func @transform_10(%arg0: i32, %arg1: i32) -> (i32, i32) {
    %c0_i32 = arith.constant 0 : i32
    %c0_i32_0 = arith.constant 0 : i32
    %c0_i32_1 = arith.constant 0 : i32
    return %c0_i32, %c0_i32_0 : i32, i32
  }
  func.func @transform_11(%arg0: i32, %arg1: i32) -> (i32, i32) {
    %c0_i32 = arith.constant 0 : i32
    %c0_i32_0 = arith.constant 0 : i32
    %c0_i32_1 = arith.constant 0 : i32
    return %c0_i32, %c0_i32_0 : i32, i32
  }
  func.func @transform_12(%arg0: i32, %arg1: i32) -> (i32, i32) {
    %c0_i32 = arith.constant 0 : i32
    %c0_i32_0 = arith.constant 0 : i32
    %c0_i32_1 = arith.constant 0 : i32
    return %c0_i32, %c0_i32_0 : i32, i32
  }
  func.func @transform_13(%arg0: i32, %arg1: i32) -> (i32, i32) {
    %c0_i32 = arith.constant 0 : i32
    %c0_i32_0 = arith.constant 0 : i32
    return %arg0, %c0_i32 : i32, i32
  }
}

module attributes {stable_mosaic.version = 11 : i64} {
  func.func @_gat_fused_kernel(%arg0: i32, %arg1: i32, %arg2: memref<2x128x32xf32, #tpu.memory_space<vmem>>, %arg3: memref<2x1x128xf32, #tpu.memory_space<vmem>>, %arg4: memref<2x16x1xf32, #tpu.memory_space<vmem>>, %arg5: memref<2x16x128xf32, #tpu.memory_space<vmem>>, %arg6: memref<16x32xf32, #tpu.memory_space<vmem>>, %arg7: memref<1x64xf32, #tpu.memory_space<vmem>>, %arg8: memref<64x32xf32, #tpu.memory_space<vmem>>, %arg9: memref<1x32xf32, #tpu.memory_space<vmem>>, %arg10: memref<32x32xf32, #tpu.memory_space<vmem>>, %arg11: memref<1x32xf32, #tpu.memory_space<vmem>>, %arg12: memref<32x32xf32, #tpu.memory_space<vmem>>, %arg13: memref<32x32xf32, #tpu.memory_space<vmem>>, %arg14: memref<1x32xf32, #tpu.memory_space<vmem>>, %arg15: memref<16x32xf32, #tpu.memory_space<vmem>>, %arg16: memref<2x16x1xf32, #tpu.memory_space<vmem>>, %arg17: memref<2x16x1xf32, #tpu.memory_space<vmem>>, %arg18: memref<2x16x32xf32, #tpu.memory_space<vmem>>) attributes {dimension_semantics = [#tpu.dimension_semantics<parallel>, #tpu.dimension_semantics<arbitrary>], iteration_bounds = array<i64: 1, 1>, scalar_prefetch = 0 : i64, scratch_operands = 3 : i64, tpu.core_type = #tpu.core_type<tc>, window_params = [{transform_indices = @transform_0, window_bounds = array<i64: 2, 128, 32>}, {transform_indices = @transform_1, window_bounds = array<i64: 2, 1, 128>}, {transform_indices = @transform_2, window_bounds = array<i64: 2, 16, 1>}, {transform_indices = @transform_3, window_bounds = array<i64: 2, 16, 128>}, {transform_indices = @transform_4, window_bounds = array<i64: 16, 32>}, {pipeline_mode = #tpu.pipeline_mode<synchronous>, transform_indices = @transform_5, window_bounds = array<i64: 1, 64>}, {pipeline_mode = #tpu.pipeline_mode<synchronous>, transform_indices = @transform_6, window_bounds = array<i64: 64, 32>}, {pipeline_mode = #tpu.pipeline_mode<synchronous>, transform_indices = @transform_7, window_bounds = array<i64: 1, 32>}, {pipeline_mode = #tpu.pipeline_mode<synchronous>, transform_indices = @transform_8, window_bounds = array<i64: 32, 32>}, {pipeline_mode = #tpu.pipeline_mode<synchronous>, transform_indices = @transform_9, window_bounds = array<i64: 1, 32>}, {pipeline_mode = #tpu.pipeline_mode<synchronous>, transform_indices = @transform_10, window_bounds = array<i64: 32, 32>}, {pipeline_mode = #tpu.pipeline_mode<synchronous>, transform_indices = @transform_11, window_bounds = array<i64: 32, 32>}, {pipeline_mode = #tpu.pipeline_mode<synchronous>, transform_indices = @transform_12, window_bounds = array<i64: 1, 32>}, {transform_indices = @transform_13, window_bounds = array<i64: 16, 32>}]} {
    %c0_i32 = arith.constant 0 : i32
    %0 = arith.cmpi eq, %arg1, %c0_i32 : i32
    %1 = arith.extui %0 : i1 to i32
    %c0_i32_0 = arith.constant 0 : i32
    %2 = arith.cmpi ne, %1, %c0_i32_0 : i32
    scf.if %2 {
      %cst_76 = arith.constant -1.000000e+30 : f32
      %114 = vector.broadcast %cst_76 : f32 to vector<2x16x1xf32>
      %c0_77 = arith.constant 0 : index
      %c0_78 = arith.constant 0 : index
      %c0_79 = arith.constant 0 : index
      %115 = vector.load %arg16[%c0_77, %c0_78, %c0_79] : memref<2x16x1xf32, #tpu.memory_space<vmem>>, vector<2x16x1xf32>
      tpu.vector_store %arg16[%c0_77, %c0_78, %c0_79], %114 {strides = array<i32>} : memref<2x16x1xf32, #tpu.memory_space<vmem>>, vector<2x16x1xf32>,
      %cst_80 = arith.constant 0.000000e+00 : f32
      %116 = vector.broadcast %cst_80 : f32 to vector<2x16x1xf32>
      %c0_81 = arith.constant 0 : index
      %c0_82 = arith.constant 0 : index
      %c0_83 = arith.constant 0 : index
      %117 = vector.load %arg17[%c0_81, %c0_82, %c0_83] : memref<2x16x1xf32, #tpu.memory_space<vmem>>, vector<2x16x1xf32>
      tpu.vector_store %arg17[%c0_81, %c0_82, %c0_83], %116 {strides = array<i32>} : memref<2x16x1xf32, #tpu.memory_space<vmem>>, vector<2x16x1xf32>,
      %cst_84 = arith.constant 0.000000e+00 : f32
      %118 = vector.broadcast %cst_84 : f32 to vector<2x16x32xf32>
      %c0_85 = arith.constant 0 : index
      %c0_86 = arith.constant 0 : index
      %c0_87 = arith.constant 0 : index
      %119 = vector.load %arg18[%c0_85, %c0_86, %c0_87] : memref<2x16x32xf32, #tpu.memory_space<vmem>>, vector<2x16x32xf32>
      tpu.vector_store %arg18[%c0_85, %c0_86, %c0_87], %118 {strides = array<i32>} : memref<2x16x32xf32, #tpu.memory_space<vmem>>, vector<2x16x32xf32>,
    } else {
    }
    %c0 = arith.constant 0 : index
    %c0_1 = arith.constant 0 : index
    %c0_2 = arith.constant 0 : index
    %3 = vector.load %arg5[%c0, %c0_1, %c0_2] : memref<2x16x128xf32, #tpu.memory_space<vmem>>, vector<1x16x128xf32>
    %4 = vector.shape_cast %3 : vector<1x16x128xf32> to vector<16x128xf32>
    %cst = arith.constant -5.000000e+29 : f32
    %5 = vector.broadcast %cst : f32 to vector<16x128xf32>
    %6 = arith.cmpf ogt, %4, %5 : vector<16x128xf32>
    %c0_3 = arith.constant 0 : index
    %c0_4 = arith.constant 0 : index
    %c0_5 = arith.constant 0 : index
    %7 = vector.load %arg4[%c0_3, %c0_4, %c0_5] : memref<2x16x1xf32, #tpu.memory_space<vmem>>, vector<1x16x1xf32>
    %8 = vector.shape_cast %7 : vector<1x16x1xf32> to vector<16x1xf32>
    %c0_6 = arith.constant 0 : index
    %c0_7 = arith.constant 0 : index
    %c0_8 = arith.constant 0 : index
    %9 = vector.load %arg3[%c0_6, %c0_7, %c0_8] : memref<2x1x128xf32, #tpu.memory_space<vmem>>, vector<1x1x128xf32>
    %10 = vector.shape_cast %9 : vector<1x1x128xf32> to vector<1x128xf32>
    %11 = vector.broadcast %8 : vector<16x1xf32> to vector<16x128xf32>
    %12 = vector.broadcast %10 : vector<1x128xf32> to vector<16x128xf32>
    %13 = arith.addf %11, %12 : vector<16x128xf32>
    %14 = arith.addf %13, %4 : vector<16x128xf32>
    %cst_9 = arith.constant 0.000000e+00 : f32
    %15 = vector.broadcast %cst_9 : f32 to vector<16x128xf32>
    %16 = arith.cmpf ogt, %14, %15 : vector<16x128xf32>
    %cst_10 = arith.constant 2.000000e-01 : f32
    %17 = vector.broadcast %cst_10 : f32 to vector<16x128xf32>
    %18 = arith.mulf %17, %14 : vector<16x128xf32>
    %19 = arith.select %16, %14, %18 : vector<16x128xi1>, vector<16x128xf32>
    %cst_11 = arith.constant -1.000000e+30 : f32
    %20 = vector.broadcast %cst_11 : f32 to vector<16x128xf32>
    %21 = arith.select %6, %19, %20 : vector<16x128xi1>, vector<16x128xf32>
    %c0_12 = arith.constant 0 : index
    %c0_13 = arith.constant 0 : index
    %c0_14 = arith.constant 0 : index
    %22 = vector.load %arg16[%c0_12, %c0_13, %c0_14] : memref<2x16x1xf32, #tpu.memory_space<vmem>>, vector<1x16x1xf32>
    %23 = vector.shape_cast %22 : vector<1x16x1xf32> to vector<16x1xf32>
    %cst_15 = arith.constant dense<0xFF800000> : vector<16xf32>
    %24 = vector.multi_reduction <maximumf>, %21, %cst_15 [1] : vector<16x128xf32> to vector<16xf32>
    %25 = vector.shape_cast %24 : vector<16xf32> to vector<16x1xf32>
    %26 = arith.maximumf %23, %25 : vector<16x1xf32>
    %27 = arith.subf %23, %26 : vector<16x1xf32>
    %28 = math.exp %27 : vector<16x1xf32>
    %29 = vector.broadcast %26 : vector<16x1xf32> to vector<16x128xf32>
    %30 = arith.subf %21, %29 : vector<16x128xf32>
    %31 = math.exp %30 : vector<16x128xf32>
    %cst_16 = arith.constant 0.000000e+00 : f32
    %32 = vector.broadcast %cst_16 : f32 to vector<16x128xf32>
    %33 = arith.select %6, %31, %32 : vector<16x128xi1>, vector<16x128xf32>
    %c0_17 = arith.constant 0 : index
    %c0_18 = arith.constant 0 : index
    %c0_19 = arith.constant 0 : index
    %34 = vector.load %arg17[%c0_17, %c0_18, %c0_19] : memref<2x16x1xf32, #tpu.memory_space<vmem>>, vector<1x16x1xf32>
    %35 = vector.shape_cast %34 : vector<1x16x1xf32> to vector<16x1xf32>
    %36 = arith.mulf %28, %35 : vector<16x1xf32>
    %cst_20 = arith.constant dense<0.000000e+00> : vector<16xf32>
    %37 = vector.multi_reduction <add>, %33, %cst_20 [1] : vector<16x128xf32> to vector<16xf32>
    %38 = vector.shape_cast %37 : vector<16xf32> to vector<16x1xf32>
    %39 = arith.addf %36, %38 : vector<16x1xf32>
    %c0_21 = arith.constant 0 : index
    %c0_22 = arith.constant 0 : index
    %c0_23 = arith.constant 0 : index
    %40 = vector.load %arg17[%c0_21, %c0_22, %c0_23] : memref<2x16x1xf32, #tpu.memory_space<vmem>>, vector<1x16x1xf32>
    %41 = vector.shape_cast %40 : vector<1x16x1xf32> to vector<16x1xf32>
    %42 = vector.shape_cast %39 : vector<16x1xf32> to vector<1x16x1xf32>
    tpu.vector_store %arg17[%c0_21, %c0_22, %c0_23], %42 {strides = array<i32>} : memref<2x16x1xf32, #tpu.memory_space<vmem>>, vector<1x16x1xf32>,
    %c0_24 = arith.constant 0 : index
    %c0_25 = arith.constant 0 : index
    %c0_26 = arith.constant 0 : index
    %43 = vector.load %arg18[%c0_24, %c0_25, %c0_26] : memref<2x16x32xf32, #tpu.memory_space<vmem>>, vector<1x16x32xf32>
    %44 = vector.shape_cast %43 : vector<1x16x32xf32> to vector<16x32xf32>
    %45 = vector.broadcast %28 : vector<16x1xf32> to vector<16x32xf32>
    %46 = arith.mulf %45, %44 : vector<16x32xf32>
    %c0_27 = arith.constant 0 : index
    %c0_28 = arith.constant 0 : index
    %c0_29 = arith.constant 0 : index
    %47 = vector.load %arg2[%c0_27, %c0_28, %c0_29] : memref<2x128x32xf32, #tpu.memory_space<vmem>>, vector<1x128x32xf32>
    %48 = vector.shape_cast %47 : vector<1x128x32xf32> to vector<128x32xf32>
    %cst_30 = arith.constant dense<0.000000e+00> : vector<16x32xf32>
    %49 = tpu.matmul %33, %48, %cst_30 {dimension_numbers = #tpu.dot_dimension_numbers<[1], [0], [0], [1], [0, 0, 1, 1], [], []>} : vector<16x128xf32>, vector<128x32xf32>, vector<16x32xf32> -> vector<16x32xf32>
    %50 = arith.addf %46, %49 : vector<16x32xf32>
    %c0_31 = arith.constant 0 : index
    %c0_32 = arith.constant 0 : index
    %c0_33 = arith.constant 0 : index
    %51 = vector.load %arg18[%c0_31, %c0_32, %c0_33] : memref<2x16x32xf32, #tpu.memory_space<vmem>>, vector<1x16x32xf32>
    %52 = vector.shape_cast %51 : vector<1x16x32xf32> to vector<16x32xf32>
    %53 = vector.shape_cast %50 : vector<16x32xf32> to vector<1x16x32xf32>
    tpu.vector_store %arg18[%c0_31, %c0_32, %c0_33], %53 {strides = array<i32>} : memref<2x16x32xf32, #tpu.memory_space<vmem>>, vector<1x16x32xf32>,
    %c0_34 = arith.constant 0 : index
    %c0_35 = arith.constant 0 : index
    %c0_36 = arith.constant 0 : index
    %54 = vector.load %arg16[%c0_34, %c0_35, %c0_36] : memref<2x16x1xf32, #tpu.memory_space<vmem>>, vector<1x16x1xf32>
    %55 = vector.shape_cast %54 : vector<1x16x1xf32> to vector<16x1xf32>
    %56 = vector.shape_cast %26 : vector<16x1xf32> to vector<1x16x1xf32>
    tpu.vector_store %arg16[%c0_34, %c0_35, %c0_36], %56 {strides = array<i32>} : memref<2x16x1xf32, #tpu.memory_space<vmem>>, vector<1x16x1xf32>,
    %c1 = arith.constant 1 : index
    %c0_37 = arith.constant 0 : index
    %c0_38 = arith.constant 0 : index
    %57 = vector.load %arg5[%c1, %c0_37, %c0_38] : memref<2x16x128xf32, #tpu.memory_space<vmem>>, vector<1x16x128xf32>
    %58 = vector.shape_cast %57 : vector<1x16x128xf32> to vector<16x128xf32>
    %cst_39 = arith.constant -5.000000e+29 : f32
    %59 = vector.broadcast %cst_39 : f32 to vector<16x128xf32>
    %60 = arith.cmpf ogt, %58, %59 : vector<16x128xf32>
    %c1_40 = arith.constant 1 : index
    %c0_41 = arith.constant 0 : index
    %c0_42 = arith.constant 0 : index
    %61 = vector.load %arg4[%c1_40, %c0_41, %c0_42] : memref<2x16x1xf32, #tpu.memory_space<vmem>>, vector<1x16x1xf32>
    %62 = vector.shape_cast %61 : vector<1x16x1xf32> to vector<16x1xf32>
    %c1_43 = arith.constant 1 : index
    %c0_44 = arith.constant 0 : index
    %c0_45 = arith.constant 0 : index
    %63 = vector.load %arg3[%c1_43, %c0_44, %c0_45] : memref<2x1x128xf32, #tpu.memory_space<vmem>>, vector<1x1x128xf32>
    %64 = vector.shape_cast %63 : vector<1x1x128xf32> to vector<1x128xf32>
    %65 = vector.broadcast %62 : vector<16x1xf32> to vector<16x128xf32>
    %66 = vector.broadcast %64 : vector<1x128xf32> to vector<16x128xf32>
    %67 = arith.addf %65, %66 : vector<16x128xf32>
    %68 = arith.addf %67, %58 : vector<16x128xf32>
    %cst_46 = arith.constant 0.000000e+00 : f32
    %69 = vector.broadcast %cst_46 : f32 to vector<16x128xf32>
    %70 = arith.cmpf ogt, %68, %69 : vector<16x128xf32>
    %cst_47 = arith.constant 2.000000e-01 : f32
    %71 = vector.broadcast %cst_47 : f32 to vector<16x128xf32>
    %72 = arith.mulf %71, %68 : vector<16x128xf32>
    %73 = arith.select %70, %68, %72 : vector<16x128xi1>, vector<16x128xf32>
    %cst_48 = arith.constant -1.000000e+30 : f32
    %74 = vector.broadcast %cst_48 : f32 to vector<16x128xf32>
    %75 = arith.select %60, %73, %74 : vector<16x128xi1>, vector<16x128xf32>
    %c1_49 = arith.constant 1 : index
    %c0_50 = arith.constant 0 : index
    %c0_51 = arith.constant 0 : index
    %76 = vector.load %arg16[%c1_49, %c0_50, %c0_51] : memref<2x16x1xf32, #tpu.memory_space<vmem>>, vector<1x16x1xf32>
    %77 = vector.shape_cast %76 : vector<1x16x1xf32> to vector<16x1xf32>
    %cst_52 = arith.constant dense<0xFF800000> : vector<16xf32>
    %78 = vector.multi_reduction <maximumf>, %75, %cst_52 [1] : vector<16x128xf32> to vector<16xf32>
    %79 = vector.shape_cast %78 : vector<16xf32> to vector<16x1xf32>
    %80 = arith.maximumf %77, %79 : vector<16x1xf32>
    %81 = arith.subf %77, %80 : vector<16x1xf32>
    %82 = math.exp %81 : vector<16x1xf32>
    %83 = vector.broadcast %80 : vector<16x1xf32> to vector<16x128xf32>
    %84 = arith.subf %75, %83 : vector<16x128xf32>
    %85 = math.exp %84 : vector<16x128xf32>
    %cst_53 = arith.constant 0.000000e+00 : f32
    %86 = vector.broadcast %cst_53 : f32 to vector<16x128xf32>
    %87 = arith.select %60, %85, %86 : vector<16x128xi1>, vector<16x128xf32>
    %c1_54 = arith.constant 1 : index
    %c0_55 = arith.constant 0 : index
    %c0_56 = arith.constant 0 : index
    %88 = vector.load %arg17[%c1_54, %c0_55, %c0_56] : memref<2x16x1xf32, #tpu.memory_space<vmem>>, vector<1x16x1xf32>
    %89 = vector.shape_cast %88 : vector<1x16x1xf32> to vector<16x1xf32>
    %90 = arith.mulf %82, %89 : vector<16x1xf32>
    %cst_57 = arith.constant dense<0.000000e+00> : vector<16xf32>
    %91 = vector.multi_reduction <add>, %87, %cst_57 [1] : vector<16x128xf32> to vector<16xf32>
    %92 = vector.shape_cast %91 : vector<16xf32> to vector<16x1xf32>
    %93 = arith.addf %90, %92 : vector<16x1xf32>
    %c1_58 = arith.constant 1 : index
    %c0_59 = arith.constant 0 : index
    %c0_60 = arith.constant 0 : index
    %94 = vector.load %arg17[%c1_58, %c0_59, %c0_60] : memref<2x16x1xf32, #tpu.memory_space<vmem>>, vector<1x16x1xf32>
    %95 = vector.shape_cast %94 : vector<1x16x1xf32> to vector<16x1xf32>
    %96 = vector.shape_cast %93 : vector<16x1xf32> to vector<1x16x1xf32>
    tpu.vector_store %arg17[%c1_58, %c0_59, %c0_60], %96 {strides = array<i32>} : memref<2x16x1xf32, #tpu.memory_space<vmem>>, vector<1x16x1xf32>,
    %c1_61 = arith.constant 1 : index
    %c0_62 = arith.constant 0 : index
    %c0_63 = arith.constant 0 : index
    %97 = vector.load %arg18[%c1_61, %c0_62, %c0_63] : memref<2x16x32xf32, #tpu.memory_space<vmem>>, vector<1x16x32xf32>
    %98 = vector.shape_cast %97 : vector<1x16x32xf32> to vector<16x32xf32>
    %99 = vector.broadcast %82 : vector<16x1xf32> to vector<16x32xf32>
    %100 = arith.mulf %99, %98 : vector<16x32xf32>
    %c1_64 = arith.constant 1 : index
    %c0_65 = arith.constant 0 : index
    %c0_66 = arith.constant 0 : index
    %101 = vector.load %arg2[%c1_64, %c0_65, %c0_66] : memref<2x128x32xf32, #tpu.memory_space<vmem>>, vector<1x128x32xf32>
    %102 = vector.shape_cast %101 : vector<1x128x32xf32> to vector<128x32xf32>
    %cst_67 = arith.constant dense<0.000000e+00> : vector<16x32xf32>
    %103 = tpu.matmul %87, %102, %cst_67 {dimension_numbers = #tpu.dot_dimension_numbers<[1], [0], [0], [1], [0, 0, 1, 1], [], []>} : vector<16x128xf32>, vector<128x32xf32>, vector<16x32xf32> -> vector<16x32xf32>
    %104 = arith.addf %100, %103 : vector<16x32xf32>
    %c1_68 = arith.constant 1 : index
    %c0_69 = arith.constant 0 : index
    %c0_70 = arith.constant 0 : index
    %105 = vector.load %arg18[%c1_68, %c0_69, %c0_70] : memref<2x16x32xf32, #tpu.memory_space<vmem>>, vector<1x16x32xf32>
    %106 = vector.shape_cast %105 : vector<1x16x32xf32> to vector<16x32xf32>
    %107 = vector.shape_cast %104 : vector<16x32xf32> to vector<1x16x32xf32>
    tpu.vector_store %arg18[%c1_68, %c0_69, %c0_70], %107 {strides = array<i32>} : memref<2x16x32xf32, #tpu.memory_space<vmem>>, vector<1x16x32xf32>,
    %c1_71 = arith.constant 1 : index
    %c0_72 = arith.constant 0 : index
    %c0_73 = arith.constant 0 : index
    %108 = vector.load %arg16[%c1_71, %c0_72, %c0_73] : memref<2x16x1xf32, #tpu.memory_space<vmem>>, vector<1x16x1xf32>
    %109 = vector.shape_cast %108 : vector<1x16x1xf32> to vector<16x1xf32>
    %110 = vector.shape_cast %80 : vector<16x1xf32> to vector<1x16x1xf32>
    tpu.vector_store %arg16[%c1_71, %c0_72, %c0_73], %110 {strides = array<i32>} : memref<2x16x1xf32, #tpu.memory_space<vmem>>, vector<1x16x1xf32>,
    %c0_i32_74 = arith.constant 0 : i32
    %111 = arith.cmpi eq, %arg1, %c0_i32_74 : i32
    %112 = arith.extui %111 : i1 to i32
    %c0_i32_75 = arith.constant 0 : i32
    %113 = arith.cmpi ne, %112, %c0_i32_75 : i32
    scf.if %113 {
      %c0_76 = arith.constant 0 : index
      %c0_77 = arith.constant 0 : index
      %114 = vector.load %arg7[%c0_76, %c0_77] : memref<1x64xf32, #tpu.memory_space<vmem>>, vector<1x64xf32>
      %c0_78 = arith.constant 0 : index
      %c0_79 = arith.constant 0 : index
      %115 = vector.load %arg8[%c0_78, %c0_79] : memref<64x32xf32, #tpu.memory_space<vmem>>, vector<64x32xf32>
      %c0_80 = arith.constant 0 : index
      %c0_81 = arith.constant 0 : index
      %116 = vector.load %arg9[%c0_80, %c0_81] : memref<1x32xf32, #tpu.memory_space<vmem>>, vector<1x32xf32>
      %c0_82 = arith.constant 0 : index
      %c0_83 = arith.constant 0 : index
      %c0_84 = arith.constant 0 : index
      %117 = vector.load %arg17[%c0_82, %c0_83, %c0_84] : memref<2x16x1xf32, #tpu.memory_space<vmem>>, vector<1x16x1xf32>
      %118 = vector.shape_cast %117 : vector<1x16x1xf32> to vector<16x1xf32>
      %cst_85 = arith.constant 0.000000e+00 : f32
      %119 = vector.broadcast %cst_85 : f32 to vector<16x1xf32>
      %120 = arith.cmpf ogt, %118, %119 : vector<16x1xf32>
      %cst_86 = arith.constant 1.000000e+00 : f32
      %121 = vector.broadcast %cst_86 : f32 to vector<16x1xf32>
      %122 = arith.divf %121, %118 : vector<16x1xf32>
      %cst_87 = arith.constant 0.000000e+00 : f32
      %123 = vector.broadcast %cst_87 : f32 to vector<16x1xf32>
      %124 = arith.select %120, %122, %123 : vector<16x1xi1>, vector<16x1xf32>
      %c0_88 = arith.constant 0 : index
      %c0_89 = arith.constant 0 : index
      %c0_90 = arith.constant 0 : index
      %125 = vector.load %arg18[%c0_88, %c0_89, %c0_90] : memref<2x16x32xf32, #tpu.memory_space<vmem>>, vector<1x16x32xf32>
      %126 = vector.shape_cast %125 : vector<1x16x32xf32> to vector<16x32xf32>
      %127 = vector.broadcast %124 : vector<16x1xf32> to vector<16x32xf32>
      %128 = arith.mulf %126, %127 : vector<16x32xf32>
      %129 = vector.extract_strided_slice %114 {offsets = [0, 0], sizes = [1, 32], strides = [1, 1]} : vector<1x64xf32> to vector<1x32xf32>
      %130 = vector.broadcast %129 : vector<1x32xf32> to vector<16x32xf32>
      %131 = arith.addf %128, %130 : vector<16x32xf32>
      %cst_91 = arith.constant 0.000000e+00 : f32
      %132 = vector.broadcast %cst_91 : f32 to vector<16x32xf32>
      %133 = arith.maximumf %131, %132 : vector<16x32xf32>
      %134 = vector.extract_strided_slice %115 {offsets = [0, 0], sizes = [32, 32], strides = [1, 1]} : vector<64x32xf32> to vector<32x32xf32>
      %cst_92 = arith.constant dense<0.000000e+00> : vector<16x32xf32>
      %135 = tpu.matmul %133, %134, %cst_92 {dimension_numbers = #tpu.dot_dimension_numbers<[1], [0], [0], [1], [0, 0, 1, 1], [], []>} : vector<16x32xf32>, vector<32x32xf32>, vector<16x32xf32> -> vector<16x32xf32>
      %136 = vector.broadcast %116 : vector<1x32xf32> to vector<16x32xf32>
      %137 = arith.addf %136, %135 : vector<16x32xf32>
      %c1_93 = arith.constant 1 : index
      %c0_94 = arith.constant 0 : index
      %c0_95 = arith.constant 0 : index
      %138 = vector.load %arg17[%c1_93, %c0_94, %c0_95] : memref<2x16x1xf32, #tpu.memory_space<vmem>>, vector<1x16x1xf32>
      %139 = vector.shape_cast %138 : vector<1x16x1xf32> to vector<16x1xf32>
      %cst_96 = arith.constant 0.000000e+00 : f32
      %140 = vector.broadcast %cst_96 : f32 to vector<16x1xf32>
      %141 = arith.cmpf ogt, %139, %140 : vector<16x1xf32>
      %cst_97 = arith.constant 1.000000e+00 : f32
      %142 = vector.broadcast %cst_97 : f32 to vector<16x1xf32>
      %143 = arith.divf %142, %139 : vector<16x1xf32>
      %cst_98 = arith.constant 0.000000e+00 : f32
      %144 = vector.broadcast %cst_98 : f32 to vector<16x1xf32>
      %145 = arith.select %141, %143, %144 : vector<16x1xi1>, vector<16x1xf32>
      %c1_99 = arith.constant 1 : index
      %c0_100 = arith.constant 0 : index
      %c0_101 = arith.constant 0 : index
      %146 = vector.load %arg18[%c1_99, %c0_100, %c0_101] : memref<2x16x32xf32, #tpu.memory_space<vmem>>, vector<1x16x32xf32>
      %147 = vector.shape_cast %146 : vector<1x16x32xf32> to vector<16x32xf32>
      %148 = vector.broadcast %145 : vector<16x1xf32> to vector<16x32xf32>
      %149 = arith.mulf %147, %148 : vector<16x32xf32>
      %150 = vector.extract_strided_slice %114 {offsets = [0, 32], sizes = [1, 32], strides = [1, 1]} : vector<1x64xf32> to vector<1x32xf32>
      %151 = vector.broadcast %150 : vector<1x32xf32> to vector<16x32xf32>
      %152 = arith.addf %149, %151 : vector<16x32xf32>
      %cst_102 = arith.constant 0.000000e+00 : f32
      %153 = vector.broadcast %cst_102 : f32 to vector<16x32xf32>
      %154 = arith.maximumf %152, %153 : vector<16x32xf32>
      %155 = vector.extract_strided_slice %115 {offsets = [32, 0], sizes = [32, 32], strides = [1, 1]} : vector<64x32xf32> to vector<32x32xf32>
      %cst_103 = arith.constant dense<0.000000e+00> : vector<16x32xf32>
      %156 = tpu.matmul %154, %155, %cst_103 {dimension_numbers = #tpu.dot_dimension_numbers<[1], [0], [0], [1], [0, 0, 1, 1], [], []>} : vector<16x32xf32>, vector<32x32xf32>, vector<16x32xf32> -> vector<16x32xf32>
      %157 = arith.addf %137, %156 : vector<16x32xf32>
      %cst_104 = arith.constant 0.000000e+00 : f32
      %158 = vector.broadcast %cst_104 : f32 to vector<16x32xf32>
      %159 = arith.maximumf %157, %158 : vector<16x32xf32>
      %c0_105 = arith.constant 0 : index
      %c0_106 = arith.constant 0 : index
      %160 = vector.load %arg10[%c0_105, %c0_106] : memref<32x32xf32, #tpu.memory_space<vmem>>, vector<32x32xf32>
      %cst_107 = arith.constant dense<0.000000e+00> : vector<16x32xf32>
      %161 = tpu.matmul %159, %160, %cst_107 {dimension_numbers = #tpu.dot_dimension_numbers<[1], [0], [0], [1], [0, 0, 1, 1], [], []>} : vector<16x32xf32>, vector<32x32xf32>, vector<16x32xf32> -> vector<16x32xf32>
      %c0_108 = arith.constant 0 : index
      %c0_109 = arith.constant 0 : index
      %162 = vector.load %arg11[%c0_108, %c0_109] : memref<1x32xf32, #tpu.memory_space<vmem>>, vector<1x32xf32>
      %163 = vector.broadcast %162 : vector<1x32xf32> to vector<16x32xf32>
      %164 = arith.addf %161, %163 : vector<16x32xf32>
      %c0_110 = arith.constant 0 : index
      %c0_111 = arith.constant 0 : index
      %165 = vector.load %arg6[%c0_110, %c0_111] : memref<16x32xf32, #tpu.memory_space<vmem>>, vector<16x32xf32>
      %c0_112 = arith.constant 0 : index
      %c0_113 = arith.constant 0 : index
      %166 = vector.load %arg12[%c0_112, %c0_113] : memref<32x32xf32, #tpu.memory_space<vmem>>, vector<32x32xf32>
      %cst_114 = arith.constant dense<0.000000e+00> : vector<16x32xf32>
      %167 = tpu.matmul %165, %166, %cst_114 {dimension_numbers = #tpu.dot_dimension_numbers<[1], [0], [0], [1], [0, 0, 1, 1], [], []>} : vector<16x32xf32>, vector<32x32xf32>, vector<16x32xf32> -> vector<16x32xf32>
      %c0_115 = arith.constant 0 : index
      %c0_116 = arith.constant 0 : index
      %168 = vector.load %arg13[%c0_115, %c0_116] : memref<32x32xf32, #tpu.memory_space<vmem>>, vector<32x32xf32>
      %cst_117 = arith.constant dense<0.000000e+00> : vector<16x32xf32>
      %169 = tpu.matmul %164, %168, %cst_117 {dimension_numbers = #tpu.dot_dimension_numbers<[1], [0], [0], [1], [0, 0, 1, 1], [], []>} : vector<16x32xf32>, vector<32x32xf32>, vector<16x32xf32> -> vector<16x32xf32>
      %170 = arith.addf %167, %169 : vector<16x32xf32>
      %c0_118 = arith.constant 0 : index
      %c0_119 = arith.constant 0 : index
      %171 = vector.load %arg14[%c0_118, %c0_119] : memref<1x32xf32, #tpu.memory_space<vmem>>, vector<1x32xf32>
      %172 = vector.broadcast %171 : vector<1x32xf32> to vector<16x32xf32>
      %173 = arith.addf %170, %172 : vector<16x32xf32>
      %cst_120 = arith.constant 0.000000e+00 : f32
      %174 = vector.broadcast %cst_120 : f32 to vector<16x32xf32>
      %175 = arith.maximumf %173, %174 : vector<16x32xf32>
      %c0_121 = arith.constant 0 : index
      %c0_122 = arith.constant 0 : index
      %176 = vector.load %arg15[%c0_121, %c0_122] : memref<16x32xf32, #tpu.memory_space<vmem>>, vector<16x32xf32>
      tpu.vector_store %arg15[%c0_121, %c0_122], %175 {strides = array<i32>} : memref<16x32xf32, #tpu.memory_space<vmem>>, vector<16x32xf32>,
    } else {
    }
    return
  }
  func.func @transform_0(%arg0: i32, %arg1: i32) -> (i32, i32, i32) {
    %c0_i32 = arith.constant 0 : i32
    %c0_i32_0 = arith.constant 0 : i32
    %c0_i32_1 = arith.constant 0 : i32
    return %c0_i32, %arg1, %c0_i32_0 : i32, i32, i32
  }
  func.func @transform_1(%arg0: i32, %arg1: i32) -> (i32, i32, i32) {
    %c0_i32 = arith.constant 0 : i32
    %c0_i32_0 = arith.constant 0 : i32
    %c0_i32_1 = arith.constant 0 : i32
    return %c0_i32, %c0_i32_0, %arg1 : i32, i32, i32
  }
  func.func @transform_2(%arg0: i32, %arg1: i32) -> (i32, i32, i32) {
    %c0_i32 = arith.constant 0 : i32
    %c0_i32_0 = arith.constant 0 : i32
    %c0_i32_1 = arith.constant 0 : i32
    return %c0_i32, %arg0, %c0_i32_0 : i32, i32, i32
  }
  func.func @transform_3(%arg0: i32, %arg1: i32) -> (i32, i32, i32) {
    %c0_i32 = arith.constant 0 : i32
    %c0_i32_0 = arith.constant 0 : i32
    return %c0_i32, %arg0, %arg1 : i32, i32, i32
  }
  func.func @transform_4(%arg0: i32, %arg1: i32) -> (i32, i32) {
    %c0_i32 = arith.constant 0 : i32
    %c0_i32_0 = arith.constant 0 : i32
    return %arg0, %c0_i32 : i32, i32
  }
  func.func @transform_5(%arg0: i32, %arg1: i32) -> (i32, i32) {
    %c0_i32 = arith.constant 0 : i32
    %c0_i32_0 = arith.constant 0 : i32
    %c0_i32_1 = arith.constant 0 : i32
    return %c0_i32, %c0_i32_0 : i32, i32
  }
  func.func @transform_6(%arg0: i32, %arg1: i32) -> (i32, i32) {
    %c0_i32 = arith.constant 0 : i32
    %c0_i32_0 = arith.constant 0 : i32
    %c0_i32_1 = arith.constant 0 : i32
    return %c0_i32, %c0_i32_0 : i32, i32
  }
  func.func @transform_7(%arg0: i32, %arg1: i32) -> (i32, i32) {
    %c0_i32 = arith.constant 0 : i32
    %c0_i32_0 = arith.constant 0 : i32
    %c0_i32_1 = arith.constant 0 : i32
    return %c0_i32, %c0_i32_0 : i32, i32
  }
  func.func @transform_8(%arg0: i32, %arg1: i32) -> (i32, i32) {
    %c0_i32 = arith.constant 0 : i32
    %c0_i32_0 = arith.constant 0 : i32
    %c0_i32_1 = arith.constant 0 : i32
    return %c0_i32, %c0_i32_0 : i32, i32
  }
  func.func @transform_9(%arg0: i32, %arg1: i32) -> (i32, i32) {
    %c0_i32 = arith.constant 0 : i32
    %c0_i32_0 = arith.constant 0 : i32
    %c0_i32_1 = arith.constant 0 : i32
    return %c0_i32, %c0_i32_0 : i32, i32
  }
  func.func @transform_10(%arg0: i32, %arg1: i32) -> (i32, i32) {
    %c0_i32 = arith.constant 0 : i32
    %c0_i32_0 = arith.constant 0 : i32
    %c0_i32_1 = arith.constant 0 : i32
    return %c0_i32, %c0_i32_0 : i32, i32
  }
  func.func @transform_11(%arg0: i32, %arg1: i32) -> (i32, i32) {
    %c0_i32 = arith.constant 0 : i32
    %c0_i32_0 = arith.constant 0 : i32
    %c0_i32_1 = arith.constant 0 : i32
    return %c0_i32, %c0_i32_0 : i32, i32
  }
  func.func @transform_12(%arg0: i32, %arg1: i32) -> (i32, i32) {
    %c0_i32 = arith.constant 0 : i32
    %c0_i32_0 = arith.constant 0 : i32
    %c0_i32_1 = arith.constant 0 : i32
    return %c0_i32, %c0_i32_0 : i32, i32
  }
  func.func @transform_13(%arg0: i32, %arg1: i32) -> (i32, i32) {
    %c0_i32 = arith.constant 0 : i32
    %c0_i32_0 = arith.constant 0 : i32
    return %arg0, %c0_i32 : i32, i32
  }
}

module attributes {stable_mosaic.version = 11 : i64} {
  func.func @_out_head_kernel(%arg0: memref<10x32xf32, #tpu.memory_space<vmem>>, %arg1: memref<32x32xf32, #tpu.memory_space<vmem>>, %arg2: memref<1x32xf32, #tpu.memory_space<vmem>>, %arg3: memref<32x1xf32, #tpu.memory_space<vmem>>, %arg4: memref<10x1xf32, #tpu.memory_space<vmem>>) attributes {dimension_semantics = [], scalar_prefetch = 0 : i64, scratch_operands = 0 : i64, tpu.core_type = #tpu.core_type<tc>} {
    %c0 = arith.constant 0 : index
    %c0_0 = arith.constant 0 : index
    %0 = vector.load %arg0[%c0, %c0_0] : memref<10x32xf32, #tpu.memory_space<vmem>>, vector<10x32xf32>
    %c0_1 = arith.constant 0 : index
    %c0_2 = arith.constant 0 : index
    %1 = vector.load %arg1[%c0_1, %c0_2] : memref<32x32xf32, #tpu.memory_space<vmem>>, vector<32x32xf32>
    %cst = arith.constant dense<0.000000e+00> : vector<10x32xf32>
    %2 = tpu.matmul %0, %1, %cst {dimension_numbers = #tpu.dot_dimension_numbers<[1], [0], [0], [1], [0, 0, 1, 1], [], []>} : vector<10x32xf32>, vector<32x32xf32>, vector<10x32xf32> -> vector<10x32xf32>
    %c0_3 = arith.constant 0 : index
    %c0_4 = arith.constant 0 : index
    %3 = vector.load %arg2[%c0_3, %c0_4] : memref<1x32xf32, #tpu.memory_space<vmem>>, vector<1x32xf32>
    %4 = vector.broadcast %3 : vector<1x32xf32> to vector<10x32xf32>
    %5 = arith.addf %2, %4 : vector<10x32xf32>
    %cst_5 = arith.constant 0.000000e+00 : f32
    %6 = vector.broadcast %cst_5 : f32 to vector<10x32xf32>
    %7 = arith.maximumf %5, %6 : vector<10x32xf32>
    %c0_6 = arith.constant 0 : index
    %c0_7 = arith.constant 0 : index
    %8 = vector.load %arg3[%c0_6, %c0_7] : memref<32x1xf32, #tpu.memory_space<vmem>>, vector<32x1xf32>
    %cst_8 = arith.constant dense<0.000000e+00> : vector<10x1xf32>
    %9 = tpu.matmul %7, %8, %cst_8 {dimension_numbers = #tpu.dot_dimension_numbers<[1], [0], [0], [1], [0, 0, 1, 1], [], []>} : vector<10x32xf32>, vector<32x1xf32>, vector<10x1xf32> -> vector<10x1xf32>
    %c0_9 = arith.constant 0 : index
    %c0_10 = arith.constant 0 : index
    %10 = vector.load %arg4[%c0_9, %c0_10] : memref<10x1xf32, #tpu.memory_space<vmem>>, vector<10x1xf32>
    tpu.vector_store %arg4[%c0_9, %c0_10], %9 {strides = array<i32>} : memref<10x1xf32, #tpu.memory_space<vmem>>, vector<10x1xf32>,
    return
  }
}

</mosaic_0001>

<llo_original>
// kernel: gat_policy_forward.8
$region0: #{gat_policy_forward.8}
  #allocation0 [shape = 'u32[]', space=smem, size = 0x4, offset = 0x4, fixed_abs, tag = 'smem constant byte address 0x4 - core index']
  #allocation1 [shape = 'u32[72,128]{1,0:T(1,128)}', space=vmem, size = 0x9000, scoped, tag = 'internal scratch']
  %s0 = inlined_call_operand.vmem [shape: f32[6,5], index: 0, kind: input, shape index: {}]
  %s1 = inlined_call_operand.vmem [shape: f32[5,32], index: 1, kind: input, shape index: {}]
  %s2 = inlined_call_operand.vmem [shape: f32[1,32], index: 2, kind: input, shape index: {}]
  %s3 = inlined_call_operand.vmem [shape: f32[32,32], index: 3, kind: input, shape index: {}]
  %s4 = inlined_call_operand.vmem [shape: f32[1,32], index: 4, kind: input, shape index: {}]
  %s5 = inlined_call_operand.vmem [shape: f32[6,32], index: 5, kind: output, shape index: {}]
  %s6 = sld [smem:[#allocation0]]
  $region30: #{gat_policy_forward.8} parent=0
    _
  %s8 = ssub.s32 1, %s6
  %s9 = scalar_select 0, %s8, %s6
  // Predicated region
  $region2: #{gat_policy_forward.8} parent=0 // pred_check
    _
  $region3: #{gat_policy_forward.8} parent=0 // pred_check_branch
    %11 = sbr.rel (0) target = $region5
  $region4: #{gat_policy_forward.8} parent=0 // pred_region
    _
  $region5: #{gat_policy_forward.8} parent=0 // pred_fallthru
    _
  // Predicated region
  $region6: #{gat_policy_forward.8} parent=0 // pred_check
    _
  $region7: #{gat_policy_forward.8} parent=0 // pred_check_branch
    %13 = sbr.rel (0) target = $region9
  $region8: #{gat_policy_forward.8} parent=0 // pred_region
    _
  $region9: #{gat_policy_forward.8} parent=0 // pred_fallthru
    _
  // Predicated region
  $region10: #{gat_policy_forward.8} parent=0 // pred_check
    _
  $region11: #{gat_policy_forward.8} parent=0 // pred_check_branch
    %15 = sbr.rel (0) target = $region13
  $region12: #{gat_policy_forward.8} parent=0 // pred_region
    _
  $region13: #{gat_policy_forward.8} parent=0 // pred_fallthru
    _
  // Predicated region
  $region14: #{gat_policy_forward.8} parent=0 // pred_check
    _
  $region15: #{gat_policy_forward.8} parent=0 // pred_check_branch
    %17 = sbr.rel (0) target = $region17
  $region16: #{gat_policy_forward.8} parent=0 // pred_region
    _
  $region17: #{gat_policy_forward.8} parent=0 // pred_fallthru
    _
  // Predicated region
  $region18: #{gat_policy_forward.8} parent=0 // pred_check
    _
  $region19: #{gat_policy_forward.8} parent=0 // pred_check_branch
    %19 = sbr.rel (0) target = $region21
  $region20: #{gat_policy_forward.8} parent=0 // pred_region
    _
  $region21: #{gat_policy_forward.8} parent=0 // pred_fallthru
    _
  %v20 = vld [vmem:[%s0] sm:$0x3f]
  %v21 = vld [vmem:[%s1] sm:$0x1f]
  %v22 = vld [vmem:[%s2] sm:$0x1]
  %v24 = vperm.slane %v22, 0
  %vm26 = vcmask 39936
  %v28 = vsel %vm26, %v20, 0
  %vm30 = vcmask 1044480
  %v32 = vsel %vm30, %v21, 0
  %34 = vmatpush.msra.mxu0 0.0
  %35 = vmatpush.msra.mxu0 0.0
  %36 = vmatpush.msra.mxu0 0.0
  %37 = vmatpush.msra.mxu0 0.0
  %38 = vmatpush.msra.mxu0 0.0
  %39 = vmatpush.msra.mxu0 0.0
  %40 = vmatpush.msra.mxu0 0.0
  %41 = vmatpush.msra.mxu0 0.0
  %42 = vmatpush.msra.mxu0 0.0
  %43 = vmatpush.msra.mxu0 0.0
  %44 = vmatpush.msra.mxu0 0.0
  %45 = vmatpush.msra.mxu0 0.0
  %46 = vmatpush.msra.mxu0 0.0
  %47 = vmatpush.msra.mxu0 0.0
  %48 = vmatpush.msra.mxu0 0.0
  %49 = vmatpush.msra.mxu0 %v32
  %50 = vmatmul.f32.gmra.mxu0 %v28
  %v51 = vpop.f32.mrf.mxu0
  %v52 = vadd.f32 %v24, %v51
  %53 = vdwg.mxu0
  %v54 = vmax.f32 %v52, 0.0
  %v55 = vld [vmem:[%s3] sm:$0xff]
  %v56 = vld [vmem:[%s3 + $0x8] sm:$0xff]
  %v57 = vld [vmem:[%s3 + $0x10] sm:$0xff]
  %v58 = vld [vmem:[%s3 + $0x18] sm:$0xff]
  %v59 = vld [vmem:[%s4] sm:$0x1]
  %v61 = vperm.slane %v59, 0
  %vm63 = vcmask 261120
  %v65 = vsel %vm63, %v54, 0
  %67 = vmatpush.msra.mxu0 0.0
  %68 = vmatpush.msra.mxu0 0.0
  %69 = vmatpush.msra.mxu0 0.0
  %70 = vmatpush.msra.mxu0 0.0
  %71 = vmatpush.msra.mxu0 0.0
  %72 = vmatpush.msra.mxu0 0.0
  %73 = vmatpush.msra.mxu0 0.0
  %74 = vmatpush.msra.mxu0 0.0
  %75 = vmatpush.msra.mxu0 0.0
  %76 = vmatpush.msra.mxu0 0.0
  %77 = vmatpush.msra.mxu0 0.0
  %78 = vmatpush.msra.mxu0 0.0
  %79 = vmatpush.msra.mxu0 %v58
  %80 = vmatpush.msra.mxu0 %v57
  %81 = vmatpush.msra.mxu0 %v56
  %82 = vmatpush.msra.mxu0 %v55
  %83 = vmatmul.f32.gmra.mxu0 %v65
  %v84 = vpop.f32.mrf.mxu0
  %v85 = vadd.f32 %v61, %v84
  %86 = vdwg.mxu0
  %v87 = vmax.f32 %v85, 0.0
  %vm88 = vcmask 259072
  %89 = vst.msk [vmem:[%s5] sm:$0x3f] %vm88, %v87
  // Predicated region
  $region22: #{gat_policy_forward.8} parent=0 // pred_check
    _
  $region23: #{gat_policy_forward.8} parent=0 // pred_check_branch
    %91 = sbr.rel (0) target = $region25
  $region24: #{gat_policy_forward.8} parent=0 // pred_region
    _
  $region25: #{gat_policy_forward.8} parent=0 // pred_fallthru
    _
  // Predicated region
  $region26: #{gat_policy_forward.8} parent=0 // pred_check
    _
  $region27: #{gat_policy_forward.8} parent=0 // pred_check_branch
    %93 = sbr.rel (0) target = $region29
  $region28: #{gat_policy_forward.8} parent=0 // pred_region
    _
  $region29: #{gat_policy_forward.8} parent=0 // pred_fallthru
    _

// kernel: gat_policy_forward.11
$region0: #{gat_policy_forward.11}
  #allocation0 [shape = 'u32[]', space=smem, size = 0x4, offset = 0x4, fixed_abs, tag = 'smem constant byte address 0x4 - core index']
  #allocation1 [shape = 'u32[72,128]{1,0:T(1,128)}', space=vmem, size = 0x9000, scoped, tag = 'internal scratch']
  %s0 = inlined_call_operand.vmem [shape: f32[10,32], index: 0, kind: input, shape index: {}]
  %s1 = inlined_call_operand.vmem [shape: f32[6,32], index: 1, kind: input, shape index: {}]
  %s2 = inlined_call_operand.vmem [shape: f32[20,32], index: 2, kind: input, shape index: {}]
  %s3 = inlined_call_operand.vmem [shape: f32[32,64], index: 3, kind: input, shape index: {}]
  %s4 = inlined_call_operand.vmem [shape: f32[32,64], index: 4, kind: input, shape index: {}]
  %s5 = inlined_call_operand.vmem [shape: f32[64,2], index: 5, kind: input, shape index: {}]
  %s6 = inlined_call_operand.vmem [shape: f32[64,2], index: 6, kind: input, shape index: {}]
  %s7 = inlined_call_operand.vmem [shape: f32[64,2], index: 7, kind: input, shape index: {}]
  %s8 = inlined_call_operand.vmem [shape: f32[10,64], index: 8, kind: output, shape index: {0}]
  %s9 = inlined_call_operand.vmem [shape: f32[10,2], index: 9, kind: output, shape index: {1}]
  %s10 = inlined_call_operand.vmem [shape: f32[6,2], index: 10, kind: output, shape index: {2}]
  %s11 = inlined_call_operand.vmem [shape: f32[20,2], index: 11, kind: output, shape index: {3}]
  %12 = xla_tuple %s8, %s9, %s10, %s11
  %s13 = sld [smem:[#allocation0]]
  $region66: #{gat_policy_forward.11} parent=0
    _
  %s15 = ssub.s32 1, %s13
  %s16 = scalar_select 0, %s15, %s13
  // Predicated region
  $region2: #{gat_policy_forward.11} parent=0 // pred_check
    _
  $region3: #{gat_policy_forward.11} parent=0 // pred_check_branch
    %18 = sbr.rel (0) target = $region5
  $region4: #{gat_policy_forward.11} parent=0 // pred_region
    _
  $region5: #{gat_policy_forward.11} parent=0 // pred_fallthru
    _
  // Predicated region
  $region6: #{gat_policy_forward.11} parent=0 // pred_check
    _
  $region7: #{gat_policy_forward.11} parent=0 // pred_check_branch
    %20 = sbr.rel (0) target = $region9
  $region8: #{gat_policy_forward.11} parent=0 // pred_region
    _
  $region9: #{gat_policy_forward.11} parent=0 // pred_fallthru
    _
  // Predicated region
  $region10: #{gat_policy_forward.11} parent=0 // pred_check
    _
  $region11: #{gat_policy_forward.11} parent=0 // pred_check_branch
    %22 = sbr.rel (0) target = $region13
  $region12: #{gat_policy_forward.11} parent=0 // pred_region
    _
  $region13: #{gat_policy_forward.11} parent=0 // pred_fallthru
    _
  // Predicated region
  $region14: #{gat_policy_forward.11} parent=0 // pred_check
    _
  $region15: #{gat_policy_forward.11} parent=0 // pred_check_branch
    %24 = sbr.rel (0) target = $region17
  $region16: #{gat_policy_forward.11} parent=0 // pred_region
    _
  $region17: #{gat_policy_forward.11} parent=0 // pred_fallthru
    _
  // Predicated region
  $region18: #{gat_policy_forward.11} parent=0 // pred_check
    _
  $region19: #{gat_policy_forward.11} parent=0 // pred_check_branch
    %26 = sbr.rel (0) target = $region21
  $region20: #{gat_policy_forward.11} parent=0 // pred_region
    _
  $region21: #{gat_policy_forward.11} parent=0 // pred_fallthru
    _
  // Predicated region
  $region22: #{gat_policy_forward.11} parent=0 // pred_check
    _
  $region23: #{gat_policy_forward.11} parent=0 // pred_check_branch
    %28 = sbr.rel (0) target = $region25
  $region24: #{gat_policy_forward.11} parent=0 // pred_region
    _
  $region25: #{gat_policy_forward.11} parent=0 // pred_fallthru
    _
  // Predicated region
  $region26: #{gat_policy_forward.11} parent=0 // pred_check
    _
  $region27: #{gat_policy_forward.11} parent=0 // pred_check_branch
    %30 = sbr.rel (0) target = $region29
  $region28: #{gat_policy_forward.11} parent=0 // pred_region
    _
  $region29: #{gat_policy_forward.11} parent=0 // pred_fallthru
    _
  // Predicated region
  $region30: #{gat_policy_forward.11} parent=0 // pred_check
    _
  $region31: #{gat_policy_forward.11} parent=0 // pred_check_branch
    %32 = sbr.rel (0) target = $region33
  $region32: #{gat_policy_forward.11} parent=0 // pred_region
    _
  $region33: #{gat_policy_forward.11} parent=0 // pred_fallthru
    _
  %v33 = vld [vmem:[%s0] sm:$0xff]
  %v34 = vld [vmem:[%s0 + $0x8] sm:$0x3]
  %v35 = vld [vmem:[%s3] sm:$0xff]
  %v36 = vld [vmem:[%s3 + $0x8] sm:$0xff]
  %v37 = vld [vmem:[%s3 + $0x10] sm:$0xff]
  %v38 = vld [vmem:[%s3 + $0x18] sm:$0xff]
  %vm39 = vcmask 261120
  %v41 = vsel %vm39, %v33, 0
  %v44 = vsel %vm39, %v34, 0
  %46 = vmatpush.msra.mxu0 0.0
  %47 = vmatpush.msra.mxu0 0.0
  %48 = vmatpush.msra.mxu0 0.0
  %49 = vmatpush.msra.mxu0 0.0
  %50 = vmatpush.msra.mxu0 0.0
  %51 = vmatpush.msra.mxu0 0.0
  %52 = vmatpush.msra.mxu0 0.0
  %53 = vmatpush.msra.mxu0 0.0
  %54 = vmatpush.msra.mxu0 0.0
  %55 = vmatpush.msra.mxu0 0.0
  %56 = vmatpush.msra.mxu0 0.0
  %57 = vmatpush.msra.mxu0 0.0
  %58 = vmatpush.msra.mxu0 %v38
  %59 = vmatpush.msra.mxu0 %v37
  %60 = vmatpush.msra.mxu0 %v36
  %61 = vmatpush.msra.mxu0 %v35
  %62 = vmatmul.f32.gmra.mxu0 %v41
  %v63 = vpop.f32.mrf.mxu0
  %v64 = vadd.f32 0.0, %v63
  %65 = vmatmul.f32.gmra.mxu0 %v44
  %v66 = vpop.f32.mrf.mxu0
  %v67 = vadd.f32 0.0, %v66
  %68 = vdwg.mxu0
  %vm69 = vcmask 523264
  %70 = vst.msk [vmem:[%s8] sm:$0xff] %vm69, %v64
  %vm71 = vcmask 517120
  %72 = vst.msk [vmem:[%s8 + $0x8] sm:$0x3] %vm71, %v67
  %v73 = vld [vmem:[%s5] sm:$0xff]
  %v74 = vld [vmem:[%s5 + $0x8] sm:$0xff]
  %v75 = vld [vmem:[%s5 + $0x10] sm:$0xff]
  %v76 = vld [vmem:[%s5 + $0x18] sm:$0xff]
  %v77 = vld [vmem:[%s5 + $0x20] sm:$0xff]
  %v78 = vld [vmem:[%s5 + $0x28] sm:$0xff]
  %v79 = vld [vmem:[%s5 + $0x30] sm:$0xff]
  %v80 = vld [vmem:[%s5 + $0x38] sm:$0xff]
  %v82 = vsel %vm69, %v64, 0
  %v85 = vsel %vm69, %v67, 0
  %87 = vmatpush.msra.mxu0 0.0
  %88 = vmatpush.msra.mxu0 0.0
  %89 = vmatpush.msra.mxu0 0.0
  %90 = vmatpush.msra.mxu0 0.0
  %91 = vmatpush.msra.mxu0 0.0
  %92 = vmatpush.msra.mxu0 0.0
  %93 = vmatpush.msra.mxu0 0.0
  %94 = vmatpush.msra.mxu0 0.0
  %95 = vmatpush.msra.mxu0 %v80
  %96 = vmatpush.msra.mxu0 %v79
  %97 = vmatpush.msra.mxu0 %v78
  %98 = vmatpush.msra.mxu0 %v77
  %99 = vmatpush.msra.mxu0 %v76
  %100 = vmatpush.msra.mxu0 %v75
  %101 = vmatpush.msra.mxu0 %v74
  %102 = vmatpush.msra.mxu0 %v73
  %103 = vmatmul.f32.gmra.mxu0 %v82
  %v104 = vpop.f32.mrf.mxu0
  %v105 = vadd.f32 0.0, %v104
  %106 = vmatmul.f32.gmra.mxu0 %v85
  %v107 = vpop.f32.mrf.mxu0
  %v108 = vadd.f32 0.0, %v107
  %109 = vdwg.mxu0
  %vm110 = vcmask 15360
  %111 = vst.msk [vmem:[%s9] sm:$0xff] %vm110, %v105
  %vm112 = vcmask 9216
  %113 = vst.msk [vmem:[%s9 + $0x8] sm:$0x3] %vm112, %v108
  %v114 = vld [vmem:[%s1] sm:$0x3f]
  %v115 = vld [vmem:[%s3] sm:$0xff]
  %v116 = vld [vmem:[%s3 + $0x8] sm:$0xff]
  %v117 = vld [vmem:[%s3 + $0x10] sm:$0xff]
  %v118 = vld [vmem:[%s3 + $0x18] sm:$0xff]
  %v120 = vsel %vm39, %v114, 0
  %122 = vmatpush.msra.mxu0 0.0
  %123 = vmatpush.msra.mxu0 0.0
  %124 = vmatpush.msra.mxu0 0.0
  %125 = vmatpush.msra.mxu0 0.0
  %126 = vmatpush.msra.mxu0 0.0
  %127 = vmatpush.msra.mxu0 0.0
  %128 = vmatpush.msra.mxu0 0.0
  %129 = vmatpush.msra.mxu0 0.0
  %130 = vmatpush.msra.mxu0 0.0
  %131 = vmatpush.msra.mxu0 0.0
  %132 = vmatpush.msra.mxu0 0.0
  %133 = vmatpush.msra.mxu0 0.0
  %134 = vmatpush.msra.mxu0 %v118
  %135 = vmatpush.msra.mxu0 %v117
  %136 = vmatpush.msra.mxu0 %v116
  %137 = vmatpush.msra.mxu0 %v115
  %138 = vmatmul.f32.gmra.mxu0 %v120
  %v139 = vpop.f32.mrf.mxu0
  %v140 = vadd.f32 0.0, %v139
  %141 = vdwg.mxu0
  %v142 = vld [vmem:[%s6] sm:$0xff]
  %v143 = vld [vmem:[%s6 + $0x8] sm:$0xff]
  %v144 = vld [vmem:[%s6 + $0x10] sm:$0xff]
  %v145 = vld [vmem:[%s6 + $0x18] sm:$0xff]
  %v146 = vld [vmem:[%s6 + $0x20] sm:$0xff]
  %v147 = vld [vmem:[%s6 + $0x28] sm:$0xff]
  %v148 = vld [vmem:[%s6 + $0x30] sm:$0xff]
  %v149 = vld [vmem:[%s6 + $0x38] sm:$0xff]
  %v151 = vsel %vm69, %v140, 0
  %153 = vmatpush.msra.mxu0 0.0
  %154 = vmatpush.msra.mxu0 0.0
  %155 = vmatpush.msra.mxu0 0.0
  %156 = vmatpush.msra.mxu0 0.0
  %157 = vmatpush.msra.mxu0 0.0
  %158 = vmatpush.msra.mxu0 0.0
  %159 = vmatpush.msra.mxu0 0.0
  %160 = vmatpush.msra.mxu0 0.0
  %161 = vmatpush.msra.mxu0 %v149
  %162 = vmatpush.msra.mxu0 %v148
  %163 = vmatpush.msra.mxu0 %v147
  %164 = vmatpush.msra.mxu0 %v146
  %165 = vmatpush.msra.mxu0 %v145
  %166 = vmatpush.msra.mxu0 %v144
  %167 = vmatpush.msra.mxu0 %v143
  %168 = vmatpush.msra.mxu0 %v142
  %169 = vmatmul.f32.gmra.mxu0 %v151
  %v170 = vpop.f32.mrf.mxu0
  %v171 = vadd.f32 0.0, %v170
  %172 = vdwg.mxu0
  %vm173 = vcmask 13312
  %174 = vst.msk [vmem:[%s10] sm:$0x3f] %vm173, %v171
  %v175 = vld [vmem:[%s2] sm:$0xff]
  %v176 = vld [vmem:[%s2 + $0x8] sm:$0xff]
  %v177 = vld [vmem:[%s2 + $0x10] sm:$0xf]
  %v178 = vld [vmem:[%s4] sm:$0xff]
  %v179 = vld [vmem:[%s4 + $0x8] sm:$0xff]
  %v180 = vld [vmem:[%s4 + $0x10] sm:$0xff]
  %v181 = vld [vmem:[%s4 + $0x18] sm:$0xff]
  %v183 = vsel %vm39, %v175, 0
  %v186 = vsel %vm39, %v176, 0
  %v189 = vsel %vm39, %v177, 0
  %191 = vmatpush.msra.mxu0 0.0
  %192 = vmatpush.msra.mxu0 0.0
  %193 = vmatpush.msra.mxu0 0.0
  %194 = vmatpush.msra.mxu0 0.0
  %195 = vmatpush.msra.mxu0 0.0
  %196 = vmatpush.msra.mxu0 0.0
  %197 = vmatpush.msra.mxu0 0.0
  %198 = vmatpush.msra.mxu0 0.0
  %199 = vmatpush.msra.mxu0 0.0
  %200 = vmatpush.msra.mxu0 0.0
  %201 = vmatpush.msra.mxu0 0.0
  %202 = vmatpush.msra.mxu0 0.0
  %203 = vmatpush.msra.mxu0 %v181
  %204 = vmatpush.msra.mxu0 %v180
  %205 = vmatpush.msra.mxu0 %v179
  %206 = vmatpush.msra.mxu0 %v178
  %207 = vmatmul.f32.gmra.mxu0 %v183
  %v208 = vpop.f32.mrf.mxu0
  %v209 = vadd.f32 0.0, %v208
  %210 = vmatmul.f32.gmra.mxu0 %v186
  %v211 = vpop.f32.mrf.mxu0
  %v212 = vadd.f32 0.0, %v211
  %213 = vmatmul.f32.gmra.mxu0 %v189
  %v214 = vpop.f32.mrf.mxu0
  %v215 = vadd.f32 0.0, %v214
  %216 = vdwg.mxu0
  %v217 = vld [vmem:[%s7] sm:$0xff]
  %v218 = vld [vmem:[%s7 + $0x8] sm:$0xff]
  %v219 = vld [vmem:[%s7 + $0x10] sm:$0xff]
  %v220 = vld [vmem:[%s7 + $0x18] sm:$0xff]
  %v221 = vld [vmem:[%s7 + $0x20] sm:$0xff]
  %v222 = vld [vmem:[%s7 + $0x28] sm:$0xff]
  %v223 = vld [vmem:[%s7 + $0x30] sm:$0xff]
  %v224 = vld [vmem:[%s7 + $0x38] sm:$0xff]
  %v226 = vsel %vm69, %v209, 0
  %v229 = vsel %vm69, %v212, 0
  %v232 = vsel %vm69, %v215, 0
  %234 = vmatpush.msra.mxu0 0.0
  %235 = vmatpush.msra.mxu0 0.0
  %236 = vmatpush.msra.mxu0 0.0
  %237 = vmatpush.msra.mxu0 0.0
  %238 = vmatpush.msra.mxu0 0.0
  %239 = vmatpush.msra.mxu0 0.0
  %240 = vmatpush.msra.mxu0 0.0
  %241 = vmatpush.msra.mxu0 0.0
  %242 = vmatpush.msra.mxu0 %v224
  %243 = vmatpush.msra.mxu0 %v223
  %244 = vmatpush.msra.mxu0 %v222
  %245 = vmatpush.msra.mxu0 %v221
  %246 = vmatpush.msra.mxu0 %v220
  %247 = vmatpush.msra.mxu0 %v219
  %248 = vmatpush.msra.mxu0 %v218
  %249 = vmatpush.msra.mxu0 %v217
  %250 = vmatmul.f32.gmra.mxu0 %v226
  %v251 = vpop.f32.mrf.mxu0
  %v252 = vadd.f32 0.0, %v251
  %253 = vmatmul.f32.gmra.mxu0 %v229
  %v254 = vpop.f32.mrf.mxu0
  %v255 = vadd.f32 0.0, %v254
  %256 = vmatmul.f32.gmra.mxu0 %v232
  %v257 = vpop.f32.mrf.mxu0
  %v258 = vadd.f32 0.0, %v257
  %259 = vdwg.mxu0
  %260 = vst.msk [vmem:[%s11] sm:$0xff] %vm110, %v252
  %261 = vst.msk [vmem:[%s11 + $0x8] sm:$0xff] %vm110, %v255
  %vm262 = vcmask 11264
  %263 = vst.msk [vmem:[%s11 + $0x10] sm:$0xf] %vm262, %v258
  // Predicated region
  $region34: #{gat_policy_forward.11} parent=0 // pred_check
    _
  $region35: #{gat_policy_forward.11} parent=0 // pred_check_branch
    %265 = sbr.rel (0) target = $region37
  $region36: #{gat_policy_forward.11} parent=0 // pred_region
    _
  $region37: #{gat_policy_forward.11} parent=0 // pred_fallthru
    _
  // Predicated region
  $region38: #{gat_policy_forward.11} parent=0 // pred_check
    _
  $region39: #{gat_policy_forward.11} parent=0 // pred_check_branch
    %267 = sbr.rel (0) target = $region41
  $region40: #{gat_policy_forward.11} parent=0 // pred_region
    _
  $region41: #{gat_policy_forward.11} parent=0 // pred_fallthru
    _
  // Predicated region
  $region42: #{gat_policy_forward.11} parent=0 // pred_check
    _
  $region43: #{gat_policy_forward.11} parent=0 // pred_check_branch
    %269 = sbr.rel (0) target = $region45
  $region44: #{gat_policy_forward.11} parent=0 // pred_region
    _
  $region45: #{gat_policy_forward.11} parent=0 // pred_fallthru
    _
  // Predicated region
  $region46: #{gat_policy_forward.11} parent=0 // pred_check
    _
  $region47: #{gat_policy_forward.11} parent=0 // pred_check_branch
    %271 = sbr.rel (0) target = $region49
  $region48: #{gat_policy_forward.11} parent=0 // pred_region
    _
  $region49: #{gat_policy_forward.11} parent=0 // pred_fallthru
    _
  // Predicated region
  $region50: #{gat_policy_forward.11} parent=0 // pred_check
    _
  $region51: #{gat_policy_forward.11} parent=0 // pred_check_branch
    %273 = sbr.rel (0) target = $region53
  $region52: #{gat_policy_forward.11} parent=0 // pred_region
    _
  $region53: #{gat_policy_forward.11} parent=0 // pred_fallthru
    _
  // Predicated region
  $region54: #{gat_policy_forward.11} parent=0 // pred_check
    _
  $region55: #{gat_policy_forward.11} parent=0 // pred_check_branch
    %275 = sbr.rel (0) target = $region57
  $region56: #{gat_policy_forward.11} parent=0 // pred_region
    _
  $region57: #{gat_policy_forward.11} parent=0 // pred_fallthru
    _
  // Predicated region
  $region58: #{gat_policy_forward.11} parent=0 // pred_check
    _
  $region59: #{gat_policy_forward.11} parent=0 // pred_check_branch
    %277 = sbr.rel (0) target = $region61
  $region60: #{gat_policy_forward.11} parent=0 // pred_region
    _
  $region61: #{gat_policy_forward.11} parent=0 // pred_fallthru
    _
  // Predicated region
  $region62: #{gat_policy_forward.11} parent=0 // pred_check
    _
  $region63: #{gat_policy_forward.11} parent=0 // pred_check_branch
    %279 = sbr.rel (0) target = $region65
  $region64: #{gat_policy_forward.11} parent=0 // pred_region
    _
  $region65: #{gat_policy_forward.11} parent=0 // pred_fallthru
    _

// kernel: gat_policy_forward.10
$region0: #{gat_policy_forward.10}
  #allocation0 [shape = 'u32[]', space=smem, size = 0x4, offset = 0x4, fixed_abs, tag = 'smem constant byte address 0x4 - core index']
  #allocation1 [shape = 'u32[72,128]{1,0:T(1,128)}', space=vmem, size = 0x9000, scoped, tag = 'internal scratch']
  %s0 = inlined_call_operand.vmem [shape: f32[20,1], index: 0, kind: input, shape index: {}]
  %s1 = inlined_call_operand.vmem [shape: f32[1,32], index: 1, kind: input, shape index: {}]
  %s2 = inlined_call_operand.vmem [shape: f32[1,32], index: 2, kind: input, shape index: {}]
  %s3 = inlined_call_operand.vmem [shape: f32[20,32], index: 3, kind: output, shape index: {}]
  %s4 = sld [smem:[#allocation0]]
  $region22: #{gat_policy_forward.10} parent=0
    _
  %s6 = ssub.s32 1, %s4
  %s7 = scalar_select 0, %s6, %s4
  // Predicated region
  $region2: #{gat_policy_forward.10} parent=0 // pred_check
    _
  $region3: #{gat_policy_forward.10} parent=0 // pred_check_branch
    %9 = sbr.rel (0) target = $region5
  $region4: #{gat_policy_forward.10} parent=0 // pred_region
    _
  $region5: #{gat_policy_forward.10} parent=0 // pred_fallthru
    _
  // Predicated region
  $region6: #{gat_policy_forward.10} parent=0 // pred_check
    _
  $region7: #{gat_policy_forward.10} parent=0 // pred_check_branch
    %11 = sbr.rel (0) target = $region9
  $region8: #{gat_policy_forward.10} parent=0 // pred_region
    _
  $region9: #{gat_policy_forward.10} parent=0 // pred_fallthru
    _
  // Predicated region
  $region10: #{gat_policy_forward.10} parent=0 // pred_check
    _
  $region11: #{gat_policy_forward.10} parent=0 // pred_check_branch
    %13 = sbr.rel (0) target = $region13
  $region12: #{gat_policy_forward.10} parent=0 // pred_region
    _
  $region13: #{gat_policy_forward.10} parent=0 // pred_fallthru
    _
  %v14 = vld [vmem:[%s0] sm:$0xff]
  %v15 = vld [vmem:[%s0 + $0x8] sm:$0xff]
  %v16 = vld [vmem:[%s0 + $0x10] sm:$0xf]
  %v17 = vld [vmem:[%s1] sm:$0x1]
  %v18 = vld [vmem:[%s2] sm:$0x1]
  %v20 = vperm.slane %v18, 0
  %vm22 = vcmask 7168
  %v24 = vsel %vm22, %v14, 0
  %v27 = vsel %vm22, %v15, 0
  %v30 = vsel %vm22, %v16, 0
  %vm32 = vcmask 1040384
  %v34 = vsel %vm32, %v17, 0
  %36 = vmatpush.msra.mxu0 0.0
  %37 = vmatpush.msra.mxu0 0.0
  %38 = vmatpush.msra.mxu0 0.0
  %39 = vmatpush.msra.mxu0 0.0
  %40 = vmatpush.msra.mxu0 0.0
  %41 = vmatpush.msra.mxu0 0.0
  %42 = vmatpush.msra.mxu0 0.0
  %43 = vmatpush.msra.mxu0 0.0
  %44 = vmatpush.msra.mxu0 0.0
  %45 = vmatpush.msra.mxu0 0.0
  %46 = vmatpush.msra.mxu0 0.0
  %47 = vmatpush.msra.mxu0 0.0
  %48 = vmatpush.msra.mxu0 0.0
  %49 = vmatpush.msra.mxu0 0.0
  %50 = vmatpush.msra.mxu0 0.0
  %51 = vmatpush.msra.mxu0 %v34
  %52 = vmatmul.f32.gmra.mxu0 %v24
  %v53 = vpop.f32.mrf.mxu0
  %v54 = vadd.f32 %v20, %v53
  %55 = vmatmul.f32.gmra.mxu0 %v27
  %v56 = vpop.f32.mrf.mxu0
  %v57 = vadd.f32 %v20, %v56
  %58 = vmatmul.f32.gmra.mxu0 %v30
  %v59 = vpop.f32.mrf.mxu0
  %v60 = vadd.f32 %v20, %v59
  %61 = vdwg.mxu0
  %vm62 = vcmask 261120
  %63 = vst.msk [vmem:[%s3] sm:$0xff] %vm62, %v54
  %64 = vst.msk [vmem:[%s3 + $0x8] sm:$0xff] %vm62, %v57
  %vm65 = vcmask 257024
  %66 = vst.msk [vmem:[%s3 + $0x10] sm:$0xf] %vm65, %v60
  // Predicated region
  $region14: #{gat_policy_forward.10} parent=0 // pred_check
    _
  $region15: #{gat_policy_forward.10} parent=0 // pred_check_branch
    %68 = sbr.rel (0) target = $region17
  $region16: #{gat_policy_forward.10} parent=0 // pred_region
    _
  $region17: #{gat_policy_forward.10} parent=0 // pred_fallthru
    _
  // Predicated region
  $region18: #{gat_policy_forward.10} parent=0 // pred_check
    _
  $region19: #{gat_policy_forward.10} parent=0 // pred_check_branch
    %70 = sbr.rel (0) target = $region21
  $region20: #{gat_policy_forward.10} parent=0 // pred_region
    _
  $region21: #{gat_policy_forward.10} parent=0 // pred_fallthru
    _

// kernel: gat_policy_forward.9
$region0: #{gat_policy_forward.9}
  #allocation0 [shape = 'u32[]', space=smem, size = 0x4, offset = 0x4, fixed_abs, tag = 'smem constant byte address 0x4 - core index']
  #allocation1 [shape = 'u32[72,128]{1,0:T(1,128)}', space=vmem, size = 0x9000, scoped, tag = 'internal scratch']
  %s0 = inlined_call_operand.vmem [shape: f32[10,19], index: 0, kind: input, shape index: {}]
  %s1 = inlined_call_operand.vmem [shape: f32[19,32], index: 1, kind: input, shape index: {}]
  %s2 = inlined_call_operand.vmem [shape: f32[1,32], index: 2, kind: input, shape index: {}]
  %s3 = inlined_call_operand.vmem [shape: f32[32,32], index: 3, kind: input, shape index: {}]
  %s4 = inlined_call_operand.vmem [shape: f32[1,32], index: 4, kind: input, shape index: {}]
  %s5 = inlined_call_operand.vmem [shape: f32[10,32], index: 5, kind: output, shape index: {}]
  %s6 = sld [smem:[#allocation0]]
  $region30: #{gat_policy_forward.9} parent=0
    _
  %s8 = ssub.s32 1, %s6
  %s9 = scalar_select 0, %s8, %s6
  // Predicated region
  $region2: #{gat_policy_forward.9} parent=0 // pred_check
    _
  $region3: #{gat_policy_forward.9} parent=0 // pred_check_branch
    %11 = sbr.rel (0) target = $region5
  $region4: #{gat_policy_forward.9} parent=0 // pred_region
    _
  $region5: #{gat_policy_forward.9} parent=0 // pred_fallthru
    _
  // Predicated region
  $region6: #{gat_policy_forward.9} parent=0 // pred_check
    _
  $region7: #{gat_policy_forward.9} parent=0 // pred_check_branch
    %13 = sbr.rel (0) target = $region9
  $region8: #{gat_policy_forward.9} parent=0 // pred_region
    _
  $region9: #{gat_policy_forward.9} parent=0 // pred_fallthru
    _
  // Predicated region
  $region10: #{gat_policy_forward.9} parent=0 // pred_check
    _
  $region11: #{gat_policy_forward.9} parent=0 // pred_check_branch
    %15 = sbr.rel (0) target = $region13
  $region12: #{gat_policy_forward.9} parent=0 // pred_region
    _
  $region13: #{gat_policy_forward.9} parent=0 // pred_fallthru
    _
  // Predicated region
  $region14: #{gat_policy_forward.9} parent=0 // pred_check
    _
  $region15: #{gat_policy_forward.9} parent=0 // pred_check_branch
    %17 = sbr.rel (0) target = $region17
  $region16: #{gat_policy_forward.9} parent=0 // pred_region
    _
  $region17: #{gat_policy_forward.9} parent=0 // pred_fallthru
    _
  // Predicated region
  $region18: #{gat_policy_forward.9} parent=0 // pred_check
    _
  $region19: #{gat_policy_forward.9} parent=0 // pred_check_branch
    %19 = sbr.rel (0) target = $region21
  $region20: #{gat_policy_forward.9} parent=0 // pred_region
    _
  $region21: #{gat_policy_forward.9} parent=0 // pred_fallthru
    _
  %v20 = vld [vmem:[%s0] sm:$0xff]
  %v21 = vld [vmem:[%s0 + $0x8] sm:$0x3]
  %v22 = vld [vmem:[%s1] sm:$0xff]
  %v23 = vld [vmem:[%s1 + $0x8] sm:$0xff]
  %v24 = vld [vmem:[%s1 + $0x10] sm:$0x7]
  %v25 = vld [vmem:[%s2] sm:$0x1]
  %v27 = vperm.slane %v25, 0
  %vm29 = vcmask 154624
  %v31 = vsel %vm29, %v20, 0
  %v34 = vsel %vm29, %v21, 0
  %vm36 = vcmask 1042432
  %v38 = vsel %vm36, %v24, 0
  %40 = vmatpush.msra.mxu0 0.0
  %41 = vmatpush.msra.mxu0 0.0
  %42 = vmatpush.msra.mxu0 0.0
  %43 = vmatpush.msra.mxu0 0.0
  %44 = vmatpush.msra.mxu0 0.0
  %45 = vmatpush.msra.mxu0 0.0
  %46 = vmatpush.msra.mxu0 0.0
  %47 = vmatpush.msra.mxu0 0.0
  %48 = vmatpush.msra.mxu0 0.0
  %49 = vmatpush.msra.mxu0 0.0
  %50 = vmatpush.msra.mxu0 0.0
  %51 = vmatpush.msra.mxu0 0.0
  %52 = vmatpush.msra.mxu0 0.0
  %53 = vmatpush.msra.mxu0 %v38
  %54 = vmatpush.msra.mxu0 %v23
  %55 = vmatpush.msra.mxu0 %v22
  %56 = vmatmul.f32.gmra.mxu0 %v31
  %v57 = vpop.f32.mrf.mxu0
  %v58 = vadd.f32 %v27, %v57
  %59 = vmatmul.f32.gmra.mxu0 %v34
  %v60 = vpop.f32.mrf.mxu0
  %v61 = vadd.f32 %v27, %v60
  %62 = vdwg.mxu0
  %v63 = vmax.f32 %v58, 0.0
  %v64 = vmax.f32 %v61, 0.0
  %v65 = vld [vmem:[%s3] sm:$0xff]
  %v66 = vld [vmem:[%s3 + $0x8] sm:$0xff]
  %v67 = vld [vmem:[%s3 + $0x10] sm:$0xff]
  %v68 = vld [vmem:[%s3 + $0x18] sm:$0xff]
  %v69 = vld [vmem:[%s4] sm:$0x1]
  %v71 = vperm.slane %v69, 0
  %vm73 = vcmask 261120
  %v75 = vsel %vm73, %v63, 0
  %v78 = vsel %vm73, %v64, 0
  %80 = vmatpush.msra.mxu0 0.0
  %81 = vmatpush.msra.mxu0 0.0
  %82 = vmatpush.msra.mxu0 0.0
  %83 = vmatpush.msra.mxu0 0.0
  %84 = vmatpush.msra.mxu0 0.0
  %85 = vmatpush.msra.mxu0 0.0
  %86 = vmatpush.msra.mxu0 0.0
  %87 = vmatpush.msra.mxu0 0.0
  %88 = vmatpush.msra.mxu0 0.0
  %89 = vmatpush.msra.mxu0 0.0
  %90 = vmatpush.msra.mxu0 0.0
  %91 = vmatpush.msra.mxu0 0.0
  %92 = vmatpush.msra.mxu0 %v68
  %93 = vmatpush.msra.mxu0 %v67
  %94 = vmatpush.msra.mxu0 %v66
  %95 = vmatpush.msra.mxu0 %v65
  %96 = vmatmul.f32.gmra.mxu0 %v75
  %v97 = vpop.f32.mrf.mxu0
  %v98 = vadd.f32 %v71, %v97
  %99 = vmatmul.f32.gmra.mxu0 %v78
  %v100 = vpop.f32.mrf.mxu0
  %v101 = vadd.f32 %v71, %v100
  %102 = vdwg.mxu0
  %v103 = vmax.f32 %v98, 0.0
  %v104 = vmax.f32 %v101, 0.0
  %105 = vst.msk [vmem:[%s5] sm:$0xff] %vm73, %v103
  %vm106 = vcmask 254976
  %107 = vst.msk [vmem:[%s5 + $0x8] sm:$0x3] %vm106, %v104
  // Predicated region
  $region22: #{gat_policy_forward.9} parent=0 // pred_check
    _
  $region23: #{gat_policy_forward.9} parent=0 // pred_check_branch
    %109 = sbr.rel (0) target = $region25
  $region24: #{gat_policy_forward.9} parent=0 // pred_region
    _
  $region25: #{gat_policy_forward.9} parent=0 // pred_fallthru
    _
  // Predicated region
  $region26: #{gat_policy_forward.9} parent=0 // pred_check
    _
  $region27: #{gat_policy_forward.9} parent=0 // pred_check_branch
    %111 = sbr.rel (0) target = $region29
  $region28: #{gat_policy_forward.9} parent=0 // pred_region
    _
  $region29: #{gat_policy_forward.9} parent=0 // pred_fallthru
    _

// kernel: gat_policy_forward.13
$region0: #{gat_policy_forward.13}
  #allocation0 [shape = 'u32[]', space=smem, size = 0x4, offset = 0x4, fixed_abs, tag = 'smem constant byte address 0x4 - core index']
  #allocation1 [shape = 'u32[72,128]{1,0:T(1,128)}', space=vmem, size = 0x9000, scoped, tag = 'internal scratch']
  %s0 = inlined_call_operand.vmem [shape: f32[6,32], index: 0, kind: input, shape index: {}]
  %s1 = inlined_call_operand.vmem [shape: f32[10,32], index: 1, kind: input, shape index: {}]
  %s2 = inlined_call_operand.vmem [shape: f32[20,32], index: 2, kind: input, shape index: {}]
  %s3 = inlined_call_operand.vmem [shape: f32[32,64], index: 3, kind: input, shape index: {}]
  %s4 = inlined_call_operand.vmem [shape: f32[32,64], index: 4, kind: input, shape index: {}]
  %s5 = inlined_call_operand.vmem [shape: f32[64,2], index: 5, kind: input, shape index: {}]
  %s6 = inlined_call_operand.vmem [shape: f32[64,2], index: 6, kind: input, shape index: {}]
  %s7 = inlined_call_operand.vmem [shape: f32[64,2], index: 7, kind: input, shape index: {}]
  %s8 = inlined_call_operand.vmem [shape: f32[6,64], index: 8, kind: output, shape index: {0}]
  %s9 = inlined_call_operand.vmem [shape: f32[6,2], index: 9, kind: output, shape index: {1}]
  %s10 = inlined_call_operand.vmem [shape: f32[10,2], index: 10, kind: output, shape index: {2}]
  %s11 = inlined_call_operand.vmem [shape: f32[20,2], index: 11, kind: output, shape index: {3}]
  %12 = xla_tuple %s8, %s9, %s10, %s11
  %s13 = sld [smem:[#allocation0]]
  $region66: #{gat_policy_forward.13} parent=0
    _
  %s15 = ssub.s32 1, %s13
  %s16 = scalar_select 0, %s15, %s13
  // Predicated region
  $region2: #{gat_policy_forward.13} parent=0 // pred_check
    _
  $region3: #{gat_policy_forward.13} parent=0 // pred_check_branch
    %18 = sbr.rel (0) target = $region5
  $region4: #{gat_policy_forward.13} parent=0 // pred_region
    _
  $region5: #{gat_policy_forward.13} parent=0 // pred_fallthru
    _
  // Predicated region
  $region6: #{gat_policy_forward.13} parent=0 // pred_check
    _
  $region7: #{gat_policy_forward.13} parent=0 // pred_check_branch
    %20 = sbr.rel (0) target = $region9
  $region8: #{gat_policy_forward.13} parent=0 // pred_region
    _
  $region9: #{gat_policy_forward.13} parent=0 // pred_fallthru
    _
  // Predicated region
  $region10: #{gat_policy_forward.13} parent=0 // pred_check
    _
  $region11: #{gat_policy_forward.13} parent=0 // pred_check_branch
    %22 = sbr.rel (0) target = $region13
  $region12: #{gat_policy_forward.13} parent=0 // pred_region
    _
  $region13: #{gat_policy_forward.13} parent=0 // pred_fallthru
    _
  // Predicated region
  $region14: #{gat_policy_forward.13} parent=0 // pred_check
    _
  $region15: #{gat_policy_forward.13} parent=0 // pred_check_branch
    %24 = sbr.rel (0) target = $region17
  $region16: #{gat_policy_forward.13} parent=0 // pred_region
    _
  $region17: #{gat_policy_forward.13} parent=0 // pred_fallthru
    _
  // Predicated region
  $region18: #{gat_policy_forward.13} parent=0 // pred_check
    _
  $region19: #{gat_policy_forward.13} parent=0 // pred_check_branch
    %26 = sbr.rel (0) target = $region21
  $region20: #{gat_policy_forward.13} parent=0 // pred_region
    _
  $region21: #{gat_policy_forward.13} parent=0 // pred_fallthru
    _
  // Predicated region
  $region22: #{gat_policy_forward.13} parent=0 // pred_check
    _
  $region23: #{gat_policy_forward.13} parent=0 // pred_check_branch
    %28 = sbr.rel (0) target = $region25
  $region24: #{gat_policy_forward.13} parent=0 // pred_region
    _
  $region25: #{gat_policy_forward.13} parent=0 // pred_fallthru
    _
  // Predicated region
  $region26: #{gat_policy_forward.13} parent=0 // pred_check
    _
  $region27: #{gat_policy_forward.13} parent=0 // pred_check_branch
    %30 = sbr.rel (0) target = $region29
  $region28: #{gat_policy_forward.13} parent=0 // pred_region
    _
  $region29: #{gat_policy_forward.13} parent=0 // pred_fallthru
    _
  // Predicated region
  $region30: #{gat_policy_forward.13} parent=0 // pred_check
    _
  $region31: #{gat_policy_forward.13} parent=0 // pred_check_branch
    %32 = sbr.rel (0) target = $region33
  $region32: #{gat_policy_forward.13} parent=0 // pred_region
    _
  $region33: #{gat_policy_forward.13} parent=0 // pred_fallthru
    _
  %v33 = vld [vmem:[%s0] sm:$0x3f]
  %v34 = vld [vmem:[%s3] sm:$0xff]
  %v35 = vld [vmem:[%s3 + $0x8] sm:$0xff]
  %v36 = vld [vmem:[%s3 + $0x10] sm:$0xff]
  %v37 = vld [vmem:[%s3 + $0x18] sm:$0xff]
  %vm38 = vcmask 261120
  %v40 = vsel %vm38, %v33, 0
  %42 = vmatpush.msra.mxu0 0.0
  %43 = vmatpush.msra.mxu0 0.0
  %44 = vmatpush.msra.mxu0 0.0
  %45 = vmatpush.msra.mxu0 0.0
  %46 = vmatpush.msra.mxu0 0.0
  %47 = vmatpush.msra.mxu0 0.0
  %48 = vmatpush.msra.mxu0 0.0
  %49 = vmatpush.msra.mxu0 0.0
  %50 = vmatpush.msra.mxu0 0.0
  %51 = vmatpush.msra.mxu0 0.0
  %52 = vmatpush.msra.mxu0 0.0
  %53 = vmatpush.msra.mxu0 0.0
  %54 = vmatpush.msra.mxu0 %v37
  %55 = vmatpush.msra.mxu0 %v36
  %56 = vmatpush.msra.mxu0 %v35
  %57 = vmatpush.msra.mxu0 %v34
  %58 = vmatmul.f32.gmra.mxu0 %v40
  %v59 = vpop.f32.mrf.mxu0
  %v60 = vadd.f32 0.0, %v59
  %61 = vdwg.mxu0
  %vm62 = vcmask 521216
  %63 = vst.msk [vmem:[%s8] sm:$0x3f] %vm62, %v60
  %v64 = vld [vmem:[%s5] sm:$0xff]
  %v65 = vld [vmem:[%s5 + $0x8] sm:$0xff]
  %v66 = vld [vmem:[%s5 + $0x10] sm:$0xff]
  %v67 = vld [vmem:[%s5 + $0x18] sm:$0xff]
  %v68 = vld [vmem:[%s5 + $0x20] sm:$0xff]
  %v69 = vld [vmem:[%s5 + $0x28] sm:$0xff]
  %v70 = vld [vmem:[%s5 + $0x30] sm:$0xff]
  %v71 = vld [vmem:[%s5 + $0x38] sm:$0xff]
  %vm72 = vcmask 523264
  %v74 = vsel %vm72, %v60, 0
  %76 = vmatpush.msra.mxu0 0.0
  %77 = vmatpush.msra.mxu0 0.0
  %78 = vmatpush.msra.mxu0 0.0
  %79 = vmatpush.msra.mxu0 0.0
  %80 = vmatpush.msra.mxu0 0.0
  %81 = vmatpush.msra.mxu0 0.0
  %82 = vmatpush.msra.mxu0 0.0
  %83 = vmatpush.msra.mxu0 0.0
  %84 = vmatpush.msra.mxu0 %v71
  %85 = vmatpush.msra.mxu0 %v70
  %86 = vmatpush.msra.mxu0 %v69
  %87 = vmatpush.msra.mxu0 %v68
  %88 = vmatpush.msra.mxu0 %v67
  %89 = vmatpush.msra.mxu0 %v66
  %90 = vmatpush.msra.mxu0 %v65
  %91 = vmatpush.msra.mxu0 %v64
  %92 = vmatmul.f32.gmra.mxu0 %v74
  %v93 = vpop.f32.mrf.mxu0
  %v94 = vadd.f32 0.0, %v93
  %95 = vdwg.mxu0
  %vm96 = vcmask 13312
  %97 = vst.msk [vmem:[%s9] sm:$0x3f] %vm96, %v94
  %v98 = vld [vmem:[%s1] sm:$0xff]
  %v99 = vld [vmem:[%s1 + $0x8] sm:$0x3]
  %v100 = vld [vmem:[%s3] sm:$0xff]
  %v101 = vld [vmem:[%s3 + $0x8] sm:$0xff]
  %v102 = vld [vmem:[%s3 + $0x10] sm:$0xff]
  %v103 = vld [vmem:[%s3 + $0x18] sm:$0xff]
  %v105 = vsel %vm38, %v98, 0
  %v108 = vsel %vm38, %v99, 0
  %110 = vmatpush.msra.mxu0 0.0
  %111 = vmatpush.msra.mxu0 0.0
  %112 = vmatpush.msra.mxu0 0.0
  %113 = vmatpush.msra.mxu0 0.0
  %114 = vmatpush.msra.mxu0 0.0
  %115 = vmatpush.msra.mxu0 0.0
  %116 = vmatpush.msra.mxu0 0.0
  %117 = vmatpush.msra.mxu0 0.0
  %118 = vmatpush.msra.mxu0 0.0
  %119 = vmatpush.msra.mxu0 0.0
  %120 = vmatpush.msra.mxu0 0.0
  %121 = vmatpush.msra.mxu0 0.0
  %122 = vmatpush.msra.mxu0 %v103
  %123 = vmatpush.msra.mxu0 %v102
  %124 = vmatpush.msra.mxu0 %v101
  %125 = vmatpush.msra.mxu0 %v100
  %126 = vmatmul.f32.gmra.mxu0 %v105
  %v127 = vpop.f32.mrf.mxu0
  %v128 = vadd.f32 0.0, %v127
  %129 = vmatmul.f32.gmra.mxu0 %v108
  %v130 = vpop.f32.mrf.mxu0
  %v131 = vadd.f32 0.0, %v130
  %132 = vdwg.mxu0
  %v133 = vld [vmem:[%s6] sm:$0xff]
  %v134 = vld [vmem:[%s6 + $0x8] sm:$0xff]
  %v135 = vld [vmem:[%s6 + $0x10] sm:$0xff]
  %v136 = vld [vmem:[%s6 + $0x18] sm:$0xff]
  %v137 = vld [vmem:[%s6 + $0x20] sm:$0xff]
  %v138 = vld [vmem:[%s6 + $0x28] sm:$0xff]
  %v139 = vld [vmem:[%s6 + $0x30] sm:$0xff]
  %v140 = vld [vmem:[%s6 + $0x38] sm:$0xff]
  %v142 = vsel %vm72, %v128, 0
  %v145 = vsel %vm72, %v131, 0
  %147 = vmatpush.msra.mxu0 0.0
  %148 = vmatpush.msra.mxu0 0.0
  %149 = vmatpush.msra.mxu0 0.0
  %150 = vmatpush.msra.mxu0 0.0
  %151 = vmatpush.msra.mxu0 0.0
  %152 = vmatpush.msra.mxu0 0.0
  %153 = vmatpush.msra.mxu0 0.0
  %154 = vmatpush.msra.mxu0 0.0
  %155 = vmatpush.msra.mxu0 %v140
  %156 = vmatpush.msra.mxu0 %v139
  %157 = vmatpush.msra.mxu0 %v138
  %158 = vmatpush.msra.mxu0 %v137
  %159 = vmatpush.msra.mxu0 %v136
  %160 = vmatpush.msra.mxu0 %v135
  %161 = vmatpush.msra.mxu0 %v134
  %162 = vmatpush.msra.mxu0 %v133
  %163 = vmatmul.f32.gmra.mxu0 %v142
  %v164 = vpop.f32.mrf.mxu0
  %v165 = vadd.f32 0.0, %v164
  %166 = vmatmul.f32.gmra.mxu0 %v145
  %v167 = vpop.f32.mrf.mxu0
  %v168 = vadd.f32 0.0, %v167
  %169 = vdwg.mxu0
  %vm170 = vcmask 15360
  %171 = vst.msk [vmem:[%s10] sm:$0xff] %vm170, %v165
  %vm172 = vcmask 9216
  %173 = vst.msk [vmem:[%s10 + $0x8] sm:$0x3] %vm172, %v168
  %v174 = vld [vmem:[%s2] sm:$0xff]
  %v175 = vld [vmem:[%s2 + $0x8] sm:$0xff]
  %v176 = vld [vmem:[%s2 + $0x10] sm:$0xf]
  %v177 = vld [vmem:[%s4] sm:$0xff]
  %v178 = vld [vmem:[%s4 + $0x8] sm:$0xff]
  %v179 = vld [vmem:[%s4 + $0x10] sm:$0xff]
  %v180 = vld [vmem:[%s4 + $0x18] sm:$0xff]
  %v182 = vsel %vm38, %v174, 0
  %v185 = vsel %vm38, %v175, 0
  %v188 = vsel %vm38, %v176, 0
  %190 = vmatpush.msra.mxu0 0.0
  %191 = vmatpush.msra.mxu0 0.0
  %192 = vmatpush.msra.mxu0 0.0
  %193 = vmatpush.msra.mxu0 0.0
  %194 = vmatpush.msra.mxu0 0.0
  %195 = vmatpush.msra.mxu0 0.0
  %196 = vmatpush.msra.mxu0 0.0
  %197 = vmatpush.msra.mxu0 0.0
  %198 = vmatpush.msra.mxu0 0.0
  %199 = vmatpush.msra.mxu0 0.0
  %200 = vmatpush.msra.mxu0 0.0
  %201 = vmatpush.msra.mxu0 0.0
  %202 = vmatpush.msra.mxu0 %v180
  %203 = vmatpush.msra.mxu0 %v179
  %204 = vmatpush.msra.mxu0 %v178
  %205 = vmatpush.msra.mxu0 %v177
  %206 = vmatmul.f32.gmra.mxu0 %v182
  %v207 = vpop.f32.mrf.mxu0
  %v208 = vadd.f32 0.0, %v207
  %209 = vmatmul.f32.gmra.mxu0 %v185
  %v210 = vpop.f32.mrf.mxu0
  %v211 = vadd.f32 0.0, %v210
  %212 = vmatmul.f32.gmra.mxu0 %v188
  %v213 = vpop.f32.mrf.mxu0
  %v214 = vadd.f32 0.0, %v213
  %215 = vdwg.mxu0
  %v216 = vld [vmem:[%s7] sm:$0xff]
  %v217 = vld [vmem:[%s7 + $0x8] sm:$0xff]
  %v218 = vld [vmem:[%s7 + $0x10] sm:$0xff]
  %v219 = vld [vmem:[%s7 + $0x18] sm:$0xff]
  %v220 = vld [vmem:[%s7 + $0x20] sm:$0xff]
  %v221 = vld [vmem:[%s7 + $0x28] sm:$0xff]
  %v222 = vld [vmem:[%s7 + $0x30] sm:$0xff]
  %v223 = vld [vmem:[%s7 + $0x38] sm:$0xff]
  %v225 = vsel %vm72, %v208, 0
  %v228 = vsel %vm72, %v211, 0
  %v231 = vsel %vm72, %v214, 0
  %233 = vmatpush.msra.mxu0 0.0
  %234 = vmatpush.msra.mxu0 0.0
  %235 = vmatpush.msra.mxu0 0.0
  %236 = vmatpush.msra.mxu0 0.0
  %237 = vmatpush.msra.mxu0 0.0
  %238 = vmatpush.msra.mxu0 0.0
  %239 = vmatpush.msra.mxu0 0.0
  %240 = vmatpush.msra.mxu0 0.0
  %241 = vmatpush.msra.mxu0 %v223
  %242 = vmatpush.msra.mxu0 %v222
  %243 = vmatpush.msra.mxu0 %v221
  %244 = vmatpush.msra.mxu0 %v220
  %245 = vmatpush.msra.mxu0 %v219
  %246 = vmatpush.msra.mxu0 %v218
  %247 = vmatpush.msra.mxu0 %v217
  %248 = vmatpush.msra.mxu0 %v216
  %249 = vmatmul.f32.gmra.mxu0 %v225
  %v250 = vpop.f32.mrf.mxu0
  %v251 = vadd.f32 0.0, %v250
  %252 = vmatmul.f32.gmra.mxu0 %v228
  %v253 = vpop.f32.mrf.mxu0
  %v254 = vadd.f32 0.0, %v253
  %255 = vmatmul.f32.gmra.mxu0 %v231
  %v256 = vpop.f32.mrf.mxu0
  %v257 = vadd.f32 0.0, %v256
  %258 = vdwg.mxu0
  %259 = vst.msk [vmem:[%s11] sm:$0xff] %vm170, %v251
  %260 = vst.msk [vmem:[%s11 + $0x8] sm:$0xff] %vm170, %v254
  %vm261 = vcmask 11264
  %262 = vst.msk [vmem:[%s11 + $0x10] sm:$0xf] %vm261, %v257
  // Predicated region
  $region34: #{gat_policy_forward.13} parent=0 // pred_check
    _
  $region35: #{gat_policy_forward.13} parent=0 // pred_check_branch
    %264 = sbr.rel (0) target = $region37
  $region36: #{gat_policy_forward.13} parent=0 // pred_region
    _
  $region37: #{gat_policy_forward.13} parent=0 // pred_fallthru
    _
  // Predicated region
  $region38: #{gat_policy_forward.13} parent=0 // pred_check
    _
  $region39: #{gat_policy_forward.13} parent=0 // pred_check_branch
    %266 = sbr.rel (0) target = $region41
  $region40: #{gat_policy_forward.13} parent=0 // pred_region
    _
  $region41: #{gat_policy_forward.13} parent=0 // pred_fallthru
    _
  // Predicated region
  $region42: #{gat_policy_forward.13} parent=0 // pred_check
    _
  $region43: #{gat_policy_forward.13} parent=0 // pred_check_branch
    %268 = sbr.rel (0) target = $region45
  $region44: #{gat_policy_forward.13} parent=0 // pred_region
    _
  $region45: #{gat_policy_forward.13} parent=0 // pred_fallthru
    _
  // Predicated region
  $region46: #{gat_policy_forward.13} parent=0 // pred_check
    _
  $region47: #{gat_policy_forward.13} parent=0 // pred_check_branch
    %270 = sbr.rel (0) target = $region49
  $region48: #{gat_policy_forward.13} parent=0 // pred_region
    _
  $region49: #{gat_policy_forward.13} parent=0 // pred_fallthru
    _
  // Predicated region
  $region50: #{gat_policy_forward.13} parent=0 // pred_check
    _
  $region51: #{gat_policy_forward.13} parent=0 // pred_check_branch
    %272 = sbr.rel (0) target = $region53
  $region52: #{gat_policy_forward.13} parent=0 // pred_region
    _
  $region53: #{gat_policy_forward.13} parent=0 // pred_fallthru
    _
  // Predicated region
  $region54: #{gat_policy_forward.13} parent=0 // pred_check
    _
  $region55: #{gat_policy_forward.13} parent=0 // pred_check_branch
    %274 = sbr.rel (0) target = $region57
  $region56: #{gat_policy_forward.13} parent=0 // pred_region
    _
  $region57: #{gat_policy_forward.13} parent=0 // pred_fallthru
    _
  // Predicated region
  $region58: #{gat_policy_forward.13} parent=0 // pred_check
    _
  $region59: #{gat_policy_forward.13} parent=0 // pred_check_branch
    %276 = sbr.rel (0) target = $region61
  $region60: #{gat_policy_forward.13} parent=0 // pred_region
    _
  $region61: #{gat_policy_forward.13} parent=0 // pred_fallthru
    _
  // Predicated region
  $region62: #{gat_policy_forward.13} parent=0 // pred_check
    _
  $region63: #{gat_policy_forward.13} parent=0 // pred_check_branch
    %278 = sbr.rel (0) target = $region65
  $region64: #{gat_policy_forward.13} parent=0 // pred_region
    _
  $region65: #{gat_policy_forward.13} parent=0 // pred_fallthru
    _

// kernel: gat_policy_forward.12
$region0: #{gat_policy_forward.12}
  #allocation0 [shape = 'u32[]', space=smem, size = 0x4, offset = 0x4, fixed_abs, tag = 'smem constant byte address 0x4 - core index']
  #allocation1 [shape = 'u32[72,128]{1,0:T(1,128)}', space=vmem, size = 0x9000, scoped, tag = 'internal scratch']
  #allocation2 [shape = 'f32[2,8,1]{2,1,0:T(8,128)}', space=vmem, size = 0x2000, scoped, tag = 'scratch operand']
  #allocation3 [shape = 'f32[2,8,1]{2,1,0:T(8,128)}', space=vmem, size = 0x2000, scoped, tag = 'scratch operand']
  #allocation4 [shape = 'f32[2,8,32]{2,1,0:T(8,128)}', space=vmem, size = 0x2000, scoped, tag = 'scratch operand']
  %s0 = inlined_call_operand.vmem [shape: f32[2,128,32], index: 0, kind: input, shape index: {}]
  %s1 = inlined_call_operand.vmem [shape: f32[2,1,128], index: 1, kind: input, shape index: {}]
  %s2 = inlined_call_operand.vmem [shape: f32[2,8,1], index: 2, kind: input, shape index: {}]
  %s3 = inlined_call_operand.vmem [shape: f32[2,8,128], index: 3, kind: input, shape index: {}]
  %s4 = inlined_call_operand.vmem [shape: f32[8,32], index: 4, kind: input, shape index: {}]
  %s5 = inlined_call_operand.vmem [shape: f32[1,64], index: 5, kind: input, shape index: {}]
  %s6 = inlined_call_operand.vmem [shape: f32[64,32], index: 6, kind: input, shape index: {}]
  %s7 = inlined_call_operand.vmem [shape: f32[1,32], index: 7, kind: input, shape index: {}]
  %s8 = inlined_call_operand.vmem [shape: f32[32,32], index: 8, kind: input, shape index: {}]
  %s9 = inlined_call_operand.vmem [shape: f32[1,32], index: 9, kind: input, shape index: {}]
  %s10 = inlined_call_operand.vmem [shape: f32[32,32], index: 10, kind: input, shape index: {}]
  %s11 = inlined_call_operand.vmem [shape: f32[32,32], index: 11, kind: input, shape index: {}]
  %s12 = inlined_call_operand.vmem [shape: f32[1,32], index: 12, kind: input, shape index: {}]
  %s13 = inlined_call_operand.vmem [shape: f32[8,32], index: 13, kind: output, shape index: {}]
  %s14 = sld [smem:[#allocation0]]
  $region70: #{gat_policy_forward.12} parent=0
    _
  %s16 = ssub.s32 1, %s14
  %s17 = scalar_select 0, %s16, %s14
  // Predicated region
  $region2: #{gat_policy_forward.12} parent=0 // pred_check
    _
  $region3: #{gat_policy_forward.12} parent=0 // pred_check_branch
    %19 = sbr.rel (0) target = $region5
  $region4: #{gat_policy_forward.12} parent=0 // pred_region
    _
  $region5: #{gat_policy_forward.12} parent=0 // pred_fallthru
    _
  // Predicated region
  $region6: #{gat_policy_forward.12} parent=0 // pred_check
    _
  $region7: #{gat_policy_forward.12} parent=0 // pred_check_branch
    %21 = sbr.rel (0) target = $region9
  $region8: #{gat_policy_forward.12} parent=0 // pred_region
    _
  $region9: #{gat_policy_forward.12} parent=0 // pred_fallthru
    _
  // Predicated region
  $region10: #{gat_policy_forward.12} parent=0 // pred_check
    _
  $region11: #{gat_policy_forward.12} parent=0 // pred_check_branch
    %23 = sbr.rel (0) target = $region13
  $region12: #{gat_policy_forward.12} parent=0 // pred_region
    _
  $region13: #{gat_policy_forward.12} parent=0 // pred_fallthru
    _
  // Predicated region
  $region14: #{gat_policy_forward.12} parent=0 // pred_check
    _
  $region15: #{gat_policy_forward.12} parent=0 // pred_check_branch
    %25 = sbr.rel (0) target = $region17
  $region16: #{gat_policy_forward.12} parent=0 // pred_region
    _
  $region17: #{gat_policy_forward.12} parent=0 // pred_fallthru
    _
  // Predicated region
  $region18: #{gat_policy_forward.12} parent=0 // pred_check
    _
  $region19: #{gat_policy_forward.12} parent=0 // pred_check_branch
    %27 = sbr.rel (0) target = $region21
  $region20: #{gat_policy_forward.12} parent=0 // pred_region
    _
  $region21: #{gat_policy_forward.12} parent=0 // pred_fallthru
    _
  // Predicated region
  $region22: #{gat_policy_forward.12} parent=0 // pred_check
    _
  $region23: #{gat_policy_forward.12} parent=0 // pred_check_branch
    %29 = sbr.rel (0) target = $region25
  $region24: #{gat_policy_forward.12} parent=0 // pred_region
    _
  $region25: #{gat_policy_forward.12} parent=0 // pred_fallthru
    _
  // Predicated region
  $region26: #{gat_policy_forward.12} parent=0 // pred_check
    _
  $region27: #{gat_policy_forward.12} parent=0 // pred_check_branch
    %31 = sbr.rel (0) target = $region29
  $region28: #{gat_policy_forward.12} parent=0 // pred_region
    _
  $region29: #{gat_policy_forward.12} parent=0 // pred_fallthru
    _
  // Predicated region
  $region30: #{gat_policy_forward.12} parent=0 // pred_check
    _
  $region31: #{gat_policy_forward.12} parent=0 // pred_check_branch
    %33 = sbr.rel (0) target = $region33
  $region32: #{gat_policy_forward.12} parent=0 // pred_region
    _
  $region33: #{gat_policy_forward.12} parent=0 // pred_fallthru
    _
  // Predicated region
  $region34: #{gat_policy_forward.12} parent=0 // pred_check
    _
  $region35: #{gat_policy_forward.12} parent=0 // pred_check_branch
    %35 = sbr.rel (0) target = $region37
  $region36: #{gat_policy_forward.12} parent=0 // pred_region
    _
  $region37: #{gat_policy_forward.12} parent=0 // pred_fallthru
    _
  // Predicated region
  $region38: #{gat_policy_forward.12} parent=0 // pred_check
    _
  $region39: #{gat_policy_forward.12} parent=0 // pred_check_branch
    %37 = sbr.rel (0) target = $region41
  $region40: #{gat_policy_forward.12} parent=0 // pred_region
    _
  $region41: #{gat_policy_forward.12} parent=0 // pred_fallthru
    _
  // Predicated region
  $region42: #{gat_policy_forward.12} parent=0 // pred_check
    _
  $region43: #{gat_policy_forward.12} parent=0 // pred_check_branch
    %39 = sbr.rel (0) target = $region45
  $region44: #{gat_policy_forward.12} parent=0 // pred_region
    _
  $region45: #{gat_policy_forward.12} parent=0 // pred_fallthru
    _
  // Predicated region
  $region46: #{gat_policy_forward.12} parent=0 // pred_check
    _
  $region47: #{gat_policy_forward.12} parent=0 // pred_check_branch
    %41 = sbr.rel (0) target = $region49
  $region48: #{gat_policy_forward.12} parent=0 // pred_region
    _
  $region49: #{gat_policy_forward.12} parent=0 // pred_fallthru
    _
  // Predicated region
  $region50: #{gat_policy_forward.12} parent=0 // pred_check
    _
  $region51: #{gat_policy_forward.12} parent=0 // pred_check_branch
    %43 = sbr.rel (0) target = $region53
  $region52: #{gat_policy_forward.12} parent=0 // pred_region
    _
  $region53: #{gat_policy_forward.12} parent=0 // pred_fallthru
    _
  %p44 = scmp.eq.s32.totalorder 0, 0
  // Predicated region
  $region54: #{gat_policy_forward.12} parent=0 // pred_check
    %p45 = pneg %p44
  $region55: #{gat_policy_forward.12} parent=0 // pred_check_branch
    %47 = sbr.rel (%p45) target = $region57
  $region56: #{gat_policy_forward.12} parent=0 // pred_region
    %vm48 = vcmask 7168
    %49 = vst.msk [vmem:[#allocation2] sm:$0xff] %vm48, -1e+30
    %50 = vst.msk [vmem:[#allocation2 + $0x8] sm:$0xff] %vm48, -1e+30
    %51 = vst.msk [vmem:[#allocation3] sm:$0xff] %vm48, 0.0
    %52 = vst.msk [vmem:[#allocation3 + $0x8] sm:$0xff] %vm48, 0.0
    %vm53 = vcmask 261120
    %54 = vst.msk [vmem:[#allocation4] sm:$0xff] %vm53, 0.0
    %55 = vst.msk [vmem:[#allocation4 + $0x8] sm:$0xff] %vm53, 0.0
  $region57: #{gat_policy_forward.12} parent=0 // pred_fallthru
    _
  %v56 = vld [vmem:[%s3] sm:$0xff]
  %vm57 = vcmp.gt.f32.partialorder %v56, -5e+29
  %v58 = vld [vmem:[%s2] sm:$0xff]
  %v59 = vld [vmem:[%s1] sm:$0x1]
  %61 = vset.pattern.permute.xlu0 0
  %62 = vperm.xlu0 %61, %v58
  %v63 = vpop.permute.xlu0 %62
  %v66 = vperm.slane %v59, 0
  %v68 = vadd.f32 %v63, %v66
  %v69 = vadd.f32 %v68, %v56
  %vm70 = vcmp.gt.f32.partialorder %v69, 0.0
  %v71 = vmul.f32 %v69, 0.2
  %v72 = vsel %vm70, %v69, %v71
  %v73 = vsel %vm57, %v72, -1e+30
  %v74 = vld [vmem:[#allocation2] sm:$0xff]
  %75 = vmax.xlane.f32.xlu0 %v73
  %v76 = vpop.xlane.xlu0 %75
  %v77 = vmax.f32 %v74, %v76
  %v78 = vsub.f32 %v74, %v77
  %v79 = vmul.f32 %v78, 1.442695
  %v80 = vpow.pop %v79
  %82 = vset.pattern.permute.xlu0 0
  %83 = vperm.xlu0 %82, %v77
  %v84 = vpop.permute.xlu0 %83
  %v86 = vsub.f32 %v73, %v84
  %v87 = vmul.f32 %v86, 1.442695
  %v88 = vpow.pop %v87
  %v89 = vsel %vm57, %v88, 0.0
  %v90 = vld [vmem:[#allocation3] sm:$0xff]
  %v91 = vmul.f32 %v80, %v90
  %92 = vadd.xlane.f32.xlu0 %v89
  %v93 = vpop.xlane.xlu0 %92
  %v94 = vadd.f32 %v91, %v93
  %vm95 = vcmask 7168
  %96 = vst.msk [vmem:[#allocation3] sm:$0xff] %vm95, %v94
  %v97 = vld [vmem:[#allocation4] sm:$0xff]
  %99 = vset.pattern.permute.xlu0 0
  %100 = vperm.xlu0 %99, %v80
  %v101 = vpop.permute.xlu0 %100
  %v103 = vmul.f32 %v101, %v97
  %v104 = vld [vmem:[%s0] sm:$0xff]
  %v105 = vld [vmem:[%s0 + $0x8] sm:$0xff]
  %v106 = vld [vmem:[%s0 + $0x10] sm:$0xff]
  %v107 = vld [vmem:[%s0 + $0x18] sm:$0xff]
  %v108 = vld [vmem:[%s0 + $0x20] sm:$0xff]
  %v109 = vld [vmem:[%s0 + $0x28] sm:$0xff]
  %v110 = vld [vmem:[%s0 + $0x30] sm:$0xff]
  %v111 = vld [vmem:[%s0 + $0x38] sm:$0xff]
  %v112 = vld [vmem:[%s0 + $0x40] sm:$0xff]
  %v113 = vld [vmem:[%s0 + $0x48] sm:$0xff]
  %v114 = vld [vmem:[%s0 + $0x50] sm:$0xff]
  %v115 = vld [vmem:[%s0 + $0x58] sm:$0xff]
  %v116 = vld [vmem:[%s0 + $0x60] sm:$0xff]
  %v117 = vld [vmem:[%s0 + $0x68] sm:$0xff]
  %v118 = vld [vmem:[%s0 + $0x70] sm:$0xff]
  %v119 = vld [vmem:[%s0 + $0x78] sm:$0xff]
  %120 = vmatpush.msra.mxu0 %v119
  %121 = vmatpush.msra.mxu0 %v118
  %122 = vmatpush.msra.mxu0 %v117
  %123 = vmatpush.msra.mxu0 %v116
  %124 = vmatpush.msra.mxu0 %v115
  %125 = vmatpush.msra.mxu0 %v114
  %126 = vmatpush.msra.mxu0 %v113
  %127 = vmatpush.msra.mxu0 %v112
  %128 = vmatpush.msra.mxu0 %v111
  %129 = vmatpush.msra.mxu0 %v110
  %130 = vmatpush.msra.mxu0 %v109
  %131 = vmatpush.msra.mxu0 %v108
  %132 = vmatpush.msra.mxu0 %v107
  %133 = vmatpush.msra.mxu0 %v106
  %134 = vmatpush.msra.mxu0 %v105
  %135 = vmatpush.msra.mxu0 %v104
  %136 = vmatmul.f32.gmra.mxu0 %v89
  %v137 = vpop.f32.mrf.mxu0
  %v138 = vadd.f32 0.0, %v137
  %139 = vdwg.mxu0
  %v140 = vadd.f32 %v103, %v138
  %vm141 = vcmask 261120
  %142 = vst.msk [vmem:[#allocation4] sm:$0xff] %vm141, %v140
  %143 = vst.msk [vmem:[#allocation2] sm:$0xff] %vm95, %v77
  %s144 = scalar_lea.vmem %s3, 8
  %v145 = vld [vmem:[%s144] sm:$0xff]
  %vm146 = vcmp.gt.f32.partialorder %v145, -5e+29
  %s147 = scalar_lea.vmem %s2, 8
  %v148 = vld [vmem:[%s147] sm:$0xff]
  %s149 = scalar_lea.vmem %s1, 1
  %v150 = vld [vmem:[%s149] sm:$0x1]
  %152 = vset.pattern.permute.xlu0 0
  %153 = vperm.xlu0 %152, %v148
  %v154 = vpop.permute.xlu0 %153
  %v157 = vperm.slane %v150, 0
  %v159 = vadd.f32 %v154, %v157
  %v160 = vadd.f32 %v159, %v145
  %vm161 = vcmp.gt.f32.partialorder %v160, 0.0
  %v162 = vmul.f32 %v160, 0.2
  %v163 = vsel %vm161, %v160, %v162
  %v164 = vsel %vm146, %v163, -1e+30
  %s165 = scalar_lea.vmem [#allocation2], 8
  %v166 = vld [vmem:[%s165] sm:$0xff]
  %167 = vmax.xlane.f32.xlu0 %v164
  %v168 = vpop.xlane.xlu0 %167
  %v169 = vmax.f32 %v166, %v168
  %v170 = vsub.f32 %v166, %v169
  %v171 = vmul.f32 %v170, 1.442695
  %v172 = vpow.pop %v171
  %174 = vset.pattern.permute.xlu0 0
  %175 = vperm.xlu0 %174, %v169
  %v176 = vpop.permute.xlu0 %175
  %v178 = vsub.f32 %v164, %v176
  %v179 = vmul.f32 %v178, 1.442695
  %v180 = vpow.pop %v179
  %v181 = vsel %vm146, %v180, 0.0
  %s182 = scalar_lea.vmem [#allocation3], 8
  %v183 = vld [vmem:[%s182] sm:$0xff]
  %v184 = vmul.f32 %v172, %v183
  %185 = vadd.xlane.f32.xlu0 %v181
  %v186 = vpop.xlane.xlu0 %185
  %v187 = vadd.f32 %v184, %v186
  %188 = vst.msk [vmem:[%s182] sm:$0xff] %vm95, %v187
  %s189 = scalar_lea.vmem [#allocation4], 8
  %v190 = vld [vmem:[%s189] sm:$0xff]
  %192 = vset.pattern.permute.xlu0 0
  %193 = vperm.xlu0 %192, %v172
  %v194 = vpop.permute.xlu0 %193
  %v196 = vmul.f32 %v194, %v190
  %s197 = scalar_lea.vmem %s0, 128
  %v198 = vld [vmem:[%s197] sm:$0xff]
  %v199 = vld [vmem:[%s197 + $0x8] sm:$0xff]
  %v200 = vld [vmem:[%s197 + $0x10] sm:$0xff]
  %v201 = vld [vmem:[%s197 + $0x18] sm:$0xff]
  %v202 = vld [vmem:[%s197 + $0x20] sm:$0xff]
  %v203 = vld [vmem:[%s197 + $0x28] sm:$0xff]
  %v204 = vld [vmem:[%s197 + $0x30] sm:$0xff]
  %v205 = vld [vmem:[%s197 + $0x38] sm:$0xff]
  %v206 = vld [vmem:[%s197 + $0x40] sm:$0xff]
  %v207 = vld [vmem:[%s197 + $0x48] sm:$0xff]
  %v208 = vld [vmem:[%s197 + $0x50] sm:$0xff]
  %v209 = vld [vmem:[%s197 + $0x58] sm:$0xff]
  %v210 = vld [vmem:[%s197 + $0x60] sm:$0xff]
  %v211 = vld [vmem:[%s197 + $0x68] sm:$0xff]
  %v212 = vld [vmem:[%s197 + $0x70] sm:$0xff]
  %v213 = vld [vmem:[%s197 + $0x78] sm:$0xff]
  %214 = vmatpush.msra.mxu0 %v213
  %215 = vmatpush.msra.mxu0 %v212
  %216 = vmatpush.msra.mxu0 %v211
  %217 = vmatpush.msra.mxu0 %v210
  %218 = vmatpush.msra.mxu0 %v209
  %219 = vmatpush.msra.mxu0 %v208
  %220 = vmatpush.msra.mxu0 %v207
  %221 = vmatpush.msra.mxu0 %v206
  %222 = vmatpush.msra.mxu0 %v205
  %223 = vmatpush.msra.mxu0 %v204
  %224 = vmatpush.msra.mxu0 %v203
  %225 = vmatpush.msra.mxu0 %v202
  %226 = vmatpush.msra.mxu0 %v201
  %227 = vmatpush.msra.mxu0 %v200
  %228 = vmatpush.msra.mxu0 %v199
  %229 = vmatpush.msra.mxu0 %v198
  %230 = vmatmul.f32.gmra.mxu0 %v181
  %v231 = vpop.f32.mrf.mxu0
  %v232 = vadd.f32 0.0, %v231
  %233 = vdwg.mxu0
  %v234 = vadd.f32 %v196, %v232
  %235 = vst.msk [vmem:[%s189] sm:$0xff] %vm141, %v234
  %236 = vst.msk [vmem:[%s165] sm:$0xff] %vm95, %v169
  // Predicated region
  $region58: #{gat_policy_forward.12} parent=0 // pred_check
    %p237 = pneg %p44
  $region59: #{gat_policy_forward.12} parent=0 // pred_check_branch
    %239 = sbr.rel (%p237) target = $region61
  $region60: #{gat_policy_forward.12} parent=0 // pred_region
    %v240 = vld [vmem:[%s5] sm:$0x1]
    %v241 = vld [vmem:[%s6] sm:$0xff]
    %v242 = vld [vmem:[%s6 + $0x8] sm:$0xff]
    %v243 = vld [vmem:[%s6 + $0x10] sm:$0xff]
    %v244 = vld [vmem:[%s6 + $0x18] sm:$0xff]
    %v245 = vld [vmem:[%s6 + $0x20] sm:$0xff]
    %v246 = vld [vmem:[%s6 + $0x28] sm:$0xff]
    %v247 = vld [vmem:[%s6 + $0x30] sm:$0xff]
    %v248 = vld [vmem:[%s6 + $0x38] sm:$0xff]
    %v249 = vld [vmem:[%s7] sm:$0x1]
    %v250 = vld [vmem:[#allocation3] sm:$0xff]
    %vm251 = vcmp.gt.f32.partialorder %v250, 0.0
    %v252 = vrcp.pop %v250
    %v253 = vmul.f32 %v250, %v252
    %v254 = vsub.f32 1.0, %v253
    %v255 = vmul.f32 %v252, %v254
    %v256 = vadd.f32 %v252, %v255
    %vm257 = vweird.f32 %v250
    %vm258 = vweird.f32 %v252
    %vm259 = vmor %vm257, %vm258
    %v260 = vsel %vm259, %v252, %v256
    %v261 = vand.u32 2147483647, %v250
    %vm262 = vcmp.eq.f32.partialorder %v261, 8.507059e+37
    %v263 = vand.u32 %v250, 2147483648
    %v264 = vor.u32 1.1754944e-38, %v263
    %v265 = vsel %vm262, %v264, %v260
    %v266 = vmul.f32 1.0, %v265
    %v267 = vsel %vm251, %v266, 0.0
    %v268 = vld [vmem:[#allocation4] sm:$0xff]
    %270 = vset.pattern.permute.xlu0 0
    %271 = vperm.xlu0 %270, %v267
    %v272 = vpop.permute.xlu0 %271
    %v274 = vmul.f32 %v268, %v272
    %v276 = vperm.slane %v240, 0
    %v278 = vadd.f32 %v274, %v276
    %v279 = vmax.f32 %v278, 0.0
    %v281 = vsel %vm141, %v279, 0
    %283 = vmatpush.msra.mxu0 0.0
    %284 = vmatpush.msra.mxu0 0.0
    %285 = vmatpush.msra.mxu0 0.0
    %286 = vmatpush.msra.mxu0 0.0
    %287 = vmatpush.msra.mxu0 0.0
    %288 = vmatpush.msra.mxu0 0.0
    %289 = vmatpush.msra.mxu0 0.0
    %290 = vmatpush.msra.mxu0 0.0
    %291 = vmatpush.msra.mxu0 0.0
    %292 = vmatpush.msra.mxu0 0.0
    %293 = vmatpush.msra.mxu0 0.0
    %294 = vmatpush.msra.mxu0 0.0
    %295 = vmatpush.msra.mxu0 %v244
    %296 = vmatpush.msra.mxu0 %v243
    %297 = vmatpush.msra.mxu0 %v242
    %298 = vmatpush.msra.mxu0 %v241
    %299 = vmatmul.f32.gmra.mxu0 %v281
    %v300 = vpop.f32.mrf.mxu0
    %v301 = vadd.f32 0.0, %v300
    %302 = vdwg.mxu0
    %v304 = vperm.slane %v249, 0
    %v306 = vadd.f32 %v304, %v301
    %v307 = vld [vmem:[%s182] sm:$0xff]
    %vm308 = vcmp.gt.f32.partialorder %v307, 0.0
    %v309 = vrcp.pop %v307
    %v310 = vmul.f32 %v307, %v309
    %v311 = vsub.f32 1.0, %v310
    %v312 = vmul.f32 %v309, %v311
    %v313 = vadd.f32 %v309, %v312
    %vm314 = vweird.f32 %v307
    %vm315 = vweird.f32 %v309
    %vm316 = vmor %vm314, %vm315
    %v317 = vsel %vm316, %v309, %v313
    %v318 = vand.u32 2147483647, %v307
    %vm319 = vcmp.eq.f32.partialorder %v318, 8.507059e+37
    %v320 = vand.u32 %v307, 2147483648
    %v321 = vor.u32 1.1754944e-38, %v320
    %v322 = vsel %vm319, %v321, %v317
    %v323 = vmul.f32 1.0, %v322
    %v324 = vsel %vm308, %v323, 0.0
    %v325 = vld [vmem:[%s189] sm:$0xff]
    %327 = vset.pattern.permute.xlu0 0
    %328 = vperm.xlu0 %327, %v324
    %v329 = vpop.permute.xlu0 %328
    %v331 = vmul.f32 %v325, %v329
    %332 = vrot.lane.b32.xlu0 %v276, 96
    %v333 = vpop.permute.xlu0 %332
    %v335 = vadd.f32 %v331, %v333
    %v336 = vmax.f32 %v335, 0.0
    %v338 = vsel %vm141, %v336, 0
    %340 = vmatpush.msra.mxu0 0.0
    %341 = vmatpush.msra.mxu0 0.0
    %342 = vmatpush.msra.mxu0 0.0
    %343 = vmatpush.msra.mxu0 0.0
    %344 = vmatpush.msra.mxu0 0.0
    %345 = vmatpush.msra.mxu0 0.0
    %346 = vmatpush.msra.mxu0 0.0
    %347 = vmatpush.msra.mxu0 0.0
    %348 = vmatpush.msra.mxu0 0.0
    %349 = vmatpush.msra.mxu0 0.0
    %350 = vmatpush.msra.mxu0 0.0
    %351 = vmatpush.msra.mxu0 0.0
    %352 = vmatpush.msra.mxu0 %v248
    %353 = vmatpush.msra.mxu0 %v247
    %354 = vmatpush.msra.mxu0 %v246
    %355 = vmatpush.msra.mxu0 %v245
    %356 = vmatmul.f32.gmra.mxu0 %v338
    %v357 = vpop.f32.mrf.mxu0
    %v358 = vadd.f32 0.0, %v357
    %359 = vdwg.mxu0
    %v360 = vadd.f32 %v306, %v358
    %v361 = vmax.f32 %v360, 0.0
    %v362 = vld [vmem:[%s8] sm:$0xff]
    %v363 = vld [vmem:[%s8 + $0x8] sm:$0xff]
    %v364 = vld [vmem:[%s8 + $0x10] sm:$0xff]
    %v365 = vld [vmem:[%s8 + $0x18] sm:$0xff]
    %v366 = vld [vmem:[%s9] sm:$0x1]
    %v368 = vperm.slane %v366, 0
    %v371 = vsel %vm141, %v361, 0
    %373 = vmatpush.msra.mxu0 0.0
    %374 = vmatpush.msra.mxu0 0.0
    %375 = vmatpush.msra.mxu0 0.0
    %376 = vmatpush.msra.mxu0 0.0
    %377 = vmatpush.msra.mxu0 0.0
    %378 = vmatpush.msra.mxu0 0.0
    %379 = vmatpush.msra.mxu0 0.0
    %380 = vmatpush.msra.mxu0 0.0
    %381 = vmatpush.msra.mxu0 0.0
    %382 = vmatpush.msra.mxu0 0.0
    %383 = vmatpush.msra.mxu0 0.0
    %384 = vmatpush.msra.mxu0 0.0
    %385 = vmatpush.msra.mxu0 %v365
    %386 = vmatpush.msra.mxu0 %v364
    %387 = vmatpush.msra.mxu0 %v363
    %388 = vmatpush.msra.mxu0 %v362
    %389 = vmatmul.f32.gmra.mxu0 %v371
    %v390 = vpop.f32.mrf.mxu0
    %v391 = vadd.f32 %v368, %v390
    %392 = vdwg.mxu0
    %v393 = vld [vmem:[%s4] sm:$0xff]
    %v394 = vld [vmem:[%s10] sm:$0xff]
    %v395 = vld [vmem:[%s10 + $0x8] sm:$0xff]
    %v396 = vld [vmem:[%s10 + $0x10] sm:$0xff]
    %v397 = vld [vmem:[%s10 + $0x18] sm:$0xff]
    %v398 = vld [vmem:[%s11] sm:$0xff]
    %v399 = vld [vmem:[%s11 + $0x8] sm:$0xff]
    %v400 = vld [vmem:[%s11 + $0x10] sm:$0xff]
    %v401 = vld [vmem:[%s11 + $0x18] sm:$0xff]
    %v403 = vsel %vm141, %v391, 0
    %405 = vmatpush.msra.mxu0 0.0
    %406 = vmatpush.msra.mxu0 0.0
    %407 = vmatpush.msra.mxu0 0.0
    %408 = vmatpush.msra.mxu0 0.0
    %409 = vmatpush.msra.mxu0 0.0
    %410 = vmatpush.msra.mxu0 0.0
    %411 = vmatpush.msra.mxu0 0.0
    %412 = vmatpush.msra.mxu0 0.0
    %413 = vmatpush.msra.mxu0 0.0
    %414 = vmatpush.msra.mxu0 0.0
    %415 = vmatpush.msra.mxu0 0.0
    %416 = vmatpush.msra.mxu0 0.0
    %417 = vmatpush.msra.mxu0 %v401
    %418 = vmatpush.msra.mxu0 %v400
    %419 = vmatpush.msra.mxu0 %v399
    %420 = vmatpush.msra.mxu0 %v398
    %421 = vmatmul.f32.gmra.mxu0 %v403
    %v422 = vpop.f32.mrf.mxu0
    %v423 = vadd.f32 0.0, %v422
    %424 = vdwg.mxu0
    %v426 = vsel %vm141, %v393, 0
    %428 = vmatpush.msra.mxu0 0.0
    %429 = vmatpush.msra.mxu0 0.0
    %430 = vmatpush.msra.mxu0 0.0
    %431 = vmatpush.msra.mxu0 0.0
    %432 = vmatpush.msra.mxu0 0.0
    %433 = vmatpush.msra.mxu0 0.0
    %434 = vmatpush.msra.mxu0 0.0
    %435 = vmatpush.msra.mxu0 0.0
    %436 = vmatpush.msra.mxu0 0.0
    %437 = vmatpush.msra.mxu0 0.0
    %438 = vmatpush.msra.mxu0 0.0
    %439 = vmatpush.msra.mxu0 0.0
    %440 = vmatpush.msra.mxu0 %v397
    %441 = vmatpush.msra.mxu0 %v396
    %442 = vmatpush.msra.mxu0 %v395
    %443 = vmatpush.msra.mxu0 %v394
    %444 = vmatmul.f32.gmra.mxu0 %v426
    %v445 = vpop.f32.mrf.mxu0
    %v446 = vadd.f32 %v423, %v445
    %447 = vdwg.mxu0
    %v448 = vld [vmem:[%s12] sm:$0x1]
    %v450 = vperm.slane %v448, 0
    %v452 = vadd.f32 %v446, %v450
    %v453 = vmax.f32 %v452, 0.0
    %454 = vst.msk [vmem:[%s13] sm:$0xff] %vm141, %v453
  $region61: #{gat_policy_forward.12} parent=0 // pred_fallthru
    _
  // Predicated region
  $region62: #{gat_policy_forward.12} parent=0 // pred_check
    _
  $region63: #{gat_policy_forward.12} parent=0 // pred_check_branch
    %456 = sbr.rel (0) target = $region65
  $region64: #{gat_policy_forward.12} parent=0 // pred_region
    _
  $region65: #{gat_policy_forward.12} parent=0 // pred_fallthru
    _
  // Predicated region
  $region66: #{gat_policy_forward.12} parent=0 // pred_check
    _
  $region67: #{gat_policy_forward.12} parent=0 // pred_check_branch
    %458 = sbr.rel (0) target = $region69
  $region68: #{gat_policy_forward.12} parent=0 // pred_region
    _
  $region69: #{gat_policy_forward.12} parent=0 // pred_fallthru
    _

// kernel: gat_policy_forward.15
$region0: #{gat_policy_forward.15}
  #allocation0 [shape = 'u32[]', space=smem, size = 0x4, offset = 0x4, fixed_abs, tag = 'smem constant byte address 0x4 - core index']
  #allocation1 [shape = 'u32[72,128]{1,0:T(1,128)}', space=vmem, size = 0x9000, scoped, tag = 'internal scratch']
  %s0 = inlined_call_operand.vmem [shape: f32[10,32], index: 0, kind: input, shape index: {}]
  %s1 = inlined_call_operand.vmem [shape: f32[32,32], index: 1, kind: input, shape index: {}]
  %s2 = inlined_call_operand.vmem [shape: f32[1,32], index: 2, kind: input, shape index: {}]
  %s3 = inlined_call_operand.vmem [shape: f32[32,1], index: 3, kind: input, shape index: {}]
  %s4 = inlined_call_operand.vmem [shape: f32[10,1], index: 4, kind: output, shape index: {}]
  %s5 = sld [smem:[#allocation0]]
  $region26: #{gat_policy_forward.15} parent=0
    _
  %s7 = ssub.s32 1, %s5
  %s8 = scalar_select 0, %s7, %s5
  // Predicated region
  $region2: #{gat_policy_forward.15} parent=0 // pred_check
    _
  $region3: #{gat_policy_forward.15} parent=0 // pred_check_branch
    %10 = sbr.rel (0) target = $region5
  $region4: #{gat_policy_forward.15} parent=0 // pred_region
    _
  $region5: #{gat_policy_forward.15} parent=0 // pred_fallthru
    _
  // Predicated region
  $region6: #{gat_policy_forward.15} parent=0 // pred_check
    _
  $region7: #{gat_policy_forward.15} parent=0 // pred_check_branch
    %12 = sbr.rel (0) target = $region9
  $region8: #{gat_policy_forward.15} parent=0 // pred_region
    _
  $region9: #{gat_policy_forward.15} parent=0 // pred_fallthru
    _
  // Predicated region
  $region10: #{gat_policy_forward.15} parent=0 // pred_check
    _
  $region11: #{gat_policy_forward.15} parent=0 // pred_check_branch
    %14 = sbr.rel (0) target = $region13
  $region12: #{gat_policy_forward.15} parent=0 // pred_region
    _
  $region13: #{gat_policy_forward.15} parent=0 // pred_fallthru
    _
  // Predicated region
  $region14: #{gat_policy_forward.15} parent=0 // pred_check
    _
  $region15: #{gat_policy_forward.15} parent=0 // pred_check_branch
    %16 = sbr.rel (0) target = $region17
  $region16: #{gat_policy_forward.15} parent=0 // pred_region
    _
  $region17: #{gat_policy_forward.15} parent=0 // pred_fallthru
    _
  %v17 = vld [vmem:[%s0] sm:$0xff]
  %v18 = vld [vmem:[%s0 + $0x8] sm:$0x3]
  %v19 = vld [vmem:[%s1] sm:$0xff]
  %v20 = vld [vmem:[%s1 + $0x8] sm:$0xff]
  %v21 = vld [vmem:[%s1 + $0x10] sm:$0xff]
  %v22 = vld [vmem:[%s1 + $0x18] sm:$0xff]
  %v23 = vld [vmem:[%s2] sm:$0x1]
  %v25 = vperm.slane %v23, 0
  %vm27 = vcmask 261120
  %v29 = vsel %vm27, %v17, 0
  %v32 = vsel %vm27, %v18, 0
  %34 = vmatpush.msra.mxu0 0.0
  %35 = vmatpush.msra.mxu0 0.0
  %36 = vmatpush.msra.mxu0 0.0
  %37 = vmatpush.msra.mxu0 0.0
  %38 = vmatpush.msra.mxu0 0.0
  %39 = vmatpush.msra.mxu0 0.0
  %40 = vmatpush.msra.mxu0 0.0
  %41 = vmatpush.msra.mxu0 0.0
  %42 = vmatpush.msra.mxu0 0.0
  %43 = vmatpush.msra.mxu0 0.0
  %44 = vmatpush.msra.mxu0 0.0
  %45 = vmatpush.msra.mxu0 0.0
  %46 = vmatpush.msra.mxu0 %v22
  %47 = vmatpush.msra.mxu0 %v21
  %48 = vmatpush.msra.mxu0 %v20
  %49 = vmatpush.msra.mxu0 %v19
  %50 = vmatmul.f32.gmra.mxu0 %v29
  %v51 = vpop.f32.mrf.mxu0
  %v52 = vadd.f32 %v25, %v51
  %53 = vmatmul.f32.gmra.mxu0 %v32
  %v54 = vpop.f32.mrf.mxu0
  %v55 = vadd.f32 %v25, %v54
  %56 = vdwg.mxu0
  %v57 = vmax.f32 %v52, 0.0
  %v58 = vmax.f32 %v55, 0.0
  %v59 = vld [vmem:[%s3] sm:$0xff]
  %v60 = vld [vmem:[%s3 + $0x8] sm:$0xff]
  %v61 = vld [vmem:[%s3 + $0x10] sm:$0xff]
  %v62 = vld [vmem:[%s3 + $0x18] sm:$0xff]
  %v64 = vsel %vm27, %v57, 0
  %v67 = vsel %vm27, %v58, 0
  %69 = vmatpush.msra.mxu0 0.0
  %70 = vmatpush.msra.mxu0 0.0
  %71 = vmatpush.msra.mxu0 0.0
  %72 = vmatpush.msra.mxu0 0.0
  %73 = vmatpush.msra.mxu0 0.0
  %74 = vmatpush.msra.mxu0 0.0
  %75 = vmatpush.msra.mxu0 0.0
  %76 = vmatpush.msra.mxu0 0.0
  %77 = vmatpush.msra.mxu0 0.0
  %78 = vmatpush.msra.mxu0 0.0
  %79 = vmatpush.msra.mxu0 0.0
  %80 = vmatpush.msra.mxu0 0.0
  %81 = vmatpush.msra.mxu0 %v62
  %82 = vmatpush.msra.mxu0 %v61
  %83 = vmatpush.msra.mxu0 %v60
  %84 = vmatpush.msra.mxu0 %v59
  %85 = vmatmul.f32.gmra.mxu0 %v64
  %v86 = vpop.f32.mrf.mxu0
  %v87 = vadd.f32 0.0, %v86
  %88 = vmatmul.f32.gmra.mxu0 %v67
  %v89 = vpop.f32.mrf.mxu0
  %v90 = vadd.f32 0.0, %v89
  %91 = vdwg.mxu0
  %vm92 = vcmask 7168
  %93 = vst.msk [vmem:[%s4] sm:$0xff] %vm92, %v87
  %vm94 = vcmask 1024
  %95 = vst.msk [vmem:[%s4 + $0x8] sm:$0x3] %vm94, %v90
  // Predicated region
  $region18: #{gat_policy_forward.15} parent=0 // pred_check
    _
  $region19: #{gat_policy_forward.15} parent=0 // pred_check_branch
    %97 = sbr.rel (0) target = $region21
  $region20: #{gat_policy_forward.15} parent=0 // pred_region
    _
  $region21: #{gat_policy_forward.15} parent=0 // pred_fallthru
    _
  // Predicated region
  $region22: #{gat_policy_forward.15} parent=0 // pred_check
    _
  $region23: #{gat_policy_forward.15} parent=0 // pred_check_branch
    %99 = sbr.rel (0) target = $region25
  $region24: #{gat_policy_forward.15} parent=0 // pred_region
    _
  $region25: #{gat_policy_forward.15} parent=0 // pred_fallthru
    _

// kernel: gat_policy_forward.14
$region0: #{gat_policy_forward.14}
  #allocation0 [shape = 'u32[]', space=smem, size = 0x4, offset = 0x4, fixed_abs, tag = 'smem constant byte address 0x4 - core index']
  #allocation1 [shape = 'u32[72,128]{1,0:T(1,128)}', space=vmem, size = 0x9000, scoped, tag = 'internal scratch']
  #allocation2 [shape = 'f32[2,16,1]{2,1,0:T(8,128)}', space=vmem, size = 0x4000, scoped, tag = 'scratch operand']
  #allocation3 [shape = 'f32[2,16,1]{2,1,0:T(8,128)}', space=vmem, size = 0x4000, scoped, tag = 'scratch operand']
  #allocation4 [shape = 'f32[2,16,32]{2,1,0:T(8,128)}', space=vmem, size = 0x4000, scoped, tag = 'scratch operand']
  %s0 = inlined_call_operand.vmem [shape: f32[2,128,32], index: 0, kind: input, shape index: {}]
  %s1 = inlined_call_operand.vmem [shape: f32[2,1,128], index: 1, kind: input, shape index: {}]
  %s2 = inlined_call_operand.vmem [shape: f32[2,16,1], index: 2, kind: input, shape index: {}]
  %s3 = inlined_call_operand.vmem [shape: f32[2,16,128], index: 3, kind: input, shape index: {}]
  %s4 = inlined_call_operand.vmem [shape: f32[16,32], index: 4, kind: input, shape index: {}]
  %s5 = inlined_call_operand.vmem [shape: f32[1,64], index: 5, kind: input, shape index: {}]
  %s6 = inlined_call_operand.vmem [shape: f32[64,32], index: 6, kind: input, shape index: {}]
  %s7 = inlined_call_operand.vmem [shape: f32[1,32], index: 7, kind: input, shape index: {}]
  %s8 = inlined_call_operand.vmem [shape: f32[32,32], index: 8, kind: input, shape index: {}]
  %s9 = inlined_call_operand.vmem [shape: f32[1,32], index: 9, kind: input, shape index: {}]
  %s10 = inlined_call_operand.vmem [shape: f32[32,32], index: 10, kind: input, shape index: {}]
  %s11 = inlined_call_operand.vmem [shape: f32[32,32], index: 11, kind: input, shape index: {}]
  %s12 = inlined_call_operand.vmem [shape: f32[1,32], index: 12, kind: input, shape index: {}]
  %s13 = inlined_call_operand.vmem [shape: f32[16,32], index: 13, kind: output, shape index: {}]
  %s14 = sld [smem:[#allocation0]]
  $region70: #{gat_policy_forward.14} parent=0
    _
  %s16 = ssub.s32 1, %s14
  %s17 = scalar_select 0, %s16, %s14
  // Predicated region
  $region2: #{gat_policy_forward.14} parent=0 // pred_check
    _
  $region3: #{gat_policy_forward.14} parent=0 // pred_check_branch
    %19 = sbr.rel (0) target = $region5
  $region4: #{gat_policy_forward.14} parent=0 // pred_region
    _
  $region5: #{gat_policy_forward.14} parent=0 // pred_fallthru
    _
  // Predicated region
  $region6: #{gat_policy_forward.14} parent=0 // pred_check
    _
  $region7: #{gat_policy_forward.14} parent=0 // pred_check_branch
    %21 = sbr.rel (0) target = $region9
  $region8: #{gat_policy_forward.14} parent=0 // pred_region
    _
  $region9: #{gat_policy_forward.14} parent=0 // pred_fallthru
    _
  // Predicated region
  $region10: #{gat_policy_forward.14} parent=0 // pred_check
    _
  $region11: #{gat_policy_forward.14} parent=0 // pred_check_branch
    %23 = sbr.rel (0) target = $region13
  $region12: #{gat_policy_forward.14} parent=0 // pred_region
    _
  $region13: #{gat_policy_forward.14} parent=0 // pred_fallthru
    _
  // Predicated region
  $region14: #{gat_policy_forward.14} parent=0 // pred_check
    _
  $region15: #{gat_policy_forward.14} parent=0 // pred_check_branch
    %25 = sbr.rel (0) target = $region17
  $region16: #{gat_policy_forward.14} parent=0 // pred_region
    _
  $region17: #{gat_policy_forward.14} parent=0 // pred_fallthru
    _
  // Predicated region
  $region18: #{gat_policy_forward.14} parent=0 // pred_check
    _
  $region19: #{gat_policy_forward.14} parent=0 // pred_check_branch
    %27 = sbr.rel (0) target = $region21
  $region20: #{gat_policy_forward.14} parent=0 // pred_region
    _
  $region21: #{gat_policy_forward.14} parent=0 // pred_fallthru
    _
  // Predicated region
  $region22: #{gat_policy_forward.14} parent=0 // pred_check
    _
  $region23: #{gat_policy_forward.14} parent=0 // pred_check_branch
    %29 = sbr.rel (0) target = $region25
  $region24: #{gat_policy_forward.14} parent=0 // pred_region
    _
  $region25: #{gat_policy_forward.14} parent=0 // pred_fallthru
    _
  // Predicated region
  $region26: #{gat_policy_forward.14} parent=0 // pred_check
    _
  $region27: #{gat_policy_forward.14} parent=0 // pred_check_branch
    %31 = sbr.rel (0) target = $region29
  $region28: #{gat_policy_forward.14} parent=0 // pred_region
    _
  $region29: #{gat_policy_forward.14} parent=0 // pred_fallthru
    _
  // Predicated region
  $region30: #{gat_policy_forward.14} parent=0 // pred_check
    _
  $region31: #{gat_policy_forward.14} parent=0 // pred_check_branch
    %33 = sbr.rel (0) target = $region33
  $region32: #{gat_policy_forward.14} parent=0 // pred_region
    _
  $region33: #{gat_policy_forward.14} parent=0 // pred_fallthru
    _
  // Predicated region
  $region34: #{gat_policy_forward.14} parent=0 // pred_check
    _
  $region35: #{gat_policy_forward.14} parent=0 // pred_check_branch
    %35 = sbr.rel (0) target = $region37
  $region36: #{gat_policy_forward.14} parent=0 // pred_region
    _
  $region37: #{gat_policy_forward.14} parent=0 // pred_fallthru
    _
  // Predicated region
  $region38: #{gat_policy_forward.14} parent=0 // pred_check
    _
  $region39: #{gat_policy_forward.14} parent=0 // pred_check_branch
    %37 = sbr.rel (0) target = $region41
  $region40: #{gat_policy_forward.14} parent=0 // pred_region
    _
  $region41: #{gat_policy_forward.14} parent=0 // pred_fallthru
    _
  // Predicated region
  $region42: #{gat_policy_forward.14} parent=0 // pred_check
    _
  $region43: #{gat_policy_forward.14} parent=0 // pred_check_branch
    %39 = sbr.rel (0) target = $region45
  $region44: #{gat_policy_forward.14} parent=0 // pred_region
    _
  $region45: #{gat_policy_forward.14} parent=0 // pred_fallthru
    _
  // Predicated region
  $region46: #{gat_policy_forward.14} parent=0 // pred_check
    _
  $region47: #{gat_policy_forward.14} parent=0 // pred_check_branch
    %41 = sbr.rel (0) target = $region49
  $region48: #{gat_policy_forward.14} parent=0 // pred_region
    _
  $region49: #{gat_policy_forward.14} parent=0 // pred_fallthru
    _
  // Predicated region
  $region50: #{gat_policy_forward.14} parent=0 // pred_check
    _
  $region51: #{gat_policy_forward.14} parent=0 // pred_check_branch
    %43 = sbr.rel (0) target = $region53
  $region52: #{gat_policy_forward.14} parent=0 // pred_region
    _
  $region53: #{gat_policy_forward.14} parent=0 // pred_fallthru
    _
  %p44 = scmp.eq.s32.totalorder 0, 0
  // Predicated region
  $region54: #{gat_policy_forward.14} parent=0 // pred_check
    %p45 = pneg %p44
  $region55: #{gat_policy_forward.14} parent=0 // pred_check_branch
    %47 = sbr.rel (%p45) target = $region57
  $region56: #{gat_policy_forward.14} parent=0 // pred_region
    %vm48 = vcmask 7168
    %49 = vst.msk [vmem:[#allocation2] sm:$0xff] %vm48, -1e+30
    %50 = vst.msk [vmem:[#allocation2 + $0x8] sm:$0xff] %vm48, -1e+30
    %51 = vst.msk [vmem:[#allocation2 + $0x10] sm:$0xff] %vm48, -1e+30
    %52 = vst.msk [vmem:[#allocation2 + $0x18] sm:$0xff] %vm48, -1e+30
    %53 = vst.msk [vmem:[#allocation3] sm:$0xff] %vm48, 0.0
    %54 = vst.msk [vmem:[#allocation3 + $0x8] sm:$0xff] %vm48, 0.0
    %55 = vst.msk [vmem:[#allocation3 + $0x10] sm:$0xff] %vm48, 0.0
    %56 = vst.msk [vmem:[#allocation3 + $0x18] sm:$0xff] %vm48, 0.0
    %vm57 = vcmask 261120
    %58 = vst.msk [vmem:[#allocation4] sm:$0xff] %vm57, 0.0
    %59 = vst.msk [vmem:[#allocation4 + $0x8] sm:$0xff] %vm57, 0.0
    %60 = vst.msk [vmem:[#allocation4 + $0x10] sm:$0xff] %vm57, 0.0
    %61 = vst.msk [vmem:[#allocation4 + $0x18] sm:$0xff] %vm57, 0.0
  $region57: #{gat_policy_forward.14} parent=0 // pred_fallthru
    _
  %v62 = vld [vmem:[%s3] sm:$0xff]
  %v63 = vld [vmem:[%s3 + $0x8] sm:$0xff]
  %vm64 = vcmp.gt.f32.partialorder %v62, -5e+29
  %vm65 = vcmp.gt.f32.partialorder %v63, -5e+29
  %v66 = vld [vmem:[%s2] sm:$0xff]
  %v67 = vld [vmem:[%s2 + $0x8] sm:$0xff]
  %v68 = vld [vmem:[%s1] sm:$0x1]
  %70 = vset.pattern.permute.xlu0 0
  %71 = vperm.xlu0 %70, %v66
  %v72 = vpop.permute.xlu0 %71
  %75 = vset.pattern.permute.xlu0 0
  %76 = vperm.xlu0 %75, %v67
  %v77 = vpop.permute.xlu0 %76
  %v80 = vperm.slane %v68, 0
  %v82 = vadd.f32 %v72, %v80
  %v83 = vadd.f32 %v77, %v80
  %v84 = vadd.f32 %v82, %v62
  %v85 = vadd.f32 %v83, %v63
  %vm86 = vcmp.gt.f32.partialorder %v84, 0.0
  %vm87 = vcmp.gt.f32.partialorder %v85, 0.0
  %v88 = vmul.f32 %v84, 0.2
  %v89 = vmul.f32 %v85, 0.2
  %v90 = vsel %vm86, %v84, %v88
  %v91 = vsel %vm87, %v85, %v89
  %v92 = vsel %vm64, %v90, -1e+30
  %v93 = vsel %vm65, %v91, -1e+30
  %v94 = vld [vmem:[#allocation2] sm:$0xff]
  %v95 = vld [vmem:[#allocation2 + $0x8] sm:$0xff]
  %96 = vmax.xlane.f32.xlu0 %v92
  %v97 = vpop.xlane.xlu0 %96
  %98 = vmax.xlane.f32.xlu0 %v93
  %v99 = vpop.xlane.xlu0 %98
  %v100 = vmax.f32 %v94, %v97
  %v101 = vmax.f32 %v95, %v99
  %v102 = vsub.f32 %v94, %v100
  %v103 = vsub.f32 %v95, %v101
  %v104 = vmul.f32 %v102, 1.442695
  %v105 = vpow.pop %v104
  %v106 = vmul.f32 %v103, 1.442695
  %v107 = vpow.pop %v106
  %109 = vset.pattern.permute.xlu0 0
  %110 = vperm.xlu0 %109, %v100
  %v111 = vpop.permute.xlu0 %110
  %114 = vset.pattern.permute.xlu0 0
  %115 = vperm.xlu0 %114, %v101
  %v116 = vpop.permute.xlu0 %115
  %v118 = vsub.f32 %v92, %v111
  %v119 = vsub.f32 %v93, %v116
  %v120 = vmul.f32 %v118, 1.442695
  %v121 = vpow.pop %v120
  %v122 = vmul.f32 %v119, 1.442695
  %v123 = vpow.pop %v122
  %v124 = vsel %vm64, %v121, 0.0
  %v125 = vsel %vm65, %v123, 0.0
  %v126 = vld [vmem:[#allocation3] sm:$0xff]
  %v127 = vld [vmem:[#allocation3 + $0x8] sm:$0xff]
  %v128 = vmul.f32 %v105, %v126
  %v129 = vmul.f32 %v107, %v127
  %130 = vadd.xlane.f32.xlu0 %v124
  %v131 = vpop.xlane.xlu0 %130
  %132 = vadd.xlane.f32.xlu0 %v125
  %v133 = vpop.xlane.xlu0 %132
  %v134 = vadd.f32 %v128, %v131
  %v135 = vadd.f32 %v129, %v133
  %vm136 = vcmask 7168
  %137 = vst.msk [vmem:[#allocation3] sm:$0xff] %vm136, %v134
  %138 = vst.msk [vmem:[#allocation3 + $0x8] sm:$0xff] %vm136, %v135
  %v139 = vld [vmem:[#allocation4] sm:$0xff]
  %v140 = vld [vmem:[#allocation4 + $0x8] sm:$0xff]
  %142 = vset.pattern.permute.xlu0 0
  %143 = vperm.xlu0 %142, %v105
  %v144 = vpop.permute.xlu0 %143
  %147 = vset.pattern.permute.xlu0 0
  %148 = vperm.xlu0 %147, %v107
  %v149 = vpop.permute.xlu0 %148
  %v151 = vmul.f32 %v144, %v139
  %v152 = vmul.f32 %v149, %v140
  %v153 = vld [vmem:[%s0] sm:$0xff]
  %v154 = vld [vmem:[%s0 + $0x8] sm:$0xff]
  %v155 = vld [vmem:[%s0 + $0x10] sm:$0xff]
  %v156 = vld [vmem:[%s0 + $0x18] sm:$0xff]
  %v157 = vld [vmem:[%s0 + $0x20] sm:$0xff]
  %v158 = vld [vmem:[%s0 + $0x28] sm:$0xff]
  %v159 = vld [vmem:[%s0 + $0x30] sm:$0xff]
  %v160 = vld [vmem:[%s0 + $0x38] sm:$0xff]
  %v161 = vld [vmem:[%s0 + $0x40] sm:$0xff]
  %v162 = vld [vmem:[%s0 + $0x48] sm:$0xff]
  %v163 = vld [vmem:[%s0 + $0x50] sm:$0xff]
  %v164 = vld [vmem:[%s0 + $0x58] sm:$0xff]
  %v165 = vld [vmem:[%s0 + $0x60] sm:$0xff]
  %v166 = vld [vmem:[%s0 + $0x68] sm:$0xff]
  %v167 = vld [vmem:[%s0 + $0x70] sm:$0xff]
  %v168 = vld [vmem:[%s0 + $0x78] sm:$0xff]
  %169 = vmatpush.msra.mxu0 %v168
  %170 = vmatpush.msra.mxu0 %v167
  %171 = vmatpush.msra.mxu0 %v166
  %172 = vmatpush.msra.mxu0 %v165
  %173 = vmatpush.msra.mxu0 %v164
  %174 = vmatpush.msra.mxu0 %v163
  %175 = vmatpush.msra.mxu0 %v162
  %176 = vmatpush.msra.mxu0 %v161
  %177 = vmatpush.msra.mxu0 %v160
  %178 = vmatpush.msra.mxu0 %v159
  %179 = vmatpush.msra.mxu0 %v158
  %180 = vmatpush.msra.mxu0 %v157
  %181 = vmatpush.msra.mxu0 %v156
  %182 = vmatpush.msra.mxu0 %v155
  %183 = vmatpush.msra.mxu0 %v154
  %184 = vmatpush.msra.mxu0 %v153
  %185 = vmatmul.f32.gmra.mxu0 %v124
  %v186 = vpop.f32.mrf.mxu0
  %v187 = vadd.f32 0.0, %v186
  %188 = vmatmul.f32.gmra.mxu0 %v125
  %v189 = vpop.f32.mrf.mxu0
  %v190 = vadd.f32 0.0, %v189
  %191 = vdwg.mxu0
  %v192 = vadd.f32 %v151, %v187
  %v193 = vadd.f32 %v152, %v190
  %vm194 = vcmask 261120
  %195 = vst.msk [vmem:[#allocation4] sm:$0xff] %vm194, %v192
  %196 = vst.msk [vmem:[#allocation4 + $0x8] sm:$0xff] %vm194, %v193
  %197 = vst.msk [vmem:[#allocation2] sm:$0xff] %vm136, %v100
  %198 = vst.msk [vmem:[#allocation2 + $0x8] sm:$0xff] %vm136, %v101
  %s199 = scalar_lea.vmem %s3, 16
  %v200 = vld [vmem:[%s199] sm:$0xff]
  %v201 = vld [vmem:[%s199 + $0x8] sm:$0xff]
  %vm202 = vcmp.gt.f32.partialorder %v200, -5e+29
  %vm203 = vcmp.gt.f32.partialorder %v201, -5e+29
  %s204 = scalar_lea.vmem %s2, 16
  %v205 = vld [vmem:[%s204] sm:$0xff]
  %v206 = vld [vmem:[%s204 + $0x8] sm:$0xff]
  %s207 = scalar_lea.vmem %s1, 1
  %v208 = vld [vmem:[%s207] sm:$0x1]
  %210 = vset.pattern.permute.xlu0 0
  %211 = vperm.xlu0 %210, %v205
  %v212 = vpop.permute.xlu0 %211
  %215 = vset.pattern.permute.xlu0 0
  %216 = vperm.xlu0 %215, %v206
  %v217 = vpop.permute.xlu0 %216
  %v220 = vperm.slane %v208, 0
  %v222 = vadd.f32 %v212, %v220
  %v223 = vadd.f32 %v217, %v220
  %v224 = vadd.f32 %v222, %v200
  %v225 = vadd.f32 %v223, %v201
  %vm226 = vcmp.gt.f32.partialorder %v224, 0.0
  %vm227 = vcmp.gt.f32.partialorder %v225, 0.0
  %v228 = vmul.f32 %v224, 0.2
  %v229 = vmul.f32 %v225, 0.2
  %v230 = vsel %vm226, %v224, %v228
  %v231 = vsel %vm227, %v225, %v229
  %v232 = vsel %vm202, %v230, -1e+30
  %v233 = vsel %vm203, %v231, -1e+30
  %s234 = scalar_lea.vmem [#allocation2], 16
  %v235 = vld [vmem:[%s234] sm:$0xff]
  %v236 = vld [vmem:[%s234 + $0x8] sm:$0xff]
  %237 = vmax.xlane.f32.xlu0 %v232
  %v238 = vpop.xlane.xlu0 %237
  %239 = vmax.xlane.f32.xlu0 %v233
  %v240 = vpop.xlane.xlu0 %239
  %v241 = vmax.f32 %v235, %v238
  %v242 = vmax.f32 %v236, %v240
  %v243 = vsub.f32 %v235, %v241
  %v244 = vsub.f32 %v236, %v242
  %v245 = vmul.f32 %v243, 1.442695
  %v246 = vpow.pop %v245
  %v247 = vmul.f32 %v244, 1.442695
  %v248 = vpow.pop %v247
  %250 = vset.pattern.permute.xlu0 0
  %251 = vperm.xlu0 %250, %v241
  %v252 = vpop.permute.xlu0 %251
  %255 = vset.pattern.permute.xlu0 0
  %256 = vperm.xlu0 %255, %v242
  %v257 = vpop.permute.xlu0 %256
  %v259 = vsub.f32 %v232, %v252
  %v260 = vsub.f32 %v233, %v257
  %v261 = vmul.f32 %v259, 1.442695
  %v262 = vpow.pop %v261
  %v263 = vmul.f32 %v260, 1.442695
  %v264 = vpow.pop %v263
  %v265 = vsel %vm202, %v262, 0.0
  %v266 = vsel %vm203, %v264, 0.0
  %s267 = scalar_lea.vmem [#allocation3], 16
  %v268 = vld [vmem:[%s267] sm:$0xff]
  %v269 = vld [vmem:[%s267 + $0x8] sm:$0xff]
  %v270 = vmul.f32 %v246, %v268
  %v271 = vmul.f32 %v248, %v269
  %272 = vadd.xlane.f32.xlu0 %v265
  %v273 = vpop.xlane.xlu0 %272
  %274 = vadd.xlane.f32.xlu0 %v266
  %v275 = vpop.xlane.xlu0 %274
  %v276 = vadd.f32 %v270, %v273
  %v277 = vadd.f32 %v271, %v275
  %278 = vst.msk [vmem:[%s267] sm:$0xff] %vm136, %v276
  %279 = vst.msk [vmem:[%s267 + $0x8] sm:$0xff] %vm136, %v277
  %s280 = scalar_lea.vmem [#allocation4], 16
  %v281 = vld [vmem:[%s280] sm:$0xff]
  %v282 = vld [vmem:[%s280 + $0x8] sm:$0xff]
  %284 = vset.pattern.permute.xlu0 0
  %285 = vperm.xlu0 %284, %v246
  %v286 = vpop.permute.xlu0 %285
  %289 = vset.pattern.permute.xlu0 0
  %290 = vperm.xlu0 %289, %v248
  %v291 = vpop.permute.xlu0 %290
  %v293 = vmul.f32 %v286, %v281
  %v294 = vmul.f32 %v291, %v282
  %s295 = scalar_lea.vmem %s0, 128
  %v296 = vld [vmem:[%s295] sm:$0xff]
  %v297 = vld [vmem:[%s295 + $0x8] sm:$0xff]
  %v298 = vld [vmem:[%s295 + $0x10] sm:$0xff]
  %v299 = vld [vmem:[%s295 + $0x18] sm:$0xff]
  %v300 = vld [vmem:[%s295 + $0x20] sm:$0xff]
  %v301 = vld [vmem:[%s295 + $0x28] sm:$0xff]
  %v302 = vld [vmem:[%s295 + $0x30] sm:$0xff]
  %v303 = vld [vmem:[%s295 + $0x38] sm:$0xff]
  %v304 = vld [vmem:[%s295 + $0x40] sm:$0xff]
  %v305 = vld [vmem:[%s295 + $0x48] sm:$0xff]
  %v306 = vld [vmem:[%s295 + $0x50] sm:$0xff]
  %v307 = vld [vmem:[%s295 + $0x58] sm:$0xff]
  %v308 = vld [vmem:[%s295 + $0x60] sm:$0xff]
  %v309 = vld [vmem:[%s295 + $0x68] sm:$0xff]
  %v310 = vld [vmem:[%s295 + $0x70] sm:$0xff]
  %v311 = vld [vmem:[%s295 + $0x78] sm:$0xff]
  %312 = vmatpush.msra.mxu0 %v311
  %313 = vmatpush.msra.mxu0 %v310
  %314 = vmatpush.msra.mxu0 %v309
  %315 = vmatpush.msra.mxu0 %v308
  %316 = vmatpush.msra.mxu0 %v307
  %317 = vmatpush.msra.mxu0 %v306
  %318 = vmatpush.msra.mxu0 %v305
  %319 = vmatpush.msra.mxu0 %v304
  %320 = vmatpush.msra.mxu0 %v303
  %321 = vmatpush.msra.mxu0 %v302
  %322 = vmatpush.msra.mxu0 %v301
  %323 = vmatpush.msra.mxu0 %v300
  %324 = vmatpush.msra.mxu0 %v299
  %325 = vmatpush.msra.mxu0 %v298
  %326 = vmatpush.msra.mxu0 %v297
  %327 = vmatpush.msra.mxu0 %v296
  %328 = vmatmul.f32.gmra.mxu0 %v265
  %v329 = vpop.f32.mrf.mxu0
  %v330 = vadd.f32 0.0, %v329
  %331 = vmatmul.f32.gmra.mxu0 %v266
  %v332 = vpop.f32.mrf.mxu0
  %v333 = vadd.f32 0.0, %v332
  %334 = vdwg.mxu0
  %v335 = vadd.f32 %v293, %v330
  %v336 = vadd.f32 %v294, %v333
  %337 = vst.msk [vmem:[%s280] sm:$0xff] %vm194, %v335
  %338 = vst.msk [vmem:[%s280 + $0x8] sm:$0xff] %vm194, %v336
  %339 = vst.msk [vmem:[%s234] sm:$0xff] %vm136, %v241
  %340 = vst.msk [vmem:[%s234 + $0x8] sm:$0xff] %vm136, %v242
  // Predicated region
  $region58: #{gat_policy_forward.14} parent=0 // pred_check
    %p341 = pneg %p44
  $region59: #{gat_policy_forward.14} parent=0 // pred_check_branch
    %343 = sbr.rel (%p341) target = $region61
  $region60: #{gat_policy_forward.14} parent=0 // pred_region
    %v344 = vld [vmem:[%s5] sm:$0x1]
    %v345 = vld [vmem:[%s6] sm:$0xff]
    %v346 = vld [vmem:[%s6 + $0x8] sm:$0xff]
    %v347 = vld [vmem:[%s6 + $0x10] sm:$0xff]
    %v348 = vld [vmem:[%s6 + $0x18] sm:$0xff]
    %v349 = vld [vmem:[%s6 + $0x20] sm:$0xff]
    %v350 = vld [vmem:[%s6 + $0x28] sm:$0xff]
    %v351 = vld [vmem:[%s6 + $0x30] sm:$0xff]
    %v352 = vld [vmem:[%s6 + $0x38] sm:$0xff]
    %v353 = vld [vmem:[%s7] sm:$0x1]
    %v354 = vld [vmem:[#allocation3] sm:$0xff]
    %v355 = vld [vmem:[#allocation3 + $0x8] sm:$0xff]
    %vm356 = vcmp.gt.f32.partialorder %v354, 0.0
    %vm357 = vcmp.gt.f32.partialorder %v355, 0.0
    %v358 = vrcp.pop %v354
    %v359 = vmul.f32 %v354, %v358
    %v360 = vsub.f32 1.0, %v359
    %v361 = vmul.f32 %v358, %v360
    %v362 = vadd.f32 %v358, %v361
    %vm363 = vweird.f32 %v354
    %vm364 = vweird.f32 %v358
    %vm365 = vmor %vm363, %vm364
    %v366 = vsel %vm365, %v358, %v362
    %v367 = vand.u32 2147483647, %v354
    %vm368 = vcmp.eq.f32.partialorder %v367, 8.507059e+37
    %v369 = vand.u32 %v354, 2147483648
    %v370 = vor.u32 1.1754944e-38, %v369
    %v371 = vsel %vm368, %v370, %v366
    %v372 = vmul.f32 1.0, %v371
    %v373 = vrcp.pop %v355
    %v374 = vmul.f32 %v355, %v373
    %v375 = vsub.f32 1.0, %v374
    %v376 = vmul.f32 %v373, %v375
    %v377 = vadd.f32 %v373, %v376
    %vm378 = vweird.f32 %v355
    %vm379 = vweird.f32 %v373
    %vm380 = vmor %vm378, %vm379
    %v381 = vsel %vm380, %v373, %v377
    %v382 = vand.u32 2147483647, %v355
    %vm383 = vcmp.eq.f32.partialorder %v382, 8.507059e+37
    %v384 = vand.u32 %v355, 2147483648
    %v385 = vor.u32 1.1754944e-38, %v384
    %v386 = vsel %vm383, %v385, %v381
    %v387 = vmul.f32 1.0, %v386
    %v388 = vsel %vm356, %v372, 0.0
    %v389 = vsel %vm357, %v387, 0.0
    %v390 = vld [vmem:[#allocation4] sm:$0xff]
    %v391 = vld [vmem:[#allocation4 + $0x8] sm:$0xff]
    %393 = vset.pattern.permute.xlu0 0
    %394 = vperm.xlu0 %393, %v388
    %v395 = vpop.permute.xlu0 %394
    %398 = vset.pattern.permute.xlu0 0
    %399 = vperm.xlu0 %398, %v389
    %v400 = vpop.permute.xlu0 %399
    %v402 = vmul.f32 %v390, %v395
    %v403 = vmul.f32 %v391, %v400
    %v405 = vperm.slane %v344, 0
    %v407 = vadd.f32 %v402, %v405
    %v408 = vadd.f32 %v403, %v405
    %v409 = vmax.f32 %v407, 0.0
    %v410 = vmax.f32 %v408, 0.0
    %v412 = vsel %vm194, %v409, 0
    %v415 = vsel %vm194, %v410, 0
    %417 = vmatpush.msra.mxu0 0.0
    %418 = vmatpush.msra.mxu0 0.0
    %419 = vmatpush.msra.mxu0 0.0
    %420 = vmatpush.msra.mxu0 0.0
    %421 = vmatpush.msra.mxu0 0.0
    %422 = vmatpush.msra.mxu0 0.0
    %423 = vmatpush.msra.mxu0 0.0
    %424 = vmatpush.msra.mxu0 0.0
    %425 = vmatpush.msra.mxu0 0.0
    %426 = vmatpush.msra.mxu0 0.0
    %427 = vmatpush.msra.mxu0 0.0
    %428 = vmatpush.msra.mxu0 0.0
    %429 = vmatpush.msra.mxu0 %v348
    %430 = vmatpush.msra.mxu0 %v347
    %431 = vmatpush.msra.mxu0 %v346
    %432 = vmatpush.msra.mxu0 %v345
    %433 = vmatmul.f32.gmra.mxu0 %v412
    %v434 = vpop.f32.mrf.mxu0
    %v435 = vadd.f32 0.0, %v434
    %436 = vmatmul.f32.gmra.mxu0 %v415
    %v437 = vpop.f32.mrf.mxu0
    %v438 = vadd.f32 0.0, %v437
    %439 = vdwg.mxu0
    %v441 = vperm.slane %v353, 0
    %v443 = vadd.f32 %v441, %v435
    %v444 = vadd.f32 %v441, %v438
    %v445 = vld [vmem:[%s267] sm:$0xff]
    %v446 = vld [vmem:[%s267 + $0x8] sm:$0xff]
    %vm447 = vcmp.gt.f32.partialorder %v445, 0.0
    %vm448 = vcmp.gt.f32.partialorder %v446, 0.0
    %v449 = vrcp.pop %v445
    %v450 = vmul.f32 %v445, %v449
    %v451 = vsub.f32 1.0, %v450
    %v452 = vmul.f32 %v449, %v451
    %v453 = vadd.f32 %v449, %v452
    %vm454 = vweird.f32 %v445
    %vm455 = vweird.f32 %v449
    %vm456 = vmor %vm454, %vm455
    %v457 = vsel %vm456, %v449, %v453
    %v458 = vand.u32 2147483647, %v445
    %vm459 = vcmp.eq.f32.partialorder %v458, 8.507059e+37
    %v460 = vand.u32 %v445, 2147483648
    %v461 = vor.u32 1.1754944e-38, %v460
    %v462 = vsel %vm459, %v461, %v457
    %v463 = vmul.f32 1.0, %v462
    %v464 = vrcp.pop %v446
    %v465 = vmul.f32 %v446, %v464
    %v466 = vsub.f32 1.0, %v465
    %v467 = vmul.f32 %v464, %v466
    %v468 = vadd.f32 %v464, %v467
    %vm469 = vweird.f32 %v446
    %vm470 = vweird.f32 %v464
    %vm471 = vmor %vm469, %vm470
    %v472 = vsel %vm471, %v464, %v468
    %v473 = vand.u32 2147483647, %v446
    %vm474 = vcmp.eq.f32.partialorder %v473, 8.507059e+37
    %v475 = vand.u32 %v446, 2147483648
    %v476 = vor.u32 1.1754944e-38, %v475
    %v477 = vsel %vm474, %v476, %v472
    %v478 = vmul.f32 1.0, %v477
    %v479 = vsel %vm447, %v463, 0.0
    %v480 = vsel %vm448, %v478, 0.0
    %v481 = vld [vmem:[%s280] sm:$0xff]
    %v482 = vld [vmem:[%s280 + $0x8] sm:$0xff]
    %484 = vset.pattern.permute.xlu0 0
    %485 = vperm.xlu0 %484, %v479
    %v486 = vpop.permute.xlu0 %485
    %489 = vset.pattern.permute.xlu0 0
    %490 = vperm.xlu0 %489, %v480
    %v491 = vpop.permute.xlu0 %490
    %v493 = vmul.f32 %v481, %v486
    %v494 = vmul.f32 %v482, %v491
    %495 = vrot.lane.b32.xlu0 %v405, 96
    %v496 = vpop.permute.xlu0 %495
    %v498 = vadd.f32 %v493, %v496
    %v499 = vadd.f32 %v494, %v496
    %v500 = vmax.f32 %v498, 0.0
    %v501 = vmax.f32 %v499, 0.0
    %v503 = vsel %vm194, %v500, 0
    %v506 = vsel %vm194, %v501, 0
    %508 = vmatpush.msra.mxu0 0.0
    %509 = vmatpush.msra.mxu0 0.0
    %510 = vmatpush.msra.mxu0 0.0
    %511 = vmatpush.msra.mxu0 0.0
    %512 = vmatpush.msra.mxu0 0.0
    %513 = vmatpush.msra.mxu0 0.0
    %514 = vmatpush.msra.mxu0 0.0
    %515 = vmatpush.msra.mxu0 0.0
    %516 = vmatpush.msra.mxu0 0.0
    %517 = vmatpush.msra.mxu0 0.0
    %518 = vmatpush.msra.mxu0 0.0
    %519 = vmatpush.msra.mxu0 0.0
    %520 = vmatpush.msra.mxu0 %v352
    %521 = vmatpush.msra.mxu0 %v351
    %522 = vmatpush.msra.mxu0 %v350
    %523 = vmatpush.msra.mxu0 %v349
    %524 = vmatmul.f32.gmra.mxu0 %v503
    %v525 = vpop.f32.mrf.mxu0
    %v526 = vadd.f32 0.0, %v525
    %527 = vmatmul.f32.gmra.mxu0 %v506
    %v528 = vpop.f32.mrf.mxu0
    %v529 = vadd.f32 0.0, %v528
    %530 = vdwg.mxu0
    %v531 = vadd.f32 %v443, %v526
    %v532 = vadd.f32 %v444, %v529
    %v533 = vmax.f32 %v531, 0.0
    %v534 = vmax.f32 %v532, 0.0
    %v535 = vld [vmem:[%s8] sm:$0xff]
    %v536 = vld [vmem:[%s8 + $0x8] sm:$0xff]
    %v537 = vld [vmem:[%s8 + $0x10] sm:$0xff]
    %v538 = vld [vmem:[%s8 + $0x18] sm:$0xff]
    %v539 = vld [vmem:[%s9] sm:$0x1]
    %v541 = vperm.slane %v539, 0
    %v544 = vsel %vm194, %v533, 0
    %v547 = vsel %vm194, %v534, 0
    %549 = vmatpush.msra.mxu0 0.0
    %550 = vmatpush.msra.mxu0 0.0
    %551 = vmatpush.msra.mxu0 0.0
    %552 = vmatpush.msra.mxu0 0.0
    %553 = vmatpush.msra.mxu0 0.0
    %554 = vmatpush.msra.mxu0 0.0
    %555 = vmatpush.msra.mxu0 0.0
    %556 = vmatpush.msra.mxu0 0.0
    %557 = vmatpush.msra.mxu0 0.0
    %558 = vmatpush.msra.mxu0 0.0
    %559 = vmatpush.msra.mxu0 0.0
    %560 = vmatpush.msra.mxu0 0.0
    %561 = vmatpush.msra.mxu0 %v538
    %562 = vmatpush.msra.mxu0 %v537
    %563 = vmatpush.msra.mxu0 %v536
    %564 = vmatpush.msra.mxu0 %v535
    %565 = vmatmul.f32.gmra.mxu0 %v544
    %v566 = vpop.f32.mrf.mxu0
    %v567 = vadd.f32 %v541, %v566
    %568 = vmatmul.f32.gmra.mxu0 %v547
    %v569 = vpop.f32.mrf.mxu0
    %v570 = vadd.f32 %v541, %v569
    %571 = vdwg.mxu0
    %v572 = vld [vmem:[%s4] sm:$0xff]
    %v573 = vld [vmem:[%s4 + $0x8] sm:$0xff]
    %v574 = vld [vmem:[%s10] sm:$0xff]
    %v575 = vld [vmem:[%s10 + $0x8] sm:$0xff]
    %v576 = vld [vmem:[%s10 + $0x10] sm:$0xff]
    %v577 = vld [vmem:[%s10 + $0x18] sm:$0xff]
    %v578 = vld [vmem:[%s11] sm:$0xff]
    %v579 = vld [vmem:[%s11 + $0x8] sm:$0xff]
    %v580 = vld [vmem:[%s11 + $0x10] sm:$0xff]
    %v581 = vld [vmem:[%s11 + $0x18] sm:$0xff]
    %v583 = vsel %vm194, %v567, 0
    %v586 = vsel %vm194, %v570, 0
    %588 = vmatpush.msra.mxu0 0.0
    %589 = vmatpush.msra.mxu0 0.0
    %590 = vmatpush.msra.mxu0 0.0
    %591 = vmatpush.msra.mxu0 0.0
    %592 = vmatpush.msra.mxu0 0.0
    %593 = vmatpush.msra.mxu0 0.0
    %594 = vmatpush.msra.mxu0 0.0
    %595 = vmatpush.msra.mxu0 0.0
    %596 = vmatpush.msra.mxu0 0.0
    %597 = vmatpush.msra.mxu0 0.0
    %598 = vmatpush.msra.mxu0 0.0
    %599 = vmatpush.msra.mxu0 0.0
    %600 = vmatpush.msra.mxu0 %v581
    %601 = vmatpush.msra.mxu0 %v580
    %602 = vmatpush.msra.mxu0 %v579
    %603 = vmatpush.msra.mxu0 %v578
    %604 = vmatmul.f32.gmra.mxu0 %v583
    %v605 = vpop.f32.mrf.mxu0
    %v606 = vadd.f32 0.0, %v605
    %607 = vmatmul.f32.gmra.mxu0 %v586
    %v608 = vpop.f32.mrf.mxu0
    %v609 = vadd.f32 0.0, %v608
    %610 = vdwg.mxu0
    %v612 = vsel %vm194, %v572, 0
    %v615 = vsel %vm194, %v573, 0
    %617 = vmatpush.msra.mxu0 0.0
    %618 = vmatpush.msra.mxu0 0.0
    %619 = vmatpush.msra.mxu0 0.0
    %620 = vmatpush.msra.mxu0 0.0
    %621 = vmatpush.msra.mxu0 0.0
    %622 = vmatpush.msra.mxu0 0.0
    %623 = vmatpush.msra.mxu0 0.0
    %624 = vmatpush.msra.mxu0 0.0
    %625 = vmatpush.msra.mxu0 0.0
    %626 = vmatpush.msra.mxu0 0.0
    %627 = vmatpush.msra.mxu0 0.0
    %628 = vmatpush.msra.mxu0 0.0
    %629 = vmatpush.msra.mxu0 %v577
    %630 = vmatpush.msra.mxu0 %v576
    %631 = vmatpush.msra.mxu0 %v575
    %632 = vmatpush.msra.mxu0 %v574
    %633 = vmatmul.f32.gmra.mxu0 %v612
    %v634 = vpop.f32.mrf.mxu0
    %v635 = vadd.f32 %v606, %v634
    %636 = vmatmul.f32.gmra.mxu0 %v615
    %v637 = vpop.f32.mrf.mxu0
    %v638 = vadd.f32 %v609, %v637
    %639 = vdwg.mxu0
    %v640 = vld [vmem:[%s12] sm:$0x1]
    %v642 = vperm.slane %v640, 0
    %v644 = vadd.f32 %v635, %v642
    %v645 = vadd.f32 %v638, %v642
    %v646 = vmax.f32 %v644, 0.0
    %v647 = vmax.f32 %v645, 0.0
    %648 = vst.msk [vmem:[%s13] sm:$0xff] %vm194, %v646
    %649 = vst.msk [vmem:[%s13 + $0x8] sm:$0xff] %vm194, %v647
  $region61: #{gat_policy_forward.14} parent=0 // pred_fallthru
    _
  // Predicated region
  $region62: #{gat_policy_forward.14} parent=0 // pred_check
    _
  $region63: #{gat_policy_forward.14} parent=0 // pred_check_branch
    %651 = sbr.rel (0) target = $region65
  $region64: #{gat_policy_forward.14} parent=0 // pred_region
    _
  $region65: #{gat_policy_forward.14} parent=0 // pred_fallthru
    _
  // Predicated region
  $region66: #{gat_policy_forward.14} parent=0 // pred_check
    _
  $region67: #{gat_policy_forward.14} parent=0 // pred_check_branch
    %653 = sbr.rel (0) target = $region69
  $region68: #{gat_policy_forward.14} parent=0 // pred_region
    _
  $region69: #{gat_policy_forward.14} parent=0 // pred_fallthru
    _

</llo_original>
